<compile_context>
chip_gen: v5e
topology: v5e:2x2
jax: 0.10.0
libtpu: 0.0.40
codegen_flags: <defaults>
</compile_context>

<pallas_src>
import functools
import math

import jax
import jax.numpy as jnp
from jax import lax
from jax.experimental import pallas as pl
from jax.experimental.pallas import tpu as pltpu

_LANE = 128
_MAX_TM = 32768   # pixel (lane-axis) tile upper bound


def _round_up(x, m):
    return (x + m - 1) // m * m


def _cdiv(a, b):
    return -(-a // b)


def _pick_tile(n_pix, min_steps=1):
    """Largest lane tile <= _MAX_TM with <= 127 lanes of (in-kernel masked) padding."""
    steps = max(min_steps, _cdiv(n_pix, _MAX_TM))
    tm = _round_up(_cdiv(n_pix, steps), _LANE)
    steps = _cdiv(n_pix, tm)          # never emit fully out-of-bounds tiles
    return tm, steps


# ----------------------------------------------------------------------------
# Counter-based normal noise (no pltpu.prng_* -> works on Mosaic AND interpret)
# ----------------------------------------------------------------------------
def _hash32(x):
    """SplitMix-style 32-bit avalanche hash (uint32 -> uint32)."""
    x = x ^ (x >> jnp.uint32(16))
    x = x * jnp.uint32(0x7FEB352D)
    x = x ^ (x >> jnp.uint32(15))
    x = x * jnp.uint32(0x846CA68B)
    x = x ^ (x >> jnp.uint32(16))
    return x


def _uniform01(bits):
    """Top 24 bits of a uint32 -> f32 uniform in the open interval (0, 1)."""
    m = (bits >> jnp.uint32(8)).astype(jnp.int32)            # < 2**24, value-preserving
    return (m.astype(jnp.float32) + 0.5) * jnp.float32(1.0 / (1 << 24))


def _std_normal(seed_u32, batch_idx, pix0, cz, tm, n_pix_total):
    """(cz, tm) standard-normal noise, keyed on the absolute (b, c, pixel) index
    so the realization does not change with tile size / pad policy."""
    def uniforms(nrows):
        chan = lax.broadcasted_iota(jnp.int32, (nrows, tm), 0)
        lane = lax.broadcasted_iota(jnp.int32, (nrows, tm), 1)
        idx = ((batch_idx * cz + chan) * n_pix_total + pix0 + lane).astype(jnp.uint32)
        h1 = _hash32(idx ^ seed_u32)
        h2 = _hash32(h1 ^ jnp.uint32(0x9E3779B9))
        return _uniform01(h1), _uniform01(h2)

    two_pi = jnp.float32(2.0 * math.pi)
    if cz % 2 == 0:
        # Box-Muller pair trick: one log+sqrt per TWO normals (less EUP work).
        u1, u2 = uniforms(cz // 2)
        r = jnp.sqrt(-2.0 * jnp.log(u1))
        th = two_pi * u2
        return jnp.concatenate([r * jnp.cos(th), r * jnp.sin(th)], axis=0)
    u1, u2 = uniforms(cz)
    return jnp.sqrt(-2.0 * jnp.log(u1)) * jnp.cos(two_pi * u2)


# ----------------------------------------------------------------------------
# Pallas kernels (channels on the sublane axis, pixels on the lane axis)
# ----------------------------------------------------------------------------
def _affine_channels(w, x):
    """(Cout, Cin) x (Cin, TM) -> (Cout, TM) as unrolled VPU broadcast-MACs.

    Channel counts are tiny (3-16) for the 1x1x1-conv stand-in, so this avoids
    the MXU f32-emulation path entirely; a real VAE conv stack should switch to
    a tiled bf16 jnp.dot instead."""
    acc = w[:, 0:1] * x[0:1, :]
    for k in range(1, x.shape[0]):
        acc = acc + w[:, k:k + 1] * x[k:k + 1, :]
    return acc


def _encode_kernel(seed_ref, x_ref, w_ref, b_ref, scale_ref, o_ref, *, n_pix_total):
    # seed_ref:  (1,) int32 SMEM (scalar prefetch)
    # x_ref:     (Cin, TM)       video pixels (any float dtype; compute in f32)
    # w_ref:     (2*Cz, Cin) f32 rows [0:Cz] = scale*W_mean, rows [Cz:] = W_logvar
    # b_ref:     (2*Cz, 1)   f32 rows [0:Cz] = scale*(b_mean - shift), rows [Cz:] = b_logvar
    # scale_ref: (Cz, 1)     f32 AEModel `scale`, applied to the std term only so
    #                            the [-30, 20] logvar clip semantics stay exact
    # o_ref:     (Cz, TM)        latents
    cz, tm = o_ref.shape
    bi = pl.program_id(0)
    pix0 = pl.program_id(1) * tm

    x = x_ref[...].astype(jnp.float32)
    acc = _affine_channels(w_ref[...], x) + b_ref[...]            # (2*Cz, TM)

    mean = acc[:cz, :]                        # AEModel shift/scale folded into w/b
    logvar = jnp.clip(acc[cz:, :], -30.0, 20.0)       # DiagonalGaussian convention
    std = jnp.exp(0.5 * logvar)

    eps = _std_normal(seed_ref[0].astype(jnp.uint32), bi, pix0, cz, tm, n_pix_total)
    o_ref[...] = (mean + scale_ref[...] * std * eps).astype(o_ref.dtype)


def _decode_kernel(z_ref, w_ref, b_ref, o_ref):
    # z_ref: (Cz, TILE); w_ref: (Cout, Cz) = W_dec/scale; b_ref: (Cout, 1) = W_dec@shift + b_dec
    # o_ref: (Cout, TILE) — one (batch, frame) slab; the PyTorch-side
    # 'b c t h w -> b t c h w' rearrange is realized by the output BlockSpec,
    # not by an extra XLA transpose pass.
    z = z_ref[...].astype(jnp.float32)
    o_ref[...] = (_affine_channels(w_ref[...], z) + b_ref[...]).astype(o_ref.dtype)


# ----------------------------------------------------------------------------
# pallas_call wrappers
# ----------------------------------------------------------------------------
def encode_pallas(x_bcp, w_enc, b_enc, scale_col, seed, out_dtype):
    b, c_in, n_pix = x_bcp.shape
    c_z2 = w_enc.shape[0]
    c_z = c_z2 // 2
    # >= 2 parallel grid iterations when b == 1 so both v7x TensorCores get work.
    tm, steps = _pick_tile(n_pix, min_steps=2 if b == 1 else 1)
    grid = (b, steps)
    seed_arr = jnp.asarray([seed], jnp.int32)

    cost = pl.CostEstimate(
        flops=b * n_pix * (2 * c_z2 * c_in + 16 * c_z),
        transcendentals=3 * b * n_pix * c_z,
        bytes_accessed=int(x_bcp.size) * x_bcp.dtype.itemsize
        + b * c_z * n_pix * jnp.dtype(out_dtype).itemsize,
    )

    return pl.pallas_call(
        functools.partial(_encode_kernel, n_pix_total=n_pix),
        out_shape=jax.ShapeDtypeStruct((b, c_z, n_pix), out_dtype),
        grid_spec=pltpu.PrefetchScalarGridSpec(
            num_scalar_prefetch=1,
            grid=grid,
            in_specs=[
                pl.BlockSpec((None, c_in, tm), lambda bi, pi, sref: (bi, 0, pi)),
                pl.BlockSpec((c_z2, c_in), lambda bi, pi, sref: (0, 0)),
                pl.BlockSpec((c_z2, 1), lambda bi, pi, sref: (0, 0)),
                pl.BlockSpec((c_z, 1), lambda bi, pi, sref: (0, 0)),
            ],
            out_specs=pl.BlockSpec((None, c_z, tm), lambda bi, pi, sref: (bi, 0, pi)),
        ),
        compiler_params=pltpu.CompilerParams(
            dimension_semantics=("parallel", "parallel")),
        cost_estimate=cost,
    )(seed_arr, x_bcp, w_enc, b_enc, scale_col)


def decode_pallas(z_bcthw, w_dec, b_dec, out_dtype):
    # z_bcthw: (b, c_z, t, h*w) latents; returns (b, t, c_out, h*w) — the
    # 'b c t h w -> b t c h w' rearrange is folded into the output BlockSpec.
    b, c_z, t, hw = z_bcthw.shape
    c_out = w_dec.shape[0]
    tile, steps = _pick_tile(hw, min_steps=2 if b * t == 1 else 1)
    grid = (b, t, steps)

    cost = pl.CostEstimate(
        flops=2 * b * t * hw * c_z * c_out,
        transcendentals=0,
        bytes_accessed=int(z_bcthw.size) * z_bcthw.dtype.itemsize
        + b * t * c_out * hw * jnp.dtype(out_dtype).itemsize,
    )

    return pl.pallas_call(
        _decode_kernel,
        out_shape=jax.ShapeDtypeStruct((b, t, c_out, hw), out_dtype),
        grid=grid,
        in_specs=[
            pl.BlockSpec((None, c_z, None, tile), lambda bi, ti, pi: (bi, 0, ti, pi)),
            pl.BlockSpec((c_out, c_z), lambda bi, ti, pi: (0, 0)),
            pl.BlockSpec((c_out, 1), lambda bi, ti, pi: (0, 0)),
        ],
        out_specs=pl.BlockSpec((None, None, c_out, tile),
                               lambda bi, ti, pi: (bi, ti, 0, pi)),
        compiler_params=pltpu.CompilerParams(
            dimension_semantics=("parallel", "parallel", "parallel")),
        cost_estimate=cost,
    )(z_bcthw, w_dec, b_dec)


# ----------------------------------------------------------------------------
# AEModel re-implementation
# ----------------------------------------------------------------------------
class AEModelPallas:
    """JAX/Pallas re-implementation of AEModel's encode / decode semantics."""

    def __init__(self, c_in, c_z, shift, scale, key, act_dtype=jnp.bfloat16):
        # act_dtype controls only the HBM round-trip precision of latents /
        # decoded video; all in-kernel math is f32 (use jnp.float32 for parity).
        self.c_in, self.c_z = c_in, c_z
        self.act_dtype = act_dtype
        k1, k2, k3 = jax.random.split(key, 3)

        # Deterministic synthetic inner-VAE parameters (1x1x1-conv stand-in),
        # channels-first layout, kept in f32.
        w_mean = (jax.random.normal(k1, (c_z, c_in)) * 0.1).astype(jnp.float32)
        b_mean = jnp.zeros((c_z,), jnp.float32)
        w_logvar = (jax.random.normal(k2, (c_z, c_in)) * 0.1).astype(jnp.float32)
        b_logvar = jnp.full((c_z,), -1.0, jnp.float32)
        w_dec = (jax.random.normal(k3, (c_in, c_z)) * 0.1).astype(jnp.float32)
        b_dec = jnp.zeros((c_in,), jnp.float32)

        shift = jnp.asarray(shift, jnp.float32)
        scale = jnp.asarray(scale, jnp.float32)

        # Fold the AEModel affine into the conv parameters:
        #   encode: (mean + std*eps - shift)*scale = (scale*Wm)x + scale*(bm-shift) + scale*std*eps
        self.w_enc = jnp.concatenate([w_mean * scale[:, None], w_logvar], axis=0)   # (2*Cz, Cin)
        self.b_enc = jnp.concatenate(
            [(scale * (b_mean - shift))[:, None], b_logvar[:, None]], axis=0)        # (2*Cz, 1)
        self.scale_col = scale[:, None]                                              # (Cz, 1)
        #   decode: Wd(z/scale + shift) + bd = (Wd/scale) z + (Wd@shift + bd)
        self.w_dec = w_dec / scale[None, :]                                           # (Cout, Cz)
        self.b_dec = (w_dec @ shift + b_dec)[:, None]                                 # (Cout, 1)

    def encode(self, x, seed=0):
        # x: (b, c_in, t, h, w) NCTHW, same as PyTorch.  Reshape only (free).
        b, c, t, h, w = x.shape
        z = encode_pallas(x.reshape(b, c, t * h * w), self.w_enc, self.b_enc,
                          self.scale_col, seed, self.act_dtype)
        return z.reshape(b, self.c_z, t, h, w)          # (b, c_z, t, h, w)

    def decode(self, z):
        b, c, t, h, w = z.shape
        y = decode_pallas(z.reshape(b, c, t, h * w), self.w_dec, self.b_dec,
                          self.act_dtype)               # (b, t, c_out, h*w)
        # 'b c t h w -> b t c h w' already realized by the kernel's out BlockSpec.
        return y.reshape(b, t, self.c_in, h, w)

    def __call__(self, x):
        raise NotImplementedError('forward function is not implemented')


# ----------------------------------------------------------------------------
if __name__ == "__main__":
    key = jax.random.PRNGKey(0)
    k_params, k_x = jax.random.split(key, 2)

    # Small shapes; pixels per sample = 1024, per-frame pixels = 256 (lane aligned).
    B, C_IN, C_Z, T, H, W = 2, 3, 4, 4, 16, 16
    shift = [0.1, -0.2, 0.3, 0.0]
    scale = [1.5, 0.8, 1.0, 2.0]

    model = AEModelPallas(C_IN, C_Z, shift, scale, k_params, act_dtype=jnp.bfloat16)

    x = jax.random.normal(k_x, (B, C_IN, T, H, W), jnp.float32)

    z = model.encode(x, seed=0)          # (B, C_Z, T, H, W)
    y = model.decode(z)                  # (B, T, C_IN, H, W)
    jax.block_until_ready((z, y))

    assert z.shape == (B, C_Z, T, H, W)
    assert y.shape == (B, T, C_IN, H, W)
    assert bool(jnp.isfinite(z.astype(jnp.float32)).all())

    # Deterministic decode-path parity check against a pure-jnp reference
    # (same folded params, same bf16 latents; only output rounding differs).
    z32 = z.astype(jnp.float32)
    y_ref = jnp.einsum("oc,bcthw->bothw", model.w_dec, z32) \
        + model.b_dec[:, 0][None, :, None, None, None]
    y_ref = jnp.transpose(y_ref, (0, 2, 1, 3, 4))
    assert bool(jnp.allclose(y.astype(jnp.float32), y_ref, atol=5e-2, rtol=5e-2))

    print("KERNEL_OK")
</pallas_src>

<mosaic_0001>
module attributes {stable_mosaic.version = 11 : i64} {
  func.func @_encode_kernel(%arg0: i32, %arg1: i32, %arg2: memref<1xi32, #tpu.memory_space<smem>>, %arg3: memref<1x3x1024xf32, #tpu.memory_space<vmem>>, %arg4: memref<8x3xf32, #tpu.memory_space<vmem>>, %arg5: memref<8x1xf32, #tpu.memory_space<vmem>>, %arg6: memref<4x1xf32, #tpu.memory_space<vmem>>, %arg7: memref<1x4x1024xbf16, #tpu.memory_space<vmem>>) attributes {dimension_semantics = [#tpu.dimension_semantics<parallel>, #tpu.dimension_semantics<parallel>], iteration_bounds = array<i64: 2, 1>, scalar_prefetch = 1 : i64, scratch_operands = 0 : i64, tpu.core_type = #tpu.core_type<tc>, window_params = [{transform_indices = @transform_0, window_bounds = array<i64: 1, 3, 1024>}, {pipeline_mode = #tpu.pipeline_mode<synchronous>, transform_indices = @transform_1, window_bounds = array<i64: 8, 3>}, {pipeline_mode = #tpu.pipeline_mode<synchronous>, transform_indices = @transform_2, window_bounds = array<i64: 8, 1>}, {pipeline_mode = #tpu.pipeline_mode<synchronous>, transform_indices = @transform_3, window_bounds = array<i64: 4, 1>}, {transform_indices = @transform_4, window_bounds = array<i64: 1, 4, 1024>}]} {
    %c1024_i32 = arith.constant 1024 : i32
    %0 = arith.muli %arg1, %c1024_i32 : i32
    %c0 = arith.constant 0 : index
    %c0_0 = arith.constant 0 : index
    %c0_1 = arith.constant 0 : index
    %1 = vector.load %arg3[%c0, %c0_0, %c0_1] : memref<1x3x1024xf32, #tpu.memory_space<vmem>>, vector<1x3x1024xf32>
    %2 = vector.shape_cast %1 : vector<1x3x1024xf32> to vector<3x1024xf32>
    %c0_2 = arith.constant 0 : index
    %c0_3 = arith.constant 0 : index
    %3 = vector.load %arg4[%c0_2, %c0_3] : memref<8x3xf32, #tpu.memory_space<vmem>>, vector<8x3xf32>
    %4 = vector.extract_strided_slice %3 {offsets = [0, 0], sizes = [8, 1], strides = [1, 1]} : vector<8x3xf32> to vector<8x1xf32>
    %5 = vector.extract_strided_slice %2 {offsets = [0, 0], sizes = [1, 1024], strides = [1, 1]} : vector<3x1024xf32> to vector<1x1024xf32>
    %6 = vector.broadcast %4 : vector<8x1xf32> to vector<8x1024xf32>
    %7 = vector.broadcast %5 : vector<1x1024xf32> to vector<8x1024xf32>
    %8 = arith.mulf %6, %7 : vector<8x1024xf32>
    %9 = vector.extract_strided_slice %3 {offsets = [0, 1], sizes = [8, 1], strides = [1, 1]} : vector<8x3xf32> to vector<8x1xf32>
    %10 = vector.extract_strided_slice %2 {offsets = [1, 0], sizes = [1, 1024], strides = [1, 1]} : vector<3x1024xf32> to vector<1x1024xf32>
    %11 = vector.broadcast %9 : vector<8x1xf32> to vector<8x1024xf32>
    %12 = vector.broadcast %10 : vector<1x1024xf32> to vector<8x1024xf32>
    %13 = arith.mulf %11, %12 : vector<8x1024xf32>
    %14 = arith.addf %8, %13 : vector<8x1024xf32>
    %15 = vector.extract_strided_slice %3 {offsets = [0, 2], sizes = [8, 1], strides = [1, 1]} : vector<8x3xf32> to vector<8x1xf32>
    %16 = vector.extract_strided_slice %2 {offsets = [2, 0], sizes = [1, 1024], strides = [1, 1]} : vector<3x1024xf32> to vector<1x1024xf32>
    %17 = vector.broadcast %15 : vector<8x1xf32> to vector<8x1024xf32>
    %18 = vector.broadcast %16 : vector<1x1024xf32> to vector<8x1024xf32>
    %19 = arith.mulf %17, %18 : vector<8x1024xf32>
    %20 = arith.addf %14, %19 : vector<8x1024xf32>
    %c0_4 = arith.constant 0 : index
    %c0_5 = arith.constant 0 : index
    %21 = vector.load %arg5[%c0_4, %c0_5] : memref<8x1xf32, #tpu.memory_space<vmem>>, vector<8x1xf32>
    %22 = vector.broadcast %21 : vector<8x1xf32> to vector<8x1024xf32>
    %23 = arith.addf %20, %22 : vector<8x1024xf32>
    %24 = vector.extract_strided_slice %23 {offsets = [0, 0], sizes = [4, 1024], strides = [1, 1]} : vector<8x1024xf32> to vector<4x1024xf32>
    %25 = vector.extract_strided_slice %23 {offsets = [4, 0], sizes = [4, 1024], strides = [1, 1]} : vector<8x1024xf32> to vector<4x1024xf32>
    %cst = arith.constant -3.000000e+01 : f32
    %cst_6 = arith.constant 2.000000e+01 : f32
    %26 = vector.broadcast %cst : f32 to vector<4x1024xf32>
    %27 = arith.maximumf %26, %25 : vector<4x1024xf32>
    %28 = vector.broadcast %cst_6 : f32 to vector<4x1024xf32>
    %29 = arith.minimumf %28, %27 : vector<4x1024xf32>
    %cst_7 = arith.constant 5.000000e-01 : f32
    %30 = vector.broadcast %cst_7 : f32 to vector<4x1024xf32>
    %31 = arith.mulf %30, %29 : vector<4x1024xf32>
    %32 = math.exp %31 : vector<4x1024xf32>
    %c0_8 = arith.constant 0 : index
    %33 = memref.load %arg2[%c0_8] : memref<1xi32, #tpu.memory_space<smem>>
    %34 = tpu.iota {dimensions = array<i32: 0>} : vector<2x1024xi32>
    %35 = tpu.iota {dimensions = array<i32: 1>} : vector<2x1024xi32>
    %c4_i32 = arith.constant 4 : i32
    %36 = arith.muli %arg0, %c4_i32 : i32
    %37 = vector.broadcast %36 : i32 to vector<2x1024xi32>
    %38 = arith.addi %37, %34 : vector<2x1024xi32>
    %c1024_i32_9 = arith.constant 1024 : i32
    %39 = vector.broadcast %c1024_i32_9 : i32 to vector<2x1024xi32>
    %40 = arith.muli %38, %39 : vector<2x1024xi32>
    %41 = vector.broadcast %0 : i32 to vector<2x1024xi32>
    %42 = arith.addi %40, %41 : vector<2x1024xi32>
    %43 = arith.addi %42, %35 : vector<2x1024xi32>
    %44 = vector.broadcast %33 : i32 to vector<2x1024xi32>
    %45 = arith.xori %43, %44 : vector<2x1024xi32>
    %c16_i32 = arith.constant 16 : i32
    %46 = vector.broadcast %c16_i32 : i32 to vector<2x1024xi32>
    %47 = arith.shrui %45, %46 : vector<2x1024xi32>
    %48 = arith.xori %45, %47 : vector<2x1024xi32>
    %c2146121005_i32 = arith.constant 2146121005 : i32
    %49 = vector.broadcast %c2146121005_i32 : i32 to vector<2x1024xi32>
    %50 = arith.muli %48, %49 : vector<2x1024xi32>
    %c15_i32 = arith.constant 15 : i32
    %51 = vector.broadcast %c15_i32 : i32 to vector<2x1024xi32>
    %52 = arith.shrui %50, %51 : vector<2x1024xi32>
    %53 = arith.xori %50, %52 : vector<2x1024xi32>
    %c-2073254261_i32 = arith.constant -2073254261 : i32
    %54 = vector.broadcast %c-2073254261_i32 : i32 to vector<2x1024xi32>
    %55 = arith.muli %53, %54 : vector<2x1024xi32>
    %c16_i32_10 = arith.constant 16 : i32
    %56 = vector.broadcast %c16_i32_10 : i32 to vector<2x1024xi32>
    %57 = arith.shrui %55, %56 : vector<2x1024xi32>
    %58 = arith.xori %55, %57 : vector<2x1024xi32>
    %c-1640531527_i32 = arith.constant -1640531527 : i32
    %59 = vector.broadcast %c-1640531527_i32 : i32 to vector<2x1024xi32>
    %60 = arith.xori %58, %59 : vector<2x1024xi32>
    %c16_i32_11 = arith.constant 16 : i32
    %61 = vector.broadcast %c16_i32_11 : i32 to vector<2x1024xi32>
    %62 = arith.shrui %60, %61 : vector<2x1024xi32>
    %63 = arith.xori %60, %62 : vector<2x1024xi32>
    %c2146121005_i32_12 = arith.constant 2146121005 : i32
    %64 = vector.broadcast %c2146121005_i32_12 : i32 to vector<2x1024xi32>
    %65 = arith.muli %63, %64 : vector<2x1024xi32>
    %c15_i32_13 = arith.constant 15 : i32
    %66 = vector.broadcast %c15_i32_13 : i32 to vector<2x1024xi32>
    %67 = arith.shrui %65, %66 : vector<2x1024xi32>
    %68 = arith.xori %65, %67 : vector<2x1024xi32>
    %c-2073254261_i32_14 = arith.constant -2073254261 : i32
    %69 = vector.broadcast %c-2073254261_i32_14 : i32 to vector<2x1024xi32>
    %70 = arith.muli %68, %69 : vector<2x1024xi32>
    %c16_i32_15 = arith.constant 16 : i32
    %71 = vector.broadcast %c16_i32_15 : i32 to vector<2x1024xi32>
    %72 = arith.shrui %70, %71 : vector<2x1024xi32>
    %73 = arith.xori %70, %72 : vector<2x1024xi32>
    %c8_i32 = arith.constant 8 : i32
    %74 = vector.broadcast %c8_i32 : i32 to vector<2x1024xi32>
    %75 = arith.shrui %58, %74 : vector<2x1024xi32>
    %76 = arith.sitofp %75 : vector<2x1024xi32> to vector<2x1024xf32>
    %cst_16 = arith.constant 5.000000e-01 : f32
    %77 = vector.broadcast %cst_16 : f32 to vector<2x1024xf32>
    %78 = arith.addf %76, %77 : vector<2x1024xf32>
    %cst_17 = arith.constant 5.96046448E-8 : f32
    %79 = vector.broadcast %cst_17 : f32 to vector<2x1024xf32>
    %80 = arith.mulf %78, %79 : vector<2x1024xf32>
    %c8_i32_18 = arith.constant 8 : i32
    %81 = vector.broadcast %c8_i32_18 : i32 to vector<2x1024xi32>
    %82 = arith.shrui %73, %81 : vector<2x1024xi32>
    %83 = arith.sitofp %82 : vector<2x1024xi32> to vector<2x1024xf32>
    %cst_19 = arith.constant 5.000000e-01 : f32
    %84 = vector.broadcast %cst_19 : f32 to vector<2x1024xf32>
    %85 = arith.addf %83, %84 : vector<2x1024xf32>
    %cst_20 = arith.constant 5.96046448E-8 : f32
    %86 = vector.broadcast %cst_20 : f32 to vector<2x1024xf32>
    %87 = arith.mulf %85, %86 : vector<2x1024xf32>
    %88 = math.log %80 : vector<2x1024xf32>
    %cst_21 = arith.constant -2.000000e+00 : f32
    %89 = vector.broadcast %cst_21 : f32 to vector<2x1024xf32>
    %90 = arith.mulf %89, %88 : vector<2x1024xf32>
    %91 = math.sqrt %90 : vector<2x1024xf32>
    %cst_22 = arith.constant 6.28318548 : f32
    %92 = vector.broadcast %cst_22 : f32 to vector<2x1024xf32>
    %93 = arith.mulf %92, %87 : vector<2x1024xf32>
    %94 = math.cos %93 : vector<2x1024xf32>
    %95 = arith.mulf %91, %94 : vector<2x1024xf32>
    %96 = math.sin %93 : vector<2x1024xf32>
    %97 = arith.mulf %91, %96 : vector<2x1024xf32>
    %98 = tpu.concatenate %95, %97 in 0 : vector<2x1024xf32>, vector<2x1024xf32> -> vector<4x1024xf32>
    %c0_23 = arith.constant 0 : index
    %c0_24 = arith.constant 0 : index
    %99 = vector.load %arg6[%c0_23, %c0_24] : memref<4x1xf32, #tpu.memory_space<vmem>>, vector<4x1xf32>
    %100 = vector.broadcast %99 : vector<4x1xf32> to vector<4x1024xf32>
    %101 = arith.mulf %100, %32 : vector<4x1024xf32>
    %102 = arith.mulf %101, %98 : vector<4x1024xf32>
    %103 = arith.addf %24, %102 : vector<4x1024xf32>
    %104 = arith.truncf %103 : vector<4x1024xf32> to vector<4x1024xbf16>
    %c0_25 = arith.constant 0 : index
    %c0_26 = arith.constant 0 : index
    %c0_27 = arith.constant 0 : index
    %105 = vector.load %arg7[%c0_25, %c0_26, %c0_27] : memref<1x4x1024xbf16, #tpu.memory_space<vmem>>, vector<1x4x1024xbf16>
    %106 = vector.shape_cast %105 : vector<1x4x1024xbf16> to vector<4x1024xbf16>
    %107 = vector.shape_cast %104 : vector<4x1024xbf16> to vector<1x4x1024xbf16>
    tpu.vector_store %arg7[%c0_25, %c0_26, %c0_27], %107 {strides = array<i32>} : memref<1x4x1024xbf16, #tpu.memory_space<vmem>>, vector<1x4x1024xbf16>,
    return
  }
  func.func @transform_0(%arg0: i32, %arg1: i32, %arg2: memref<1xi32, #tpu.memory_space<smem>>) -> (i32, i32, i32) {
    %c0_i32 = arith.constant 0 : i32
    %c0_i32_0 = arith.constant 0 : i32
    return %arg0, %c0_i32, %arg1 : i32, i32, i32
  }
  func.func @transform_1(%arg0: i32, %arg1: i32, %arg2: memref<1xi32, #tpu.memory_space<smem>>) -> (i32, i32) {
    %c0_i32 = arith.constant 0 : i32
    %c0_i32_0 = arith.constant 0 : i32
    %c0_i32_1 = arith.constant 0 : i32
    return %c0_i32, %c0_i32_0 : i32, i32
  }
  func.func @transform_2(%arg0: i32, %arg1: i32, %arg2: memref<1xi32, #tpu.memory_space<smem>>) -> (i32, i32) {
    %c0_i32 = arith.constant 0 : i32
    %c0_i32_0 = arith.constant 0 : i32
    %c0_i32_1 = arith.constant 0 : i32
    return %c0_i32, %c0_i32_0 : i32, i32
  }
  func.func @transform_3(%arg0: i32, %arg1: i32, %arg2: memref<1xi32, #tpu.memory_space<smem>>) -> (i32, i32) {
    %c0_i32 = arith.constant 0 : i32
    %c0_i32_0 = arith.constant 0 : i32
    %c0_i32_1 = arith.constant 0 : i32
    return %c0_i32, %c0_i32_0 : i32, i32
  }
  func.func @transform_4(%arg0: i32, %arg1: i32, %arg2: memref<1xi32, #tpu.memory_space<smem>>) -> (i32, i32, i32) {
    %c0_i32 = arith.constant 0 : i32
    %c0_i32_0 = arith.constant 0 : i32
    return %arg0, %c0_i32, %arg1 : i32, i32, i32
  }
}

</mosaic_0001>

<llo_original>
// kernel: tpu_custom_call.1
$region0: #{tpu_custom_call.1}
  #allocation0 [shape = 'u32[]', space=smem, size = 0x4, offset = 0x4, fixed_abs, tag = 'smem constant byte address 0x4 - core index']
  #allocation1 [shape = 'u32[72,128]{1,0:T(1,128)}', space=vmem, size = 0x9000, scoped, tag = 'internal scratch']
  #allocation2 [shape = 's32[1]{0}', space=sflag, size = 0x4, scoped, tag = 'scoped memory for tpu_custom_call.1']
  #allocation3 [shape = 's32[1]{0:T(128)S(6)}', space=smem, size = 0x200, scoped, tag = 'prefetched SMEM operand 0']
  %s0 = inlined_call_operand.<no memory space> [shape: s32[1], index: 0, kind: input, shape index: {}]
  %s1 = inlined_call_operand.vmem [shape: f32[2,3,1024], index: 1, kind: input, shape index: {}]
  %s2 = inlined_call_operand.vmem [shape: f32[8,3], index: 2, kind: input, shape index: {}]
  %s3 = inlined_call_operand.vmem [shape: f32[8,1], index: 3, kind: input, shape index: {}]
  %s4 = inlined_call_operand.vmem [shape: f32[4,1], index: 4, kind: input, shape index: {}]
  %s5 = inlined_call_operand.hbm [shape: bf16[2,4,1024], index: 5, kind: output, shape index: {}]
  %s6 = sld [smem:[#allocation0]]
  $region49: #{tpu_custom_call.1} parent=0
    _
  %s8 = ssub.s32 1, %s6
  %s9 = scalar_select 0, %s8, %s6
  %10 = sst [smem:[#allocation3]] %s0
  $region1: #{tpu_custom_call.1} parent=0
    #allocation4 [shape = 'u8[16384]{0}', space=vmem, size = 0x4000, scoped, tag = 'output window, operand 0']
    #allocation5 [shape = 's32[2]{0}', space=sflag, size = 0x8, scoped, tag = 'scoped memory for tpu_custom_call.1']
    %11 = vsyncpa [#allocation5], 0
    %s12 = scalar_lea.sflag [#allocation5], 1
    %13 = vsyncpa %s12, 0
    loop: start=0, step=1, limit=4
    $region2: #{tpu_custom_call.1} parent=1 // loop_pre_header
      _
    $region3: #{tpu_custom_call.1} parent=1 // loop_header
      %s15 = sphi 0, %s19
      %p16 = scmp.ge.s32.totalorder %s15, 4
      %s22 = sphi 0, %s34
      %s23 = sphi 0, %s30
      %s24 = sphi 0, %s22
      %s25 = sphi 0, %s23
      %s26 = sphi 0, %s24
      %s27 = sphi 0, %s25
      %s39 = sphi 0, %s41
      %s42 = sphi 0, %s39
      %s43 = sphi 0, %s42
      %s59 = sphi 0, %s43
      %s63 = sphi 0, %s63
      %s65 = sphi 0, %s63
      %s66 = sphi 0, %s65
      %s80 = sphi 0, %s66
      %s84 = sphi 0, %s84
      %s86 = sphi 0, %s84
      %s87 = sphi 0, %s86
      %s101 = sphi 0, %s87
      %s105 = sphi 0, %s105
      %s107 = sphi 0, %s105
      %s108 = sphi 0, %s107
      %s122 = sphi 0, %s108
      %s130 = sphi 0, %s132
      %s133 = sphi 0, %s130
      %s134 = sphi 0, %s133
      %s150 = sphi 0, %s134
    $region4: #{tpu_custom_call.1} parent=1 // loop_header_branch
      %18 = sbr.rel (%p16) target = $region8
    $region5: #{tpu_custom_call.1} parent=1 // loop_body
      %s20 = ssub.s32 %s15, 1
      %s21 = ssub.s32 %s15, 2
      %s28 = sadd.s32 1, %s23
      %p29 = scmp.ge.s32.totalorder %s28, 1
      %s30 = scalar_select %p29, 0, %s28
      %s31 = sadd.s32 1, %s22
      %s32 = scalar_select %p29, %s31, %s22
      %p33 = scmp.ge.s32.totalorder %s32, 2
      %s34 = scalar_select %p33, 0, %s32
      %s35 = ssub.s32 %s22, %s34
      %s36 = ssub.s32 %s23, %s30
      %s37 = sor.u32 %s35, %s36
      %p38 = scmp.eq.s32.totalorder %s37, 0
      %s40 = sadd.s32 %s39, 1
      %s41 = scalar_select %p38, %s39, %s40
      %p44 = pneg %p38
      %p45 = scmp.eq.s32.totalorder %s15, 1
      %p46 = por %p44, %p45
      %p47 = scmp.ne.s32.totalorder %s39, %s42
      %p48 = scmp.eq.s32.totalorder %s15, 0
      %p49 = por %p47, %p48
      %p50 = scmp.ne.s32.totalorder %s39, %s42
      %p51 = scmp.eq.s32.totalorder %s20, 1
      %p52 = por %p50, %p51
      %p53 = scmp.ne.s32.totalorder %s42, %s43
      %p54 = scmp.eq.s32.totalorder %s20, 0
      %p55 = por %p53, %p54
      %p56 = scmp.ne.s32.totalorder %s42, %s43
      %p57 = scmp.eq.s32.totalorder %s21, 1
      %p58 = por %p56, %p57
      %p60 = scmp.ne.s32.totalorder %s43, %s59
      %p61 = scmp.eq.s32.totalorder %s21, 0
      %p62 = por %p60, %p61
      %s64 = sadd.s32 %s63, 1
      %p67 = scmp.eq.s32.totalorder %s15, 1
      %p68 = scmp.ne.s32.totalorder %s63, %s65
      %p69 = scmp.eq.s32.totalorder %s15, 0
      %p70 = por %p68, %p69
      %p71 = scmp.ne.s32.totalorder %s63, %s65
      %p72 = scmp.eq.s32.totalorder %s20, 1
      %p73 = por %p71, %p72
      %p74 = scmp.ne.s32.totalorder %s65, %s66
      %p75 = scmp.eq.s32.totalorder %s20, 0
      %p76 = por %p74, %p75
      %p77 = scmp.ne.s32.totalorder %s65, %s66
      %p78 = scmp.eq.s32.totalorder %s21, 1
      %p79 = por %p77, %p78
      %p81 = scmp.ne.s32.totalorder %s66, %s80
      %p82 = scmp.eq.s32.totalorder %s21, 0
      %p83 = por %p81, %p82
      %s85 = sadd.s32 %s84, 1
      %p88 = scmp.eq.s32.totalorder %s15, 1
      %p89 = scmp.ne.s32.totalorder %s84, %s86
      %p90 = scmp.eq.s32.totalorder %s15, 0
      %p91 = por %p89, %p90
      %p92 = scmp.ne.s32.totalorder %s84, %s86
      %p93 = scmp.eq.s32.totalorder %s20, 1
      %p94 = por %p92, %p93
      %p95 = scmp.ne.s32.totalorder %s86, %s87
      %p96 = scmp.eq.s32.totalorder %s20, 0
      %p97 = por %p95, %p96
      %p98 = scmp.ne.s32.totalorder %s86, %s87
      %p99 = scmp.eq.s32.totalorder %s21, 1
      %p100 = por %p98, %p99
      %p102 = scmp.ne.s32.totalorder %s87, %s101
      %p103 = scmp.eq.s32.totalorder %s21, 0
      %p104 = por %p102, %p103
      %s106 = sadd.s32 %s105, 1
      %p109 = scmp.eq.s32.totalorder %s15, 1
      %p110 = scmp.ne.s32.totalorder %s105, %s107
      %p111 = scmp.eq.s32.totalorder %s15, 0
      %p112 = por %p110, %p111
      %p113 = scmp.ne.s32.totalorder %s105, %s107
      %p114 = scmp.eq.s32.totalorder %s20, 1
      %p115 = por %p113, %p114
      %p116 = scmp.ne.s32.totalorder %s107, %s108
      %p117 = scmp.eq.s32.totalorder %s20, 0
      %p118 = por %p116, %p117
      %p119 = scmp.ne.s32.totalorder %s107, %s108
      %p120 = scmp.eq.s32.totalorder %s21, 1
      %p121 = por %p119, %p120
      %p123 = scmp.ne.s32.totalorder %s108, %s122
      %p124 = scmp.eq.s32.totalorder %s21, 0
      %p125 = por %p123, %p124
      %s126 = ssub.s32 %s22, %s34
      %s127 = ssub.s32 %s23, %s30
      %s128 = sor.u32 %s126, %s127
      %p129 = scmp.eq.s32.totalorder %s128, 0
      %s131 = sadd.s32 %s130, 1
      %s132 = scalar_select %p129, %s130, %s131
      %p135 = pneg %p129
      %p136 = scmp.eq.s32.totalorder %s15, 1
      %p137 = por %p135, %p136
      %p138 = scmp.ne.s32.totalorder %s130, %s133
      %p139 = scmp.eq.s32.totalorder %s15, 0
      %p140 = por %p138, %p139
      %p141 = scmp.ne.s32.totalorder %s130, %s133
      %p142 = scmp.eq.s32.totalorder %s20, 1
      %p143 = por %p141, %p142
      %p144 = scmp.ne.s32.totalorder %s133, %s134
      %p145 = scmp.eq.s32.totalorder %s20, 0
      %p146 = por %p144, %p145
      %p147 = scmp.ne.s32.totalorder %s133, %s134
      %p148 = scmp.eq.s32.totalorder %s21, 1
      %p149 = por %p147, %p148
      %p151 = scmp.ne.s32.totalorder %s134, %s150
      %p152 = scmp.eq.s32.totalorder %s21, 0
      %p153 = por %p151, %p152
      %p154 = scmp.le.s32.totalorder 1, %s15
      %p155 = scmp.lt.s32.totalorder %s15, 3
      %p156 = pnand %p154, %p155
      %p157 = pneg %p156
      // Predicated region
      $region9: #{tpu_custom_call.1} parent=5 // pred_check
        _
      $region10: #{tpu_custom_call.1} parent=5 // pred_check_branch
        %159 = sbr.rel (%p156) target = $region12
      $region11: #{tpu_custom_call.1} parent=5 // pred_region
        %s160 = ssub.s32 %s15, 1
        // Predicated region
        $region13: #{tpu_custom_call.1} parent=11 // pred_check
          %p161 = pneg %p76
        $region14: #{tpu_custom_call.1} parent=11 // pred_check_branch
          %163 = sbr.rel (%p161) target = $region16
        $region15: #{tpu_custom_call.1} parent=11 // pred_region
          _
        $region16: #{tpu_custom_call.1} parent=11 // pred_fallthru
          _
        // Predicated region
        $region17: #{tpu_custom_call.1} parent=11 // pred_check
          %p164 = pneg %p97
        $region18: #{tpu_custom_call.1} parent=11 // pred_check_branch
          %166 = sbr.rel (%p164) target = $region20
        $region19: #{tpu_custom_call.1} parent=11 // pred_region
          _
        $region20: #{tpu_custom_call.1} parent=11 // pred_fallthru
          _
        // Predicated region
        $region21: #{tpu_custom_call.1} parent=11 // pred_check
          %p167 = pneg %p118
        $region22: #{tpu_custom_call.1} parent=11 // pred_check_branch
          %169 = sbr.rel (%p167) target = $region24
        $region23: #{tpu_custom_call.1} parent=11 // pred_region
          _
        $region24: #{tpu_custom_call.1} parent=11 // pred_fallthru
          _
      $region12: #{tpu_custom_call.1} parent=5 // pred_fallthru
        _
      %p170 = scmp.lt.s32.totalorder %s15, 2
      // Predicated region
      $region25: #{tpu_custom_call.1} parent=5 // pred_check
        %p171 = pneg %p170
      $region26: #{tpu_custom_call.1} parent=5 // pred_check_branch
        %173 = sbr.rel (%p171) target = $region28
      $region27: #{tpu_custom_call.1} parent=5 // pred_region
        // Predicated region
        $region29: #{tpu_custom_call.1} parent=27 // pred_check
          %p174 = pneg %p49
        $region30: #{tpu_custom_call.1} parent=27 // pred_check_branch
          %176 = sbr.rel (%p174) target = $region32
        $region31: #{tpu_custom_call.1} parent=27 // pred_region
          %s177 = smul.u32 8, %s23
          %p178 = scmp.lt.s32.totalorder %s22, 1
          %s179 = scalar_select %p178, %s22, 1
          %p180 = scmp.lt.s32.totalorder %s177, 7
          %s181 = scalar_select %p180, %s177, 7
          %s182 = smul.addr %s179, 8
          %s183 = sadd.s32 %s181, %s182
          %s184 = smul.addr %s183, 4
          %s185 = scalar_lea.vmem %s1, %s184
          %s186 = smul.u32 8, %s23
        $region32: #{tpu_custom_call.1} parent=27 // pred_fallthru
          _
      $region28: #{tpu_custom_call.1} parent=5 // pred_fallthru
        _
      %p187 = scmp.le.s32.totalorder 1, %s15
      %p188 = scmp.lt.s32.totalorder %s15, 3
      %p189 = pnand %p187, %p188
      %p190 = pneg %p189
      // Predicated region
      $region33: #{tpu_custom_call.1} parent=5 // pred_check
        _
      $region34: #{tpu_custom_call.1} parent=5 // pred_check_branch
        %192 = sbr.rel (%p189) target = $region36
      $region35: #{tpu_custom_call.1} parent=5 // pred_region
        %s193 = ssub.s32 %s15, 1
        %s194 = smul.u32 8, %s25
        %p195 = scmp.lt.s32.totalorder %s24, 1
        %s196 = scalar_select %p195, %s24, 1
        %p197 = scmp.lt.s32.totalorder %s194, 7
        %s198 = scalar_select %p197, %s194, 7
        %s199 = smul.addr %s196, 8
        %s200 = sadd.s32 %s198, %s199
        %s201 = smul.addr %s200, 4
        %s202 = scalar_lea.vmem %s1, %s201
        %p203 = pneg %p55
        %p204 = pneg %p52
        %p205 = pneg %p76
        %p206 = pneg %p73
        %p207 = pneg %p97
        %p208 = pneg %p94
        %p209 = pneg %p118
        %p210 = pneg %p115
        %p211 = pneg %p146
        %p212 = pneg %p143
        %s213 = sand.u32 %s133, 1
        %s214 = scalar_lea.sflag [#allocation5], %s213
        %s215 = sand.u32 %s133, 1
        %s216 = smul.addr %s215, 16
        %s217 = scalar_lea.vmem [#allocation4], %s216
        %s218 = smul.u32 8, %s25
        %p219 = scmp.lt.s32.totalorder %s24, 1
        %s220 = scalar_select %p219, %s24, 1
        %p221 = scmp.lt.s32.totalorder %s218, 7
        %s222 = scalar_select %p221, %s218, 7
        %s223 = smul.addr %s220, 8
        %s224 = sadd.s32 %s222, %s223
        %s225 = smul.addr %s224, 4
        %s226 = scalar_lea.vmem %s1, %s225
        %s227 = smul.u32 8, %s25
        %s228 = smul.u32 8, %s25
        %s229 = smul.u32 %s25, 1024
        %v230 = vld [vmem:[%s226] sm:$0x77]
        %v231 = vld [vmem:[%s226 + $0x8] sm:$0x77]
        %v232 = vld [vmem:[%s226 + $0x10] sm:$0x77]
        %v233 = vld [vmem:[%s226 + $0x18] sm:$0x77]
        %v234 = vld [vmem:[%s2] sm:$0xff]
        %236 = vset.pattern.permute.xlu0 0
        %237 = vperm.xlu0 %236, %v234
        %v238 = vpop.permute.xlu0 %237
        %v244 = vperm.slane %v230, 0
        %v245 = vperm.slane %v230, 4
        %v246 = vperm.slane %v231, 0
        %v247 = vperm.slane %v231, 4
        %v248 = vperm.slane %v232, 0
        %v249 = vperm.slane %v232, 4
        %v250 = vperm.slane %v233, 0
        %v251 = vperm.slane %v233, 4
        %v260 = vperm.slane %v244, 0
        %v261 = vperm.slane %v245, 0
        %v262 = vperm.slane %v246, 0
        %v263 = vperm.slane %v247, 0
        %v264 = vperm.slane %v248, 0
        %v265 = vperm.slane %v249, 0
        %v266 = vperm.slane %v250, 0
        %v267 = vperm.slane %v251, 0
        %v268 = vmul.f32 %v238, %v260
        %v269 = vmul.f32 %v238, %v261
        %v270 = vmul.f32 %v238, %v262
        %v271 = vmul.f32 %v238, %v263
        %v272 = vmul.f32 %v238, %v264
        %v273 = vmul.f32 %v238, %v265
        %v274 = vmul.f32 %v238, %v266
        %v275 = vmul.f32 %v238, %v267
        %276 = vset.pattern.permute.xlu0 1
        %277 = vperm.xlu0 %276, %v234
        %v278 = vpop.permute.xlu0 %277
        %v280 = vperm.slane %v230, 1
        %v281 = vperm.slane %v230, 5
        %v282 = vperm.slane %v231, 1
        %v283 = vperm.slane %v231, 5
        %v284 = vperm.slane %v232, 1
        %v285 = vperm.slane %v232, 5
        %v286 = vperm.slane %v233, 1
        %v287 = vperm.slane %v233, 5
        %v296 = vperm.slane %v280, 1
        %v297 = vperm.slane %v281, 1
        %v298 = vperm.slane %v282, 1
        %v299 = vperm.slane %v283, 1
        %v300 = vperm.slane %v284, 1
        %v301 = vperm.slane %v285, 1
        %v302 = vperm.slane %v286, 1
        %v303 = vperm.slane %v287, 1
        %v304 = vmul.f32 %v278, %v296
        %v305 = vmul.f32 %v278, %v297
        %v306 = vmul.f32 %v278, %v298
        %v307 = vmul.f32 %v278, %v299
        %v308 = vmul.f32 %v278, %v300
        %v309 = vmul.f32 %v278, %v301
        %v310 = vmul.f32 %v278, %v302
        %v311 = vmul.f32 %v278, %v303
        %v312 = vadd.f32 %v268, %v304
        %v313 = vadd.f32 %v269, %v305
        %v314 = vadd.f32 %v270, %v306
        %v315 = vadd.f32 %v271, %v307
        %v316 = vadd.f32 %v272, %v308
        %v317 = vadd.f32 %v273, %v309
        %v318 = vadd.f32 %v274, %v310
        %v319 = vadd.f32 %v275, %v311
        %320 = vset.pattern.permute.xlu0 2
        %321 = vperm.xlu0 %320, %v234
        %v322 = vpop.permute.xlu0 %321
        %v324 = vperm.slane %v230, 2
        %v325 = vperm.slane %v230, 6
        %v326 = vperm.slane %v231, 2
        %v327 = vperm.slane %v231, 6
        %v328 = vperm.slane %v232, 2
        %v329 = vperm.slane %v232, 6
        %v330 = vperm.slane %v233, 2
        %v331 = vperm.slane %v233, 6
        %v340 = vperm.slane %v324, 2
        %v341 = vperm.slane %v325, 2
        %v342 = vperm.slane %v326, 2
        %v343 = vperm.slane %v327, 2
        %v344 = vperm.slane %v328, 2
        %v345 = vperm.slane %v329, 2
        %v346 = vperm.slane %v330, 2
        %v347 = vperm.slane %v331, 2
        %v348 = vmul.f32 %v322, %v340
        %v349 = vmul.f32 %v322, %v341
        %v350 = vmul.f32 %v322, %v342
        %v351 = vmul.f32 %v322, %v343
        %v352 = vmul.f32 %v322, %v344
        %v353 = vmul.f32 %v322, %v345
        %v354 = vmul.f32 %v322, %v346
        %v355 = vmul.f32 %v322, %v347
        %v356 = vadd.f32 %v312, %v348
        %v357 = vadd.f32 %v313, %v349
        %v358 = vadd.f32 %v314, %v350
        %v359 = vadd.f32 %v315, %v351
        %v360 = vadd.f32 %v316, %v352
        %v361 = vadd.f32 %v317, %v353
        %v362 = vadd.f32 %v318, %v354
        %v363 = vadd.f32 %v319, %v355
        %v364 = vld [vmem:[%s3] sm:$0xff]
        %366 = vset.pattern.permute.xlu0 0
        %367 = vperm.xlu0 %366, %v364
        %v368 = vpop.permute.xlu0 %367
        %v370 = vadd.f32 %v356, %v368
        %v371 = vadd.f32 %v357, %v368
        %v372 = vadd.f32 %v358, %v368
        %v373 = vadd.f32 %v359, %v368
        %v374 = vadd.f32 %v360, %v368
        %v375 = vadd.f32 %v361, %v368
        %v376 = vadd.f32 %v362, %v368
        %v377 = vadd.f32 %v363, %v368
        %v378 = vmax.f32 %v370, -30.0
        %v379 = vmax.f32 %v371, -30.0
        %v380 = vmax.f32 %v372, -30.0
        %v381 = vmax.f32 %v373, -30.0
        %v382 = vmax.f32 %v374, -30.0
        %v383 = vmax.f32 %v375, -30.0
        %v384 = vmax.f32 %v376, -30.0
        %v385 = vmax.f32 %v377, -30.0
        %v386 = vmin.f32 %v378, 20.0
        %v387 = vmin.f32 %v379, 20.0
        %v388 = vmin.f32 %v380, 20.0
        %v389 = vmin.f32 %v381, 20.0
        %v390 = vmin.f32 %v382, 20.0
        %v391 = vmin.f32 %v383, 20.0
        %v392 = vmin.f32 %v384, 20.0
        %v393 = vmin.f32 %v385, 20.0
        %v394 = vmul.f32 %v386, 0.5
        %v395 = vmul.f32 %v387, 0.5
        %v396 = vmul.f32 %v388, 0.5
        %v397 = vmul.f32 %v389, 0.5
        %v398 = vmul.f32 %v390, 0.5
        %v399 = vmul.f32 %v391, 0.5
        %v400 = vmul.f32 %v392, 0.5
        %v401 = vmul.f32 %v393, 0.5
        %v402 = vmul.f32 %v394, 1.442695
        %v403 = vpow.pop %v402
        %v404 = vmul.f32 %v395, 1.442695
        %v405 = vpow.pop %v404
        %v406 = vmul.f32 %v396, 1.442695
        %v407 = vpow.pop %v406
        %v408 = vmul.f32 %v397, 1.442695
        %v409 = vpow.pop %v408
        %v410 = vmul.f32 %v398, 1.442695
        %v411 = vpow.pop %v410
        %v412 = vmul.f32 %v399, 1.442695
        %v413 = vpow.pop %v412
        %v414 = vmul.f32 %v400, 1.442695
        %v415 = vpow.pop %v414
        %v416 = vmul.f32 %v401, 1.442695
        %v417 = vpow.pop %v416
        %s418 = sld [smem:[#allocation3]]
        %v419 = vlaneseq
        %v420 = vshrl.u32 %v419, 7
        %v421 = vlaneseq
        %v422 = vand.u32 %v421, 127
        %v423 = vadd.s32 %v422, 128
        %v424 = vadd.s32 %v422, 256
        %v425 = vadd.s32 %v422, 384
        %v426 = vadd.s32 %v422, 512
        %v427 = vadd.s32 %v422, 640
        %v428 = vadd.s32 %v422, 768
        %v429 = vadd.s32 %v422, 896
        %s430 = smul.u32 %s24, 4
        %v431 = vstv %s430
        %v432 = vadd.s32 %v431, %v420
        %v433 = vmul.u32 %v432, 1024
        %v434 = vstv %s229
        %v435 = vadd.s32 %v433, %v434
        %v436 = vadd.s32 %v435, %v422
        %v437 = vadd.s32 %v435, %v423
        %v438 = vadd.s32 %v435, %v424
        %v439 = vadd.s32 %v435, %v425
        %v440 = vadd.s32 %v435, %v426
        %v441 = vadd.s32 %v435, %v427
        %v442 = vadd.s32 %v435, %v428
        %v443 = vadd.s32 %v435, %v429
        %v444 = vstv %s418
        %v445 = vxor.u32 %v436, %v444
        %v446 = vxor.u32 %v437, %v444
        %v447 = vxor.u32 %v438, %v444
        %v448 = vxor.u32 %v439, %v444
        %v449 = vxor.u32 %v440, %v444
        %v450 = vxor.u32 %v441, %v444
        %v451 = vxor.u32 %v442, %v444
        %v452 = vxor.u32 %v443, %v444
        %v453 = vshrl.u32 %v445, 16
        %v454 = vshrl.u32 %v446, 16
        %v455 = vshrl.u32 %v447, 16
        %v456 = vshrl.u32 %v448, 16
        %v457 = vshrl.u32 %v449, 16
        %v458 = vshrl.u32 %v450, 16
        %v459 = vshrl.u32 %v451, 16
        %v460 = vshrl.u32 %v452, 16
        %v461 = vxor.u32 %v445, %v453
        %v462 = vxor.u32 %v446, %v454
        %v463 = vxor.u32 %v447, %v455
        %v464 = vxor.u32 %v448, %v456
        %v465 = vxor.u32 %v449, %v457
        %v466 = vxor.u32 %v450, %v458
        %v467 = vxor.u32 %v451, %v459
        %v468 = vxor.u32 %v452, %v460
        %v469 = vmul.u32 %v461, 2146121005
        %v470 = vmul.u32 %v462, 2146121005
        %v471 = vmul.u32 %v463, 2146121005
        %v472 = vmul.u32 %v464, 2146121005
        %v473 = vmul.u32 %v465, 2146121005
        %v474 = vmul.u32 %v466, 2146121005
        %v475 = vmul.u32 %v467, 2146121005
        %v476 = vmul.u32 %v468, 2146121005
        %v477 = vshrl.u32 %v469, 15
        %v478 = vshrl.u32 %v470, 15
        %v479 = vshrl.u32 %v471, 15
        %v480 = vshrl.u32 %v472, 15
        %v481 = vshrl.u32 %v473, 15
        %v482 = vshrl.u32 %v474, 15
        %v483 = vshrl.u32 %v475, 15
        %v484 = vshrl.u32 %v476, 15
        %v485 = vxor.u32 %v469, %v477
        %v486 = vxor.u32 %v470, %v478
        %v487 = vxor.u32 %v471, %v479
        %v488 = vxor.u32 %v472, %v480
        %v489 = vxor.u32 %v473, %v481
        %v490 = vxor.u32 %v474, %v482
        %v491 = vxor.u32 %v475, %v483
        %v492 = vxor.u32 %v476, %v484
        %v493 = vmul.u32 %v485, 2221713035
        %v494 = vmul.u32 %v486, 2221713035
        %v495 = vmul.u32 %v487, 2221713035
        %v496 = vmul.u32 %v488, 2221713035
        %v497 = vmul.u32 %v489, 2221713035
        %v498 = vmul.u32 %v490, 2221713035
        %v499 = vmul.u32 %v491, 2221713035
        %v500 = vmul.u32 %v492, 2221713035
        %v501 = vshrl.u32 %v493, 16
        %v502 = vshrl.u32 %v494, 16
        %v503 = vshrl.u32 %v495, 16
        %v504 = vshrl.u32 %v496, 16
        %v505 = vshrl.u32 %v497, 16
        %v506 = vshrl.u32 %v498, 16
        %v507 = vshrl.u32 %v499, 16
        %v508 = vshrl.u32 %v500, 16
        %v509 = vxor.u32 %v493, %v501
        %v510 = vxor.u32 %v494, %v502
        %v511 = vxor.u32 %v495, %v503
        %v512 = vxor.u32 %v496, %v504
        %v513 = vxor.u32 %v497, %v505
        %v514 = vxor.u32 %v498, %v506
        %v515 = vxor.u32 %v499, %v507
        %v516 = vxor.u32 %v500, %v508
        %v517 = vxor.u32 %v509, 2654435769
        %v518 = vxor.u32 %v510, 2654435769
        %v519 = vxor.u32 %v511, 2654435769
        %v520 = vxor.u32 %v512, 2654435769
        %v521 = vxor.u32 %v513, 2654435769
        %v522 = vxor.u32 %v514, 2654435769
        %v523 = vxor.u32 %v515, 2654435769
        %v524 = vxor.u32 %v516, 2654435769
        %v525 = vshrl.u32 %v517, 16
        %v526 = vshrl.u32 %v518, 16
        %v527 = vshrl.u32 %v519, 16
        %v528 = vshrl.u32 %v520, 16
        %v529 = vshrl.u32 %v521, 16
        %v530 = vshrl.u32 %v522, 16
        %v531 = vshrl.u32 %v523, 16
        %v532 = vshrl.u32 %v524, 16
        %v533 = vxor.u32 %v517, %v525
        %v534 = vxor.u32 %v518, %v526
        %v535 = vxor.u32 %v519, %v527
        %v536 = vxor.u32 %v520, %v528
        %v537 = vxor.u32 %v521, %v529
        %v538 = vxor.u32 %v522, %v530
        %v539 = vxor.u32 %v523, %v531
        %v540 = vxor.u32 %v524, %v532
        %v541 = vmul.u32 %v533, 2146121005
        %v542 = vmul.u32 %v534, 2146121005
        %v543 = vmul.u32 %v535, 2146121005
        %v544 = vmul.u32 %v536, 2146121005
        %v545 = vmul.u32 %v537, 2146121005
        %v546 = vmul.u32 %v538, 2146121005
        %v547 = vmul.u32 %v539, 2146121005
        %v548 = vmul.u32 %v540, 2146121005
        %v549 = vshrl.u32 %v541, 15
        %v550 = vshrl.u32 %v542, 15
        %v551 = vshrl.u32 %v543, 15
        %v552 = vshrl.u32 %v544, 15
        %v553 = vshrl.u32 %v545, 15
        %v554 = vshrl.u32 %v546, 15
        %v555 = vshrl.u32 %v547, 15
        %v556 = vshrl.u32 %v548, 15
        %v557 = vxor.u32 %v541, %v549
        %v558 = vxor.u32 %v542, %v550
        %v559 = vxor.u32 %v543, %v551
        %v560 = vxor.u32 %v544, %v552
        %v561 = vxor.u32 %v545, %v553
        %v562 = vxor.u32 %v546, %v554
        %v563 = vxor.u32 %v547, %v555
        %v564 = vxor.u32 %v548, %v556
        %v565 = vmul.u32 %v557, 2221713035
        %v566 = vmul.u32 %v558, 2221713035
        %v567 = vmul.u32 %v559, 2221713035
        %v568 = vmul.u32 %v560, 2221713035
        %v569 = vmul.u32 %v561, 2221713035
        %v570 = vmul.u32 %v562, 2221713035
        %v571 = vmul.u32 %v563, 2221713035
        %v572 = vmul.u32 %v564, 2221713035
        %v573 = vshrl.u32 %v565, 16
        %v574 = vshrl.u32 %v566, 16
        %v575 = vshrl.u32 %v567, 16
        %v576 = vshrl.u32 %v568, 16
        %v577 = vshrl.u32 %v569, 16
        %v578 = vshrl.u32 %v570, 16
        %v579 = vshrl.u32 %v571, 16
        %v580 = vshrl.u32 %v572, 16
        %v581 = vxor.u32 %v565, %v573
        %v582 = vxor.u32 %v566, %v574
        %v583 = vxor.u32 %v567, %v575
        %v584 = vxor.u32 %v568, %v576
        %v585 = vxor.u32 %v569, %v577
        %v586 = vxor.u32 %v570, %v578
        %v587 = vxor.u32 %v571, %v579
        %v588 = vxor.u32 %v572, %v580
        %v589 = vshrl.u32 %v509, 8
        %v590 = vshrl.u32 %v510, 8
        %v591 = vshrl.u32 %v511, 8
        %v592 = vshrl.u32 %v512, 8
        %v593 = vshrl.u32 %v513, 8
        %v594 = vshrl.u32 %v514, 8
        %v595 = vshrl.u32 %v515, 8
        %v596 = vshrl.u32 %v516, 8
        %v597 = vcvt.s32.f32 %v589
        %v598 = vcvt.s32.f32 %v590
        %v599 = vcvt.s32.f32 %v591
        %v600 = vcvt.s32.f32 %v592
        %v601 = vcvt.s32.f32 %v593
        %v602 = vcvt.s32.f32 %v594
        %v603 = vcvt.s32.f32 %v595
        %v604 = vcvt.s32.f32 %v596
        %v605 = vadd.f32 %v597, 0.5
        %v606 = vadd.f32 %v598, 0.5
        %v607 = vadd.f32 %v599, 0.5
        %v608 = vadd.f32 %v600, 0.5
        %v609 = vadd.f32 %v601, 0.5
        %v610 = vadd.f32 %v602, 0.5
        %v611 = vadd.f32 %v603, 0.5
        %v612 = vadd.f32 %v604, 0.5
        %v613 = vmul.f32 %v605, 5.9604645e-08
        %v614 = vmul.f32 %v606, 5.9604645e-08
        %v615 = vmul.f32 %v607, 5.9604645e-08
        %v616 = vmul.f32 %v608, 5.9604645e-08
        %v617 = vmul.f32 %v609, 5.9604645e-08
        %v618 = vmul.f32 %v610, 5.9604645e-08
        %v619 = vmul.f32 %v611, 5.9604645e-08
        %v620 = vmul.f32 %v612, 5.9604645e-08
        %v621 = vshrl.u32 %v581, 8
        %v622 = vshrl.u32 %v582, 8
        %v623 = vshrl.u32 %v583, 8
        %v624 = vshrl.u32 %v584, 8
        %v625 = vshrl.u32 %v585, 8
        %v626 = vshrl.u32 %v586, 8
        %v627 = vshrl.u32 %v587, 8
        %v628 = vshrl.u32 %v588, 8
        %v629 = vcvt.s32.f32 %v621
        %v630 = vcvt.s32.f32 %v622
        %v631 = vcvt.s32.f32 %v623
        %v632 = vcvt.s32.f32 %v624
        %v633 = vcvt.s32.f32 %v625
        %v634 = vcvt.s32.f32 %v626
        %v635 = vcvt.s32.f32 %v627
        %v636 = vcvt.s32.f32 %v628
        %v637 = vadd.f32 %v629, 0.5
        %v638 = vadd.f32 %v630, 0.5
        %v639 = vadd.f32 %v631, 0.5
        %v640 = vadd.f32 %v632, 0.5
        %v641 = vadd.f32 %v633, 0.5
        %v642 = vadd.f32 %v634, 0.5
        %v643 = vadd.f32 %v635, 0.5
        %v644 = vadd.f32 %v636, 0.5
        %v645 = vmul.f32 %v637, 5.9604645e-08
        %v646 = vmul.f32 %v638, 5.9604645e-08
        %v647 = vmul.f32 %v639, 5.9604645e-08
        %v648 = vmul.f32 %v640, 5.9604645e-08
        %v649 = vmul.f32 %v641, 5.9604645e-08
        %v650 = vmul.f32 %v642, 5.9604645e-08
        %v651 = vmul.f32 %v643, 5.9604645e-08
        %v652 = vmul.f32 %v644, 5.9604645e-08
        %v653 = vlog2.pop %v613
        %v654 = vmul.f32 %v653, 0.6931472
        %v655 = vlog2.pop %v614
        %v656 = vmul.f32 %v655, 0.6931472
        %v657 = vlog2.pop %v615
        %v658 = vmul.f32 %v657, 0.6931472
        %v659 = vlog2.pop %v616
        %v660 = vmul.f32 %v659, 0.6931472
        %v661 = vlog2.pop %v617
        %v662 = vmul.f32 %v661, 0.6931472
        %v663 = vlog2.pop %v618
        %v664 = vmul.f32 %v663, 0.6931472
        %v665 = vlog2.pop %v619
        %v666 = vmul.f32 %v665, 0.6931472
        %v667 = vlog2.pop %v620
        %v668 = vmul.f32 %v667, 0.6931472
        %v669 = vmul.f32 %v654, -2.0
        %v670 = vmul.f32 %v656, -2.0
        %v671 = vmul.f32 %v658, -2.0
        %v672 = vmul.f32 %v660, -2.0
        %v673 = vmul.f32 %v662, -2.0
        %v674 = vmul.f32 %v664, -2.0
        %v675 = vmul.f32 %v666, -2.0
        %v676 = vmul.f32 %v668, -2.0
        %v677 = vrsqrt.pop %v669
        %v678 = vmul.f32 %v677, %v669
        %v679 = vmul.f32 %v678, %v677
        %v680 = vmul.f32 0.5, %v679
        %v681 = vsub.f32 1.5, %v680
        %v682 = vmul.f32 %v677, %v681
        %v683 = vmul.f32 %v669, %v682
        %vm684 = vcmp.eq.f32.partialorder %v669, inf
        %v685 = vsel %vm684, %v669, %v683
        %vm686 = vcmp.eq.f32.partialorder %v669, 0.0
        %v687 = vand.u32 %v669, 2147483648
        %v688 = vsel %vm686, %v687, %v685
        %v689 = vrsqrt.pop %v670
        %v690 = vmul.f32 %v689, %v670
        %v691 = vmul.f32 %v690, %v689
        %v692 = vmul.f32 0.5, %v691
        %v693 = vsub.f32 1.5, %v692
        %v694 = vmul.f32 %v689, %v693
        %v695 = vmul.f32 %v670, %v694
        %vm696 = vcmp.eq.f32.partialorder %v670, inf
        %v697 = vsel %vm696, %v670, %v695
        %vm698 = vcmp.eq.f32.partialorder %v670, 0.0
        %v699 = vand.u32 %v670, 2147483648
        %v700 = vsel %vm698, %v699, %v697
        %v701 = vrsqrt.pop %v671
        %v702 = vmul.f32 %v701, %v671
        %v703 = vmul.f32 %v702, %v701
        %v704 = vmul.f32 0.5, %v703
        %v705 = vsub.f32 1.5, %v704
        %v706 = vmul.f32 %v701, %v705
        %v707 = vmul.f32 %v671, %v706
        %vm708 = vcmp.eq.f32.partialorder %v671, inf
        %v709 = vsel %vm708, %v671, %v707
        %vm710 = vcmp.eq.f32.partialorder %v671, 0.0
        %v711 = vand.u32 %v671, 2147483648
        %v712 = vsel %vm710, %v711, %v709
        %v713 = vrsqrt.pop %v672
        %v714 = vmul.f32 %v713, %v672
        %v715 = vmul.f32 %v714, %v713
        %v716 = vmul.f32 0.5, %v715
        %v717 = vsub.f32 1.5, %v716
        %v718 = vmul.f32 %v713, %v717
        %v719 = vmul.f32 %v672, %v718
        %vm720 = vcmp.eq.f32.partialorder %v672, inf
        %v721 = vsel %vm720, %v672, %v719
        %vm722 = vcmp.eq.f32.partialorder %v672, 0.0
        %v723 = vand.u32 %v672, 2147483648
        %v724 = vsel %vm722, %v723, %v721
        %v725 = vrsqrt.pop %v673
        %v726 = vmul.f32 %v725, %v673
        %v727 = vmul.f32 %v726, %v725
        %v728 = vmul.f32 0.5, %v727
        %v729 = vsub.f32 1.5, %v728
        %v730 = vmul.f32 %v725, %v729
        %v731 = vmul.f32 %v673, %v730
        %vm732 = vcmp.eq.f32.partialorder %v673, inf
        %v733 = vsel %vm732, %v673, %v731
        %vm734 = vcmp.eq.f32.partialorder %v673, 0.0
        %v735 = vand.u32 %v673, 2147483648
        %v736 = vsel %vm734, %v735, %v733
        %v737 = vrsqrt.pop %v674
        %v738 = vmul.f32 %v737, %v674
        %v739 = vmul.f32 %v738, %v737
        %v740 = vmul.f32 0.5, %v739
        %v741 = vsub.f32 1.5, %v740
        %v742 = vmul.f32 %v737, %v741
        %v743 = vmul.f32 %v674, %v742
        %vm744 = vcmp.eq.f32.partialorder %v674, inf
        %v745 = vsel %vm744, %v674, %v743
        %vm746 = vcmp.eq.f32.partialorder %v674, 0.0
        %v747 = vand.u32 %v674, 2147483648
        %v748 = vsel %vm746, %v747, %v745
        %v749 = vrsqrt.pop %v675
        %v750 = vmul.f32 %v749, %v675
        %v751 = vmul.f32 %v750, %v749
        %v752 = vmul.f32 0.5, %v751
        %v753 = vsub.f32 1.5, %v752
        %v754 = vmul.f32 %v749, %v753
        %v755 = vmul.f32 %v675, %v754
        %vm756 = vcmp.eq.f32.partialorder %v675, inf
        %v757 = vsel %vm756, %v675, %v755
        %vm758 = vcmp.eq.f32.partialorder %v675, 0.0
        %v759 = vand.u32 %v675, 2147483648
        %v760 = vsel %vm758, %v759, %v757
        %v761 = vrsqrt.pop %v676
        %v762 = vmul.f32 %v761, %v676
        %v763 = vmul.f32 %v762, %v761
        %v764 = vmul.f32 0.5, %v763
        %v765 = vsub.f32 1.5, %v764
        %v766 = vmul.f32 %v761, %v765
        %v767 = vmul.f32 %v676, %v766
        %vm768 = vcmp.eq.f32.partialorder %v676, inf
        %v769 = vsel %vm768, %v676, %v767
        %vm770 = vcmp.eq.f32.partialorder %v676, 0.0
        %v771 = vand.u32 %v676, 2147483648
        %v772 = vsel %vm770, %v771, %v769
        %v773 = vmul.f32 %v645, 6.2831855
        %v774 = vmul.f32 %v646, 6.2831855
        %v775 = vmul.f32 %v647, 6.2831855
        %v776 = vmul.f32 %v648, 6.2831855
        %v777 = vmul.f32 %v649, 6.2831855
        %v778 = vmul.f32 %v650, 6.2831855
        %v779 = vmul.f32 %v651, 6.2831855
        %v780 = vmul.f32 %v652, 6.2831855
        %v781 = vand.u32 2147483647, %v773
        %vm782 = vcmp.le.f32.partialorder %v781, 0.7853982
        %vm783 = vcmp.lt.s32.totalorder %v773, 0
        %v784 = vand.u32 %v773, 2139095040
        %v785 = vshrl.u32 %v784, 23
        %v786 = vsub.s32 %v785, 127
        %v787 = vand.u32 2147483647, %v773
        %v788 = vand.u32 %v787, 8388607
        %v789 = vor.u32 %v788, 8388608
        %v790 = vsub.s32 0, %v789
        %v791 = vadd.s32 %v786, 1
        %vm792 = vcmp.gt.s32.totalorder %v791, 0
        %v793 = vsel %vm792, %v791, 0
        %v794 = vshrl.u32 %v793, 5
        %v795 = vand.u32 %v793, 31
        %v796 = vsub.s32 32, %v795
        %v797 = vshrl.u32 683565275, %v796
        %v798 = vshll.u32 683565275, %v795
        %v799 = vshrl.u32 2475754826, %v796
        %v800 = vor.u32 %v798, %v799
        %v801 = vshll.u32 2475754826, %v795
        %v802 = vshrl.u32 2131351028, %v796
        %v803 = vor.u32 %v801, %v802
        %v804 = vshll.u32 2131351028, %v795
        %v805 = vshrl.u32 2102212464, %v796
        %v806 = vor.u32 %v804, %v805
        %v807 = vshll.u32 2102212464, %v795
        %v808 = vshrl.u32 920167782, %v796
        %v809 = vor.u32 %v807, %v808
        %v810 = vshll.u32 920167782, %v795
        %v811 = vshrl.u32 1326507024, %v796
        %v812 = vor.u32 %v810, %v811
        %vm813 = vcmp.lt.s32.totalorder %v794, 1
        %vm814 = vcmp.lt.s32.totalorder %v794, 2
        %vm815 = vcmp.lt.s32.totalorder %v794, 3
        %vm816 = vcmp.lt.s32.totalorder %v794, 4
        %v817 = vsel %vm813, %v797, %v800
        %v818 = vsel %vm816, %v806, 2102212464
        %v819 = vsel %vm815, %v803, %v818
        %v820 = vsel %vm814, %v817, %v819
        %v821 = vsel %vm813, %v800, %v803
        %v822 = vsel %vm816, %v809, 920167782
        %v823 = vsel %vm815, %v806, %v822
        %v824 = vsel %vm814, %v821, %v823
        %v825 = vsel %vm813, %v803, %v806
        %v826 = vsel %vm816, %v812, 1326507024
        %v827 = vsel %vm815, %v809, %v826
        %v828 = vsel %vm814, %v825, %v827
        %v829 = vshll.u32 %v789, 8
        %v830 = vand.u32 %v829, 65535
        %v831 = vshrl.u32 %v829, 16
        %v832 = vand.u32 %v828, 65535
        %v833 = vshrl.u32 %v828, 16
        %v834 = vmul.u32 %v830, %v832
        %v835 = vmul.u32 %v830, %v833
        %v836 = vmul.u32 %v831, %v832
        %v837 = vmul.u32 %v831, %v833
        %v838 = vshll.u32 %v835, 16
        %v839 = vshrl.u32 %v835, 16
        %v840 = vshll.u32 %v836, 16
        %v841 = vshrl.u32 %v836, 16
        %vm842 = vc.u32 %v834, %v838
        %v843 = vsel %vm842, 1, 0
        %v844 = vadd.s32 %v834, %v838
        %v845 = vadd.s32 %v837, %v843
        %vm846 = vc.u32 %v844, %v840
        %v847 = vsel %vm846, 1, 0
        %v848 = vadd.s32 %v844, %v840
        %v849 = vadd.s32 %v845, %v847
        %v850 = vadd.s32 %v849, %v839
        %v851 = vadd.s32 %v850, %v841
        %v852 = vand.u32 %v829, 65535
        %v853 = vshrl.u32 %v829, 16
        %v854 = vand.u32 %v824, 65535
        %v855 = vshrl.u32 %v824, 16
        %v856 = vmul.u32 %v852, %v854
        %v857 = vmul.u32 %v852, %v855
        %v858 = vmul.u32 %v853, %v854
        %v859 = vmul.u32 %v853, %v855
        %v860 = vshll.u32 %v857, 16
        %v861 = vshrl.u32 %v857, 16
        %v862 = vshll.u32 %v858, 16
        %v863 = vshrl.u32 %v858, 16
        %vm864 = vc.u32 %v856, %v860
        %v865 = vsel %vm864, 1, 0
        %v866 = vadd.s32 %v856, %v860
        %v867 = vadd.s32 %v859, %v865
        %vm868 = vc.u32 %v866, %v862
        %v869 = vsel %vm868, 1, 0
        %v870 = vadd.s32 %v866, %v862
        %v871 = vadd.s32 %v867, %v869
        %v872 = vadd.s32 %v871, %v861
        %v873 = vadd.s32 %v872, %v863
        %v874 = vmul.u32 %v829, %v820
        %v875 = vadd.s32 %v851, %v870
        %vm876 = vc.u32 %v851, %v870
        %v877 = vadd.s32 %v873, 1
        %v878 = vsel %vm876, %v877, %v873
        %v879 = vadd.s32 %v874, %v878
        %v880 = vadd.s32 %v879, 536870912
        %v881 = vshrl.u32 %v880, 30
        %v882 = vshll.u32 %v881, 30
        %v883 = vsub.s32 %v879, %v882
        %vm884 = vcmp.lt.s32.totalorder %v883, 0
        %v885 = vsub.s32 0, %v883
        %v886 = vsel %vm884, %v885, %v883
        %v887 = vclz %v886
        %v888 = vsub.s32 %v887, 2
        %vm889 = vcmp.gt.s32.totalorder 0, %v888
        %v890 = vsel %vm889, 0, %v888
        %v891 = vsub.s32 32, %v890
        %v892 = vshll.u32 %v883, %v890
        %v893 = vshrl.u32 %v875, %v891
        %v894 = vor.u32 %v892, %v893
        %v895 = vsub.s32 4294967266, %v890
        %v896 = vadd.s32 %v895, 127
        %v897 = vshll.u32 %v896, 23
        %v898 = vor.u32 4788187, %v897
        %v899 = vand.u32 2147483647, %v898
        %v901 = vcvt.s32.f32 %v894
        %v902 = vmul.f32 %v901, %v899
        %v903 = vxor.u32 %v902, 2147483648
        %v904 = vsel %vm783, %v903, %v902
        %v905 = vsub.s32 4, %v881
        %v906 = vsel %vm783, %v905, %v881
        %v907 = vsel %vm782, %v773, %v904
        %v908 = vsel %vm782, 0, %v906
        %v909 = vmul.f32 %v907, %v907
        %v910 = vmul.f32 %v909, -0.001358992
        %v911 = vadd.f32 %v910, 0.041655596
        %v912 = vmul.f32 %v909, %v911
        %v913 = vadd.f32 %v912, -0.4999988
        %v914 = vmul.f32 %v909, %v913
        %v915 = vadd.f32 1.0, %v914
        %v916 = vmul.f32 %v907, %v907
        %v917 = vmul.f32 %v916, -0.00019511016
        %v918 = vadd.f32 %v917, 0.008332121
        %v919 = vmul.f32 %v916, %v918
        %v920 = vadd.f32 %v919, -0.16666654
        %v921 = vmul.f32 %v916, %v920
        %v922 = vadd.f32 %v921, 1.0
        %v923 = vmul.f32 %v922, %v907
        %vm924 = vweird.f32 %v773
        %v925 = vand.u32 %v908, 3
        %vm926 = vcmp.lt.s32.totalorder %v925, 2
        %vm927 = vcmp.eq.s32.totalorder %v925, 0
        %v928 = vxor.u32 %v923, 2147483648
        %v929 = vsel %vm927, %v915, %v928
        %vm930 = vcmp.eq.s32.totalorder %v925, 2
        %v931 = vxor.u32 %v915, 2147483648
        %v932 = vsel %vm930, %v931, %v923
        %v933 = vsel %vm926, %v929, %v932
        %v934 = vsel %vm924, nan, %v933
        %v935 = vand.u32 2147483647, %v774
        %vm936 = vcmp.le.f32.partialorder %v935, 0.7853982
        %vm937 = vcmp.lt.s32.totalorder %v774, 0
        %v938 = vand.u32 %v774, 2139095040
        %v939 = vshrl.u32 %v938, 23
        %v940 = vsub.s32 %v939, 127
        %v941 = vand.u32 2147483647, %v774
        %v942 = vand.u32 %v941, 8388607
        %v943 = vor.u32 %v942, 8388608
        %v944 = vsub.s32 0, %v943
        %v945 = vadd.s32 %v940, 1
        %vm946 = vcmp.gt.s32.totalorder %v945, 0
        %v947 = vsel %vm946, %v945, 0
        %v948 = vshrl.u32 %v947, 5
        %v949 = vand.u32 %v947, 31
        %v950 = vsub.s32 32, %v949
        %v951 = vshrl.u32 683565275, %v950
        %v952 = vshll.u32 683565275, %v949
        %v953 = vshrl.u32 2475754826, %v950
        %v954 = vor.u32 %v952, %v953
        %v955 = vshll.u32 2475754826, %v949
        %v956 = vshrl.u32 2131351028, %v950
        %v957 = vor.u32 %v955, %v956
        %v958 = vshll.u32 2131351028, %v949
        %v959 = vshrl.u32 2102212464, %v950
        %v960 = vor.u32 %v958, %v959
        %v961 = vshll.u32 2102212464, %v949
        %v962 = vshrl.u32 920167782, %v950
        %v963 = vor.u32 %v961, %v962
        %v964 = vshll.u32 920167782, %v949
        %v965 = vshrl.u32 1326507024, %v950
        %v966 = vor.u32 %v964, %v965
        %vm967 = vcmp.lt.s32.totalorder %v948, 1
        %vm968 = vcmp.lt.s32.totalorder %v948, 2
        %vm969 = vcmp.lt.s32.totalorder %v948, 3
        %vm970 = vcmp.lt.s32.totalorder %v948, 4
        %v971 = vsel %vm967, %v951, %v954
        %v972 = vsel %vm970, %v960, 2102212464
        %v973 = vsel %vm969, %v957, %v972
        %v974 = vsel %vm968, %v971, %v973
        %v975 = vsel %vm967, %v954, %v957
        %v976 = vsel %vm970, %v963, 920167782
        %v977 = vsel %vm969, %v960, %v976
        %v978 = vsel %vm968, %v975, %v977
        %v979 = vsel %vm967, %v957, %v960
        %v980 = vsel %vm970, %v966, 1326507024
        %v981 = vsel %vm969, %v963, %v980
        %v982 = vsel %vm968, %v979, %v981
        %v983 = vshll.u32 %v943, 8
        %v984 = vand.u32 %v983, 65535
        %v985 = vshrl.u32 %v983, 16
        %v986 = vand.u32 %v982, 65535
        %v987 = vshrl.u32 %v982, 16
        %v988 = vmul.u32 %v984, %v986
        %v989 = vmul.u32 %v984, %v987
        %v990 = vmul.u32 %v985, %v986
        %v991 = vmul.u32 %v985, %v987
        %v992 = vshll.u32 %v989, 16
        %v993 = vshrl.u32 %v989, 16
        %v994 = vshll.u32 %v990, 16
        %v995 = vshrl.u32 %v990, 16
        %vm996 = vc.u32 %v988, %v992
        %v997 = vsel %vm996, 1, 0
        %v998 = vadd.s32 %v988, %v992
        %v999 = vadd.s32 %v991, %v997
        %vm1000 = vc.u32 %v998, %v994
        %v1001 = vsel %vm1000, 1, 0
        %v1002 = vadd.s32 %v998, %v994
        %v1003 = vadd.s32 %v999, %v1001
        %v1004 = vadd.s32 %v1003, %v993
        %v1005 = vadd.s32 %v1004, %v995
        %v1006 = vand.u32 %v983, 65535
        %v1007 = vshrl.u32 %v983, 16
        %v1008 = vand.u32 %v978, 65535
        %v1009 = vshrl.u32 %v978, 16
        %v1010 = vmul.u32 %v1006, %v1008
        %v1011 = vmul.u32 %v1006, %v1009
        %v1012 = vmul.u32 %v1007, %v1008
        %v1013 = vmul.u32 %v1007, %v1009
        %v1014 = vshll.u32 %v1011, 16
        %v1015 = vshrl.u32 %v1011, 16
        %v1016 = vshll.u32 %v1012, 16
        %v1017 = vshrl.u32 %v1012, 16
        %vm1018 = vc.u32 %v1010, %v1014
        %v1019 = vsel %vm1018, 1, 0
        %v1020 = vadd.s32 %v1010, %v1014
        %v1021 = vadd.s32 %v1013, %v1019
        %vm1022 = vc.u32 %v1020, %v1016
        %v1023 = vsel %vm1022, 1, 0
        %v1024 = vadd.s32 %v1020, %v1016
        %v1025 = vadd.s32 %v1021, %v1023
        %v1026 = vadd.s32 %v1025, %v1015
        %v1027 = vadd.s32 %v1026, %v1017
        %v1028 = vmul.u32 %v983, %v974
        %v1029 = vadd.s32 %v1005, %v1024
        %vm1030 = vc.u32 %v1005, %v1024
        %v1031 = vadd.s32 %v1027, 1
        %v1032 = vsel %vm1030, %v1031, %v1027
        %v1033 = vadd.s32 %v1028, %v1032
        %v1034 = vadd.s32 %v1033, 536870912
        %v1035 = vshrl.u32 %v1034, 30
        %v1036 = vshll.u32 %v1035, 30
        %v1037 = vsub.s32 %v1033, %v1036
        %vm1038 = vcmp.lt.s32.totalorder %v1037, 0
        %v1039 = vsub.s32 0, %v1037
        %v1040 = vsel %vm1038, %v1039, %v1037
        %v1041 = vclz %v1040
        %v1042 = vsub.s32 %v1041, 2
        %vm1043 = vcmp.gt.s32.totalorder 0, %v1042
        %v1044 = vsel %vm1043, 0, %v1042
        %v1045 = vsub.s32 32, %v1044
        %v1046 = vshll.u32 %v1037, %v1044
        %v1047 = vshrl.u32 %v1029, %v1045
        %v1048 = vor.u32 %v1046, %v1047
        %v1049 = vsub.s32 4294967266, %v1044
        %v1050 = vadd.s32 %v1049, 127
        %v1051 = vshll.u32 %v1050, 23
        %v1052 = vor.u32 4788187, %v1051
        %v1053 = vand.u32 2147483647, %v1052
        %v1055 = vcvt.s32.f32 %v1048
        %v1056 = vmul.f32 %v1055, %v1053
        %v1057 = vxor.u32 %v1056, 2147483648
        %v1058 = vsel %vm937, %v1057, %v1056
        %v1059 = vsub.s32 4, %v1035
        %v1060 = vsel %vm937, %v1059, %v1035
        %v1061 = vsel %vm936, %v774, %v1058
        %v1062 = vsel %vm936, 0, %v1060
        %v1063 = vmul.f32 %v1061, %v1061
        %v1064 = vmul.f32 %v1063, -0.001358992
        %v1065 = vadd.f32 %v1064, 0.041655596
        %v1066 = vmul.f32 %v1063, %v1065
        %v1067 = vadd.f32 %v1066, -0.4999988
        %v1068 = vmul.f32 %v1063, %v1067
        %v1069 = vadd.f32 1.0, %v1068
        %v1070 = vmul.f32 %v1061, %v1061
        %v1071 = vmul.f32 %v1070, -0.00019511016
        %v1072 = vadd.f32 %v1071, 0.008332121
        %v1073 = vmul.f32 %v1070, %v1072
        %v1074 = vadd.f32 %v1073, -0.16666654
        %v1075 = vmul.f32 %v1070, %v1074
        %v1076 = vadd.f32 %v1075, 1.0
        %v1077 = vmul.f32 %v1076, %v1061
        %vm1078 = vweird.f32 %v774
        %v1079 = vand.u32 %v1062, 3
        %vm1080 = vcmp.lt.s32.totalorder %v1079, 2
        %vm1081 = vcmp.eq.s32.totalorder %v1079, 0
        %v1082 = vxor.u32 %v1077, 2147483648
        %v1083 = vsel %vm1081, %v1069, %v1082
        %vm1084 = vcmp.eq.s32.totalorder %v1079, 2
        %v1085 = vxor.u32 %v1069, 2147483648
        %v1086 = vsel %vm1084, %v1085, %v1077
        %v1087 = vsel %vm1080, %v1083, %v1086
        %v1088 = vsel %vm1078, nan, %v1087
        %v1089 = vand.u32 2147483647, %v775
        %vm1090 = vcmp.le.f32.partialorder %v1089, 0.7853982
        %vm1091 = vcmp.lt.s32.totalorder %v775, 0
        %v1092 = vand.u32 %v775, 2139095040
        %v1093 = vshrl.u32 %v1092, 23
        %v1094 = vsub.s32 %v1093, 127
        %v1095 = vand.u32 2147483647, %v775
        %v1096 = vand.u32 %v1095, 8388607
        %v1097 = vor.u32 %v1096, 8388608
        %v1098 = vsub.s32 0, %v1097
        %v1099 = vadd.s32 %v1094, 1
        %vm1100 = vcmp.gt.s32.totalorder %v1099, 0
        %v1101 = vsel %vm1100, %v1099, 0
        %v1102 = vshrl.u32 %v1101, 5
        %v1103 = vand.u32 %v1101, 31
        %v1104 = vsub.s32 32, %v1103
        %v1105 = vshrl.u32 683565275, %v1104
        %v1106 = vshll.u32 683565275, %v1103
        %v1107 = vshrl.u32 2475754826, %v1104
        %v1108 = vor.u32 %v1106, %v1107
        %v1109 = vshll.u32 2475754826, %v1103
        %v1110 = vshrl.u32 2131351028, %v1104
        %v1111 = vor.u32 %v1109, %v1110
        %v1112 = vshll.u32 2131351028, %v1103
        %v1113 = vshrl.u32 2102212464, %v1104
        %v1114 = vor.u32 %v1112, %v1113
        %v1115 = vshll.u32 2102212464, %v1103
        %v1116 = vshrl.u32 920167782, %v1104
        %v1117 = vor.u32 %v1115, %v1116
        %v1118 = vshll.u32 920167782, %v1103
        %v1119 = vshrl.u32 1326507024, %v1104
        %v1120 = vor.u32 %v1118, %v1119
        %vm1121 = vcmp.lt.s32.totalorder %v1102, 1
        %vm1122 = vcmp.lt.s32.totalorder %v1102, 2
        %vm1123 = vcmp.lt.s32.totalorder %v1102, 3
        %vm1124 = vcmp.lt.s32.totalorder %v1102, 4
        %v1125 = vsel %vm1121, %v1105, %v1108
        %v1126 = vsel %vm1124, %v1114, 2102212464
        %v1127 = vsel %vm1123, %v1111, %v1126
        %v1128 = vsel %vm1122, %v1125, %v1127
        %v1129 = vsel %vm1121, %v1108, %v1111
        %v1130 = vsel %vm1124, %v1117, 920167782
        %v1131 = vsel %vm1123, %v1114, %v1130
        %v1132 = vsel %vm1122, %v1129, %v1131
        %v1133 = vsel %vm1121, %v1111, %v1114
        %v1134 = vsel %vm1124, %v1120, 1326507024
        %v1135 = vsel %vm1123, %v1117, %v1134
        %v1136 = vsel %vm1122, %v1133, %v1135
        %v1137 = vshll.u32 %v1097, 8
        %v1138 = vand.u32 %v1137, 65535
        %v1139 = vshrl.u32 %v1137, 16
        %v1140 = vand.u32 %v1136, 65535
        %v1141 = vshrl.u32 %v1136, 16
        %v1142 = vmul.u32 %v1138, %v1140
        %v1143 = vmul.u32 %v1138, %v1141
        %v1144 = vmul.u32 %v1139, %v1140
        %v1145 = vmul.u32 %v1139, %v1141
        %v1146 = vshll.u32 %v1143, 16
        %v1147 = vshrl.u32 %v1143, 16
        %v1148 = vshll.u32 %v1144, 16
        %v1149 = vshrl.u32 %v1144, 16
        %vm1150 = vc.u32 %v1142, %v1146
        %v1151 = vsel %vm1150, 1, 0
        %v1152 = vadd.s32 %v1142, %v1146
        %v1153 = vadd.s32 %v1145, %v1151
        %vm1154 = vc.u32 %v1152, %v1148
        %v1155 = vsel %vm1154, 1, 0
        %v1156 = vadd.s32 %v1152, %v1148
        %v1157 = vadd.s32 %v1153, %v1155
        %v1158 = vadd.s32 %v1157, %v1147
        %v1159 = vadd.s32 %v1158, %v1149
        %v1160 = vand.u32 %v1137, 65535
        %v1161 = vshrl.u32 %v1137, 16
        %v1162 = vand.u32 %v1132, 65535
        %v1163 = vshrl.u32 %v1132, 16
        %v1164 = vmul.u32 %v1160, %v1162
        %v1165 = vmul.u32 %v1160, %v1163
        %v1166 = vmul.u32 %v1161, %v1162
        %v1167 = vmul.u32 %v1161, %v1163
        %v1168 = vshll.u32 %v1165, 16
        %v1169 = vshrl.u32 %v1165, 16
        %v1170 = vshll.u32 %v1166, 16
        %v1171 = vshrl.u32 %v1166, 16
        %vm1172 = vc.u32 %v1164, %v1168
        %v1173 = vsel %vm1172, 1, 0
        %v1174 = vadd.s32 %v1164, %v1168
        %v1175 = vadd.s32 %v1167, %v1173
        %vm1176 = vc.u32 %v1174, %v1170
        %v1177 = vsel %vm1176, 1, 0
        %v1178 = vadd.s32 %v1174, %v1170
        %v1179 = vadd.s32 %v1175, %v1177
        %v1180 = vadd.s32 %v1179, %v1169
        %v1181 = vadd.s32 %v1180, %v1171
        %v1182 = vmul.u32 %v1137, %v1128
        %v1183 = vadd.s32 %v1159, %v1178
        %vm1184 = vc.u32 %v1159, %v1178
        %v1185 = vadd.s32 %v1181, 1
        %v1186 = vsel %vm1184, %v1185, %v1181
        %v1187 = vadd.s32 %v1182, %v1186
        %v1188 = vadd.s32 %v1187, 536870912
        %v1189 = vshrl.u32 %v1188, 30
        %v1190 = vshll.u32 %v1189, 30
        %v1191 = vsub.s32 %v1187, %v1190
        %vm1192 = vcmp.lt.s32.totalorder %v1191, 0
        %v1193 = vsub.s32 0, %v1191
        %v1194 = vsel %vm1192, %v1193, %v1191
        %v1195 = vclz %v1194
        %v1196 = vsub.s32 %v1195, 2
        %vm1197 = vcmp.gt.s32.totalorder 0, %v1196
        %v1198 = vsel %vm1197, 0, %v1196
        %v1199 = vsub.s32 32, %v1198
        %v1200 = vshll.u32 %v1191, %v1198
        %v1201 = vshrl.u32 %v1183, %v1199
        %v1202 = vor.u32 %v1200, %v1201
        %v1203 = vsub.s32 4294967266, %v1198
        %v1204 = vadd.s32 %v1203, 127
        %v1205 = vshll.u32 %v1204, 23
        %v1206 = vor.u32 4788187, %v1205
        %v1207 = vand.u32 2147483647, %v1206
        %v1209 = vcvt.s32.f32 %v1202
        %v1210 = vmul.f32 %v1209, %v1207
        %v1211 = vxor.u32 %v1210, 2147483648
        %v1212 = vsel %vm1091, %v1211, %v1210
        %v1213 = vsub.s32 4, %v1189
        %v1214 = vsel %vm1091, %v1213, %v1189
        %v1215 = vsel %vm1090, %v775, %v1212
        %v1216 = vsel %vm1090, 0, %v1214
        %v1217 = vmul.f32 %v1215, %v1215
        %v1218 = vmul.f32 %v1217, -0.001358992
        %v1219 = vadd.f32 %v1218, 0.041655596
        %v1220 = vmul.f32 %v1217, %v1219
        %v1221 = vadd.f32 %v1220, -0.4999988
        %v1222 = vmul.f32 %v1217, %v1221
        %v1223 = vadd.f32 1.0, %v1222
        %v1224 = vmul.f32 %v1215, %v1215
        %v1225 = vmul.f32 %v1224, -0.00019511016
        %v1226 = vadd.f32 %v1225, 0.008332121
        %v1227 = vmul.f32 %v1224, %v1226
        %v1228 = vadd.f32 %v1227, -0.16666654
        %v1229 = vmul.f32 %v1224, %v1228
        %v1230 = vadd.f32 %v1229, 1.0
        %v1231 = vmul.f32 %v1230, %v1215
        %vm1232 = vweird.f32 %v775
        %v1233 = vand.u32 %v1216, 3
        %vm1234 = vcmp.lt.s32.totalorder %v1233, 2
        %vm1235 = vcmp.eq.s32.totalorder %v1233, 0
        %v1236 = vxor.u32 %v1231, 2147483648
        %v1237 = vsel %vm1235, %v1223, %v1236
        %vm1238 = vcmp.eq.s32.totalorder %v1233, 2
        %v1239 = vxor.u32 %v1223, 2147483648
        %v1240 = vsel %vm1238, %v1239, %v1231
        %v1241 = vsel %vm1234, %v1237, %v1240
        %v1242 = vsel %vm1232, nan, %v1241
        %v1243 = vand.u32 2147483647, %v776
        %vm1244 = vcmp.le.f32.partialorder %v1243, 0.7853982
        %vm1245 = vcmp.lt.s32.totalorder %v776, 0
        %v1246 = vand.u32 %v776, 2139095040
        %v1247 = vshrl.u32 %v1246, 23
        %v1248 = vsub.s32 %v1247, 127
        %v1249 = vand.u32 2147483647, %v776
        %v1250 = vand.u32 %v1249, 8388607
        %v1251 = vor.u32 %v1250, 8388608
        %v1252 = vsub.s32 0, %v1251
        %v1253 = vadd.s32 %v1248, 1
        %vm1254 = vcmp.gt.s32.totalorder %v1253, 0
        %v1255 = vsel %vm1254, %v1253, 0
        %v1256 = vshrl.u32 %v1255, 5
        %v1257 = vand.u32 %v1255, 31
        %v1258 = vsub.s32 32, %v1257
        %v1259 = vshrl.u32 683565275, %v1258
        %v1260 = vshll.u32 683565275, %v1257
        %v1261 = vshrl.u32 2475754826, %v1258
        %v1262 = vor.u32 %v1260, %v1261
        %v1263 = vshll.u32 2475754826, %v1257
        %v1264 = vshrl.u32 2131351028, %v1258
        %v1265 = vor.u32 %v1263, %v1264
        %v1266 = vshll.u32 2131351028, %v1257
        %v1267 = vshrl.u32 2102212464, %v1258
        %v1268 = vor.u32 %v1266, %v1267
        %v1269 = vshll.u32 2102212464, %v1257
        %v1270 = vshrl.u32 920167782, %v1258
        %v1271 = vor.u32 %v1269, %v1270
        %v1272 = vshll.u32 920167782, %v1257
        %v1273 = vshrl.u32 1326507024, %v1258
        %v1274 = vor.u32 %v1272, %v1273
        %vm1275 = vcmp.lt.s32.totalorder %v1256, 1
        %vm1276 = vcmp.lt.s32.totalorder %v1256, 2
        %vm1277 = vcmp.lt.s32.totalorder %v1256, 3
        %vm1278 = vcmp.lt.s32.totalorder %v1256, 4
        %v1279 = vsel %vm1275, %v1259, %v1262
        %v1280 = vsel %vm1278, %v1268, 2102212464
        %v1281 = vsel %vm1277, %v1265, %v1280
        %v1282 = vsel %vm1276, %v1279, %v1281
        %v1283 = vsel %vm1275, %v1262, %v1265
        %v1284 = vsel %vm1278, %v1271, 920167782
        %v1285 = vsel %vm1277, %v1268, %v1284
        %v1286 = vsel %vm1276, %v1283, %v1285
        %v1287 = vsel %vm1275, %v1265, %v1268
        %v1288 = vsel %vm1278, %v1274, 1326507024
        %v1289 = vsel %vm1277, %v1271, %v1288
        %v1290 = vsel %vm1276, %v1287, %v1289
        %v1291 = vshll.u32 %v1251, 8
        %v1292 = vand.u32 %v1291, 65535
        %v1293 = vshrl.u32 %v1291, 16
        %v1294 = vand.u32 %v1290, 65535
        %v1295 = vshrl.u32 %v1290, 16
        %v1296 = vmul.u32 %v1292, %v1294
        %v1297 = vmul.u32 %v1292, %v1295
        %v1298 = vmul.u32 %v1293, %v1294
        %v1299 = vmul.u32 %v1293, %v1295
        %v1300 = vshll.u32 %v1297, 16
        %v1301 = vshrl.u32 %v1297, 16
        %v1302 = vshll.u32 %v1298, 16
        %v1303 = vshrl.u32 %v1298, 16
        %vm1304 = vc.u32 %v1296, %v1300
        %v1305 = vsel %vm1304, 1, 0
        %v1306 = vadd.s32 %v1296, %v1300
        %v1307 = vadd.s32 %v1299, %v1305
        %vm1308 = vc.u32 %v1306, %v1302
        %v1309 = vsel %vm1308, 1, 0
        %v1310 = vadd.s32 %v1306, %v1302
        %v1311 = vadd.s32 %v1307, %v1309
        %v1312 = vadd.s32 %v1311, %v1301
        %v1313 = vadd.s32 %v1312, %v1303
        %v1314 = vand.u32 %v1291, 65535
        %v1315 = vshrl.u32 %v1291, 16
        %v1316 = vand.u32 %v1286, 65535
        %v1317 = vshrl.u32 %v1286, 16
        %v1318 = vmul.u32 %v1314, %v1316
        %v1319 = vmul.u32 %v1314, %v1317
        %v1320 = vmul.u32 %v1315, %v1316
        %v1321 = vmul.u32 %v1315, %v1317
        %v1322 = vshll.u32 %v1319, 16
        %v1323 = vshrl.u32 %v1319, 16
        %v1324 = vshll.u32 %v1320, 16
        %v1325 = vshrl.u32 %v1320, 16
        %vm1326 = vc.u32 %v1318, %v1322
        %v1327 = vsel %vm1326, 1, 0
        %v1328 = vadd.s32 %v1318, %v1322
        %v1329 = vadd.s32 %v1321, %v1327
        %vm1330 = vc.u32 %v1328, %v1324
        %v1331 = vsel %vm1330, 1, 0
        %v1332 = vadd.s32 %v1328, %v1324
        %v1333 = vadd.s32 %v1329, %v1331
        %v1334 = vadd.s32 %v1333, %v1323
        %v1335 = vadd.s32 %v1334, %v1325
        %v1336 = vmul.u32 %v1291, %v1282
        %v1337 = vadd.s32 %v1313, %v1332
        %vm1338 = vc.u32 %v1313, %v1332
        %v1339 = vadd.s32 %v1335, 1
        %v1340 = vsel %vm1338, %v1339, %v1335
        %v1341 = vadd.s32 %v1336, %v1340
        %v1342 = vadd.s32 %v1341, 536870912
        %v1343 = vshrl.u32 %v1342, 30
        %v1344 = vshll.u32 %v1343, 30
        %v1345 = vsub.s32 %v1341, %v1344
        %vm1346 = vcmp.lt.s32.totalorder %v1345, 0
        %v1347 = vsub.s32 0, %v1345
        %v1348 = vsel %vm1346, %v1347, %v1345
        %v1349 = vclz %v1348
        %v1350 = vsub.s32 %v1349, 2
        %vm1351 = vcmp.gt.s32.totalorder 0, %v1350
        %v1352 = vsel %vm1351, 0, %v1350
        %v1353 = vsub.s32 32, %v1352
        %v1354 = vshll.u32 %v1345, %v1352
        %v1355 = vshrl.u32 %v1337, %v1353
        %v1356 = vor.u32 %v1354, %v1355
        %v1357 = vsub.s32 4294967266, %v1352
        %v1358 = vadd.s32 %v1357, 127
        %v1359 = vshll.u32 %v1358, 23
        %v1360 = vor.u32 4788187, %v1359
        %v1361 = vand.u32 2147483647, %v1360
        %v1363 = vcvt.s32.f32 %v1356
        %v1364 = vmul.f32 %v1363, %v1361
        %v1365 = vxor.u32 %v1364, 2147483648
        %v1366 = vsel %vm1245, %v1365, %v1364
        %v1367 = vsub.s32 4, %v1343
        %v1368 = vsel %vm1245, %v1367, %v1343
        %v1369 = vsel %vm1244, %v776, %v1366
        %v1370 = vsel %vm1244, 0, %v1368
        %v1371 = vmul.f32 %v1369, %v1369
        %v1372 = vmul.f32 %v1371, -0.001358992
        %v1373 = vadd.f32 %v1372, 0.041655596
        %v1374 = vmul.f32 %v1371, %v1373
        %v1375 = vadd.f32 %v1374, -0.4999988
        %v1376 = vmul.f32 %v1371, %v1375
        %v1377 = vadd.f32 1.0, %v1376
        %v1378 = vmul.f32 %v1369, %v1369
        %v1379 = vmul.f32 %v1378, -0.00019511016
        %v1380 = vadd.f32 %v1379, 0.008332121
        %v1381 = vmul.f32 %v1378, %v1380
        %v1382 = vadd.f32 %v1381, -0.16666654
        %v1383 = vmul.f32 %v1378, %v1382
        %v1384 = vadd.f32 %v1383, 1.0
        %v1385 = vmul.f32 %v1384, %v1369
        %vm1386 = vweird.f32 %v776
        %v1387 = vand.u32 %v1370, 3
        %vm1388 = vcmp.lt.s32.totalorder %v1387, 2
        %vm1389 = vcmp.eq.s32.totalorder %v1387, 0
        %v1390 = vxor.u32 %v1385, 2147483648
        %v1391 = vsel %vm1389, %v1377, %v1390
        %vm1392 = vcmp.eq.s32.totalorder %v1387, 2
        %v1393 = vxor.u32 %v1377, 2147483648
        %v1394 = vsel %vm1392, %v1393, %v1385
        %v1395 = vsel %vm1388, %v1391, %v1394
        %v1396 = vsel %vm1386, nan, %v1395
        %v1397 = vand.u32 2147483647, %v777
        %vm1398 = vcmp.le.f32.partialorder %v1397, 0.7853982
        %vm1399 = vcmp.lt.s32.totalorder %v777, 0
        %v1400 = vand.u32 %v777, 2139095040
        %v1401 = vshrl.u32 %v1400, 23
        %v1402 = vsub.s32 %v1401, 127
        %v1403 = vand.u32 2147483647, %v777
        %v1404 = vand.u32 %v1403, 8388607
        %v1405 = vor.u32 %v1404, 8388608
        %v1406 = vsub.s32 0, %v1405
        %v1407 = vadd.s32 %v1402, 1
        %vm1408 = vcmp.gt.s32.totalorder %v1407, 0
        %v1409 = vsel %vm1408, %v1407, 0
        %v1410 = vshrl.u32 %v1409, 5
        %v1411 = vand.u32 %v1409, 31
        %v1412 = vsub.s32 32, %v1411
        %v1413 = vshrl.u32 683565275, %v1412
        %v1414 = vshll.u32 683565275, %v1411
        %v1415 = vshrl.u32 2475754826, %v1412
        %v1416 = vor.u32 %v1414, %v1415
        %v1417 = vshll.u32 2475754826, %v1411
        %v1418 = vshrl.u32 2131351028, %v1412
        %v1419 = vor.u32 %v1417, %v1418
        %v1420 = vshll.u32 2131351028, %v1411
        %v1421 = vshrl.u32 2102212464, %v1412
        %v1422 = vor.u32 %v1420, %v1421
        %v1423 = vshll.u32 2102212464, %v1411
        %v1424 = vshrl.u32 920167782, %v1412
        %v1425 = vor.u32 %v1423, %v1424
        %v1426 = vshll.u32 920167782, %v1411
        %v1427 = vshrl.u32 1326507024, %v1412
        %v1428 = vor.u32 %v1426, %v1427
        %vm1429 = vcmp.lt.s32.totalorder %v1410, 1
        %vm1430 = vcmp.lt.s32.totalorder %v1410, 2
        %vm1431 = vcmp.lt.s32.totalorder %v1410, 3
        %vm1432 = vcmp.lt.s32.totalorder %v1410, 4
        %v1433 = vsel %vm1429, %v1413, %v1416
        %v1434 = vsel %vm1432, %v1422, 2102212464
        %v1435 = vsel %vm1431, %v1419, %v1434
        %v1436 = vsel %vm1430, %v1433, %v1435
        %v1437 = vsel %vm1429, %v1416, %v1419
        %v1438 = vsel %vm1432, %v1425, 920167782
        %v1439 = vsel %vm1431, %v1422, %v1438
        %v1440 = vsel %vm1430, %v1437, %v1439
        %v1441 = vsel %vm1429, %v1419, %v1422
        %v1442 = vsel %vm1432, %v1428, 1326507024
        %v1443 = vsel %vm1431, %v1425, %v1442
        %v1444 = vsel %vm1430, %v1441, %v1443
        %v1445 = vshll.u32 %v1405, 8
        %v1446 = vand.u32 %v1445, 65535
        %v1447 = vshrl.u32 %v1445, 16
        %v1448 = vand.u32 %v1444, 65535
        %v1449 = vshrl.u32 %v1444, 16
        %v1450 = vmul.u32 %v1446, %v1448
        %v1451 = vmul.u32 %v1446, %v1449
        %v1452 = vmul.u32 %v1447, %v1448
        %v1453 = vmul.u32 %v1447, %v1449
        %v1454 = vshll.u32 %v1451, 16
        %v1455 = vshrl.u32 %v1451, 16
        %v1456 = vshll.u32 %v1452, 16
        %v1457 = vshrl.u32 %v1452, 16
        %vm1458 = vc.u32 %v1450, %v1454
        %v1459 = vsel %vm1458, 1, 0
        %v1460 = vadd.s32 %v1450, %v1454
        %v1461 = vadd.s32 %v1453, %v1459
        %vm1462 = vc.u32 %v1460, %v1456
        %v1463 = vsel %vm1462, 1, 0
        %v1464 = vadd.s32 %v1460, %v1456
        %v1465 = vadd.s32 %v1461, %v1463
        %v1466 = vadd.s32 %v1465, %v1455
        %v1467 = vadd.s32 %v1466, %v1457
        %v1468 = vand.u32 %v1445, 65535
        %v1469 = vshrl.u32 %v1445, 16
        %v1470 = vand.u32 %v1440, 65535
        %v1471 = vshrl.u32 %v1440, 16
        %v1472 = vmul.u32 %v1468, %v1470
        %v1473 = vmul.u32 %v1468, %v1471
        %v1474 = vmul.u32 %v1469, %v1470
        %v1475 = vmul.u32 %v1469, %v1471
        %v1476 = vshll.u32 %v1473, 16
        %v1477 = vshrl.u32 %v1473, 16
        %v1478 = vshll.u32 %v1474, 16
        %v1479 = vshrl.u32 %v1474, 16
        %vm1480 = vc.u32 %v1472, %v1476
        %v1481 = vsel %vm1480, 1, 0
        %v1482 = vadd.s32 %v1472, %v1476
        %v1483 = vadd.s32 %v1475, %v1481
        %vm1484 = vc.u32 %v1482, %v1478
        %v1485 = vsel %vm1484, 1, 0
        %v1486 = vadd.s32 %v1482, %v1478
        %v1487 = vadd.s32 %v1483, %v1485
        %v1488 = vadd.s32 %v1487, %v1477
        %v1489 = vadd.s32 %v1488, %v1479
        %v1490 = vmul.u32 %v1445, %v1436
        %v1491 = vadd.s32 %v1467, %v1486
        %vm1492 = vc.u32 %v1467, %v1486
        %v1493 = vadd.s32 %v1489, 1
        %v1494 = vsel %vm1492, %v1493, %v1489
        %v1495 = vadd.s32 %v1490, %v1494
        %v1496 = vadd.s32 %v1495, 536870912
        %v1497 = vshrl.u32 %v1496, 30
        %v1498 = vshll.u32 %v1497, 30
        %v1499 = vsub.s32 %v1495, %v1498
        %vm1500 = vcmp.lt.s32.totalorder %v1499, 0
        %v1501 = vsub.s32 0, %v1499
        %v1502 = vsel %vm1500, %v1501, %v1499
        %v1503 = vclz %v1502
        %v1504 = vsub.s32 %v1503, 2
        %vm1505 = vcmp.gt.s32.totalorder 0, %v1504
        %v1506 = vsel %vm1505, 0, %v1504
        %v1507 = vsub.s32 32, %v1506
        %v1508 = vshll.u32 %v1499, %v1506
        %v1509 = vshrl.u32 %v1491, %v1507
        %v1510 = vor.u32 %v1508, %v1509
        %v1511 = vsub.s32 4294967266, %v1506
        %v1512 = vadd.s32 %v1511, 127
        %v1513 = vshll.u32 %v1512, 23
        %v1514 = vor.u32 4788187, %v1513
        %v1515 = vand.u32 2147483647, %v1514
        %v1517 = vcvt.s32.f32 %v1510
        %v1518 = vmul.f32 %v1517, %v1515
        %v1519 = vxor.u32 %v1518, 2147483648
        %v1520 = vsel %vm1399, %v1519, %v1518
        %v1521 = vsub.s32 4, %v1497
        %v1522 = vsel %vm1399, %v1521, %v1497
        %v1523 = vsel %vm1398, %v777, %v1520
        %v1524 = vsel %vm1398, 0, %v1522
        %v1525 = vmul.f32 %v1523, %v1523
        %v1526 = vmul.f32 %v1525, -0.001358992
        %v1527 = vadd.f32 %v1526, 0.041655596
        %v1528 = vmul.f32 %v1525, %v1527
        %v1529 = vadd.f32 %v1528, -0.4999988
        %v1530 = vmul.f32 %v1525, %v1529
        %v1531 = vadd.f32 1.0, %v1530
        %v1532 = vmul.f32 %v1523, %v1523
        %v1533 = vmul.f32 %v1532, -0.00019511016
        %v1534 = vadd.f32 %v1533, 0.008332121
        %v1535 = vmul.f32 %v1532, %v1534
        %v1536 = vadd.f32 %v1535, -0.16666654
        %v1537 = vmul.f32 %v1532, %v1536
        %v1538 = vadd.f32 %v1537, 1.0
        %v1539 = vmul.f32 %v1538, %v1523
        %vm1540 = vweird.f32 %v777
        %v1541 = vand.u32 %v1524, 3
        %vm1542 = vcmp.lt.s32.totalorder %v1541, 2
        %vm1543 = vcmp.eq.s32.totalorder %v1541, 0
        %v1544 = vxor.u32 %v1539, 2147483648
        %v1545 = vsel %vm1543, %v1531, %v1544
        %vm1546 = vcmp.eq.s32.totalorder %v1541, 2
        %v1547 = vxor.u32 %v1531, 2147483648
        %v1548 = vsel %vm1546, %v1547, %v1539
        %v1549 = vsel %vm1542, %v1545, %v1548
        %v1550 = vsel %vm1540, nan, %v1549
        %v1551 = vand.u32 2147483647, %v778
        %vm1552 = vcmp.le.f32.partialorder %v1551, 0.7853982
        %vm1553 = vcmp.lt.s32.totalorder %v778, 0
        %v1554 = vand.u32 %v778, 2139095040
        %v1555 = vshrl.u32 %v1554, 23
        %v1556 = vsub.s32 %v1555, 127
        %v1557 = vand.u32 2147483647, %v778
        %v1558 = vand.u32 %v1557, 8388607
        %v1559 = vor.u32 %v1558, 8388608
        %v1560 = vsub.s32 0, %v1559
        %v1561 = vadd.s32 %v1556, 1
        %vm1562 = vcmp.gt.s32.totalorder %v1561, 0
        %v1563 = vsel %vm1562, %v1561, 0
        %v1564 = vshrl.u32 %v1563, 5
        %v1565 = vand.u32 %v1563, 31
        %v1566 = vsub.s32 32, %v1565
        %v1567 = vshrl.u32 683565275, %v1566
        %v1568 = vshll.u32 683565275, %v1565
        %v1569 = vshrl.u32 2475754826, %v1566
        %v1570 = vor.u32 %v1568, %v1569
        %v1571 = vshll.u32 2475754826, %v1565
        %v1572 = vshrl.u32 2131351028, %v1566
        %v1573 = vor.u32 %v1571, %v1572
        %v1574 = vshll.u32 2131351028, %v1565
        %v1575 = vshrl.u32 2102212464, %v1566
        %v1576 = vor.u32 %v1574, %v1575
        %v1577 = vshll.u32 2102212464, %v1565
        %v1578 = vshrl.u32 920167782, %v1566
        %v1579 = vor.u32 %v1577, %v1578
        %v1580 = vshll.u32 920167782, %v1565
        %v1581 = vshrl.u32 1326507024, %v1566
        %v1582 = vor.u32 %v1580, %v1581
        %vm1583 = vcmp.lt.s32.totalorder %v1564, 1
        %vm1584 = vcmp.lt.s32.totalorder %v1564, 2
        %vm1585 = vcmp.lt.s32.totalorder %v1564, 3
        %vm1586 = vcmp.lt.s32.totalorder %v1564, 4
        %v1587 = vsel %vm1583, %v1567, %v1570
        %v1588 = vsel %vm1586, %v1576, 2102212464
        %v1589 = vsel %vm1585, %v1573, %v1588
        %v1590 = vsel %vm1584, %v1587, %v1589
        %v1591 = vsel %vm1583, %v1570, %v1573
        %v1592 = vsel %vm1586, %v1579, 920167782
        %v1593 = vsel %vm1585, %v1576, %v1592
        %v1594 = vsel %vm1584, %v1591, %v1593
        %v1595 = vsel %vm1583, %v1573, %v1576
        %v1596 = vsel %vm1586, %v1582, 1326507024
        %v1597 = vsel %vm1585, %v1579, %v1596
        %v1598 = vsel %vm1584, %v1595, %v1597
        %v1599 = vshll.u32 %v1559, 8
        %v1600 = vand.u32 %v1599, 65535
        %v1601 = vshrl.u32 %v1599, 16
        %v1602 = vand.u32 %v1598, 65535
        %v1603 = vshrl.u32 %v1598, 16
        %v1604 = vmul.u32 %v1600, %v1602
        %v1605 = vmul.u32 %v1600, %v1603
        %v1606 = vmul.u32 %v1601, %v1602
        %v1607 = vmul.u32 %v1601, %v1603
        %v1608 = vshll.u32 %v1605, 16
        %v1609 = vshrl.u32 %v1605, 16
        %v1610 = vshll.u32 %v1606, 16
        %v1611 = vshrl.u32 %v1606, 16
        %vm1612 = vc.u32 %v1604, %v1608
        %v1613 = vsel %vm1612, 1, 0
        %v1614 = vadd.s32 %v1604, %v1608
        %v1615 = vadd.s32 %v1607, %v1613
        %vm1616 = vc.u32 %v1614, %v1610
        %v1617 = vsel %vm1616, 1, 0
        %v1618 = vadd.s32 %v1614, %v1610
        %v1619 = vadd.s32 %v1615, %v1617
        %v1620 = vadd.s32 %v1619, %v1609
        %v1621 = vadd.s32 %v1620, %v1611
        %v1622 = vand.u32 %v1599, 65535
        %v1623 = vshrl.u32 %v1599, 16
        %v1624 = vand.u32 %v1594, 65535
        %v1625 = vshrl.u32 %v1594, 16
        %v1626 = vmul.u32 %v1622, %v1624
        %v1627 = vmul.u32 %v1622, %v1625
        %v1628 = vmul.u32 %v1623, %v1624
        %v1629 = vmul.u32 %v1623, %v1625
        %v1630 = vshll.u32 %v1627, 16
        %v1631 = vshrl.u32 %v1627, 16
        %v1632 = vshll.u32 %v1628, 16
        %v1633 = vshrl.u32 %v1628, 16
        %vm1634 = vc.u32 %v1626, %v1630
        %v1635 = vsel %vm1634, 1, 0
        %v1636 = vadd.s32 %v1626, %v1630
        %v1637 = vadd.s32 %v1629, %v1635
        %vm1638 = vc.u32 %v1636, %v1632
        %v1639 = vsel %vm1638, 1, 0
        %v1640 = vadd.s32 %v1636, %v1632
        %v1641 = vadd.s32 %v1637, %v1639
        %v1642 = vadd.s32 %v1641, %v1631
        %v1643 = vadd.s32 %v1642, %v1633
        %v1644 = vmul.u32 %v1599, %v1590
        %v1645 = vadd.s32 %v1621, %v1640
        %vm1646 = vc.u32 %v1621, %v1640
        %v1647 = vadd.s32 %v1643, 1
        %v1648 = vsel %vm1646, %v1647, %v1643
        %v1649 = vadd.s32 %v1644, %v1648
        %v1650 = vadd.s32 %v1649, 536870912
        %v1651 = vshrl.u32 %v1650, 30
        %v1652 = vshll.u32 %v1651, 30
        %v1653 = vsub.s32 %v1649, %v1652
        %vm1654 = vcmp.lt.s32.totalorder %v1653, 0
        %v1655 = vsub.s32 0, %v1653
        %v1656 = vsel %vm1654, %v1655, %v1653
        %v1657 = vclz %v1656
        %v1658 = vsub.s32 %v1657, 2
        %vm1659 = vcmp.gt.s32.totalorder 0, %v1658
        %v1660 = vsel %vm1659, 0, %v1658
        %v1661 = vsub.s32 32, %v1660
        %v1662 = vshll.u32 %v1653, %v1660
        %v1663 = vshrl.u32 %v1645, %v1661
        %v1664 = vor.u32 %v1662, %v1663
        %v1665 = vsub.s32 4294967266, %v1660
        %v1666 = vadd.s32 %v1665, 127
        %v1667 = vshll.u32 %v1666, 23
        %v1668 = vor.u32 4788187, %v1667
        %v1669 = vand.u32 2147483647, %v1668
        %v1671 = vcvt.s32.f32 %v1664
        %v1672 = vmul.f32 %v1671, %v1669
        %v1673 = vxor.u32 %v1672, 2147483648
        %v1674 = vsel %vm1553, %v1673, %v1672
        %v1675 = vsub.s32 4, %v1651
        %v1676 = vsel %vm1553, %v1675, %v1651
        %v1677 = vsel %vm1552, %v778, %v1674
        %v1678 = vsel %vm1552, 0, %v1676
        %v1679 = vmul.f32 %v1677, %v1677
        %v1680 = vmul.f32 %v1679, -0.001358992
        %v1681 = vadd.f32 %v1680, 0.041655596
        %v1682 = vmul.f32 %v1679, %v1681
        %v1683 = vadd.f32 %v1682, -0.4999988
        %v1684 = vmul.f32 %v1679, %v1683
        %v1685 = vadd.f32 1.0, %v1684
        %v1686 = vmul.f32 %v1677, %v1677
        %v1687 = vmul.f32 %v1686, -0.00019511016
        %v1688 = vadd.f32 %v1687, 0.008332121
        %v1689 = vmul.f32 %v1686, %v1688
        %v1690 = vadd.f32 %v1689, -0.16666654
        %v1691 = vmul.f32 %v1686, %v1690
        %v1692 = vadd.f32 %v1691, 1.0
        %v1693 = vmul.f32 %v1692, %v1677
        %vm1694 = vweird.f32 %v778
        %v1695 = vand.u32 %v1678, 3
        %vm1696 = vcmp.lt.s32.totalorder %v1695, 2
        %vm1697 = vcmp.eq.s32.totalorder %v1695, 0
        %v1698 = vxor.u32 %v1693, 2147483648
        %v1699 = vsel %vm1697, %v1685, %v1698
        %vm1700 = vcmp.eq.s32.totalorder %v1695, 2
        %v1701 = vxor.u32 %v1685, 2147483648
        %v1702 = vsel %vm1700, %v1701, %v1693
        %v1703 = vsel %vm1696, %v1699, %v1702
        %v1704 = vsel %vm1694, nan, %v1703
        %v1705 = vand.u32 2147483647, %v779
        %vm1706 = vcmp.le.f32.partialorder %v1705, 0.7853982
        %vm1707 = vcmp.lt.s32.totalorder %v779, 0
        %v1708 = vand.u32 %v779, 2139095040
        %v1709 = vshrl.u32 %v1708, 23
        %v1710 = vsub.s32 %v1709, 127
        %v1711 = vand.u32 2147483647, %v779
        %v1712 = vand.u32 %v1711, 8388607
        %v1713 = vor.u32 %v1712, 8388608
        %v1714 = vsub.s32 0, %v1713
        %v1715 = vadd.s32 %v1710, 1
        %vm1716 = vcmp.gt.s32.totalorder %v1715, 0
        %v1717 = vsel %vm1716, %v1715, 0
        %v1718 = vshrl.u32 %v1717, 5
        %v1719 = vand.u32 %v1717, 31
        %v1720 = vsub.s32 32, %v1719
        %v1721 = vshrl.u32 683565275, %v1720
        %v1722 = vshll.u32 683565275, %v1719
        %v1723 = vshrl.u32 2475754826, %v1720
        %v1724 = vor.u32 %v1722, %v1723
        %v1725 = vshll.u32 2475754826, %v1719
        %v1726 = vshrl.u32 2131351028, %v1720
        %v1727 = vor.u32 %v1725, %v1726
        %v1728 = vshll.u32 2131351028, %v1719
        %v1729 = vshrl.u32 2102212464, %v1720
        %v1730 = vor.u32 %v1728, %v1729
        %v1731 = vshll.u32 2102212464, %v1719
        %v1732 = vshrl.u32 920167782, %v1720
        %v1733 = vor.u32 %v1731, %v1732
        %v1734 = vshll.u32 920167782, %v1719
        %v1735 = vshrl.u32 1326507024, %v1720
        %v1736 = vor.u32 %v1734, %v1735
        %vm1737 = vcmp.lt.s32.totalorder %v1718, 1
        %vm1738 = vcmp.lt.s32.totalorder %v1718, 2
        %vm1739 = vcmp.lt.s32.totalorder %v1718, 3
        %vm1740 = vcmp.lt.s32.totalorder %v1718, 4
        %v1741 = vsel %vm1737, %v1721, %v1724
        %v1742 = vsel %vm1740, %v1730, 2102212464
        %v1743 = vsel %vm1739, %v1727, %v1742
        %v1744 = vsel %vm1738, %v1741, %v1743
        %v1745 = vsel %vm1737, %v1724, %v1727
        %v1746 = vsel %vm1740, %v1733, 920167782
        %v1747 = vsel %vm1739, %v1730, %v1746
        %v1748 = vsel %vm1738, %v1745, %v1747
        %v1749 = vsel %vm1737, %v1727, %v1730
        %v1750 = vsel %vm1740, %v1736, 1326507024
        %v1751 = vsel %vm1739, %v1733, %v1750
        %v1752 = vsel %vm1738, %v1749, %v1751
        %v1753 = vshll.u32 %v1713, 8
        %v1754 = vand.u32 %v1753, 65535
        %v1755 = vshrl.u32 %v1753, 16
        %v1756 = vand.u32 %v1752, 65535
        %v1757 = vshrl.u32 %v1752, 16
        %v1758 = vmul.u32 %v1754, %v1756
        %v1759 = vmul.u32 %v1754, %v1757
        %v1760 = vmul.u32 %v1755, %v1756
        %v1761 = vmul.u32 %v1755, %v1757
        %v1762 = vshll.u32 %v1759, 16
        %v1763 = vshrl.u32 %v1759, 16
        %v1764 = vshll.u32 %v1760, 16
        %v1765 = vshrl.u32 %v1760, 16
        %vm1766 = vc.u32 %v1758, %v1762
        %v1767 = vsel %vm1766, 1, 0
        %v1768 = vadd.s32 %v1758, %v1762
        %v1769 = vadd.s32 %v1761, %v1767
        %vm1770 = vc.u32 %v1768, %v1764
        %v1771 = vsel %vm1770, 1, 0
        %v1772 = vadd.s32 %v1768, %v1764
        %v1773 = vadd.s32 %v1769, %v1771
        %v1774 = vadd.s32 %v1773, %v1763
        %v1775 = vadd.s32 %v1774, %v1765
        %v1776 = vand.u32 %v1753, 65535
        %v1777 = vshrl.u32 %v1753, 16
        %v1778 = vand.u32 %v1748, 65535
        %v1779 = vshrl.u32 %v1748, 16
        %v1780 = vmul.u32 %v1776, %v1778
        %v1781 = vmul.u32 %v1776, %v1779
        %v1782 = vmul.u32 %v1777, %v1778
        %v1783 = vmul.u32 %v1777, %v1779
        %v1784 = vshll.u32 %v1781, 16
        %v1785 = vshrl.u32 %v1781, 16
        %v1786 = vshll.u32 %v1782, 16
        %v1787 = vshrl.u32 %v1782, 16
        %vm1788 = vc.u32 %v1780, %v1784
        %v1789 = vsel %vm1788, 1, 0
        %v1790 = vadd.s32 %v1780, %v1784
        %v1791 = vadd.s32 %v1783, %v1789
        %vm1792 = vc.u32 %v1790, %v1786
        %v1793 = vsel %vm1792, 1, 0
        %v1794 = vadd.s32 %v1790, %v1786
        %v1795 = vadd.s32 %v1791, %v1793
        %v1796 = vadd.s32 %v1795, %v1785
        %v1797 = vadd.s32 %v1796, %v1787
        %v1798 = vmul.u32 %v1753, %v1744
        %v1799 = vadd.s32 %v1775, %v1794
        %vm1800 = vc.u32 %v1775, %v1794
        %v1801 = vadd.s32 %v1797, 1
        %v1802 = vsel %vm1800, %v1801, %v1797
        %v1803 = vadd.s32 %v1798, %v1802
        %v1804 = vadd.s32 %v1803, 536870912
        %v1805 = vshrl.u32 %v1804, 30
        %v1806 = vshll.u32 %v1805, 30
        %v1807 = vsub.s32 %v1803, %v1806
        %vm1808 = vcmp.lt.s32.totalorder %v1807, 0
        %v1809 = vsub.s32 0, %v1807
        %v1810 = vsel %vm1808, %v1809, %v1807
        %v1811 = vclz %v1810
        %v1812 = vsub.s32 %v1811, 2
        %vm1813 = vcmp.gt.s32.totalorder 0, %v1812
        %v1814 = vsel %vm1813, 0, %v1812
        %v1815 = vsub.s32 32, %v1814
        %v1816 = vshll.u32 %v1807, %v1814
        %v1817 = vshrl.u32 %v1799, %v1815
        %v1818 = vor.u32 %v1816, %v1817
        %v1819 = vsub.s32 4294967266, %v1814
        %v1820 = vadd.s32 %v1819, 127
        %v1821 = vshll.u32 %v1820, 23
        %v1822 = vor.u32 4788187, %v1821
        %v1823 = vand.u32 2147483647, %v1822
        %v1825 = vcvt.s32.f32 %v1818
        %v1826 = vmul.f32 %v1825, %v1823
        %v1827 = vxor.u32 %v1826, 2147483648
        %v1828 = vsel %vm1707, %v1827, %v1826
        %v1829 = vsub.s32 4, %v1805
        %v1830 = vsel %vm1707, %v1829, %v1805
        %v1831 = vsel %vm1706, %v779, %v1828
        %v1832 = vsel %vm1706, 0, %v1830
        %v1833 = vmul.f32 %v1831, %v1831
        %v1834 = vmul.f32 %v1833, -0.001358992
        %v1835 = vadd.f32 %v1834, 0.041655596
        %v1836 = vmul.f32 %v1833, %v1835
        %v1837 = vadd.f32 %v1836, -0.4999988
        %v1838 = vmul.f32 %v1833, %v1837
        %v1839 = vadd.f32 1.0, %v1838
        %v1840 = vmul.f32 %v1831, %v1831
        %v1841 = vmul.f32 %v1840, -0.00019511016
        %v1842 = vadd.f32 %v1841, 0.008332121
        %v1843 = vmul.f32 %v1840, %v1842
        %v1844 = vadd.f32 %v1843, -0.16666654
        %v1845 = vmul.f32 %v1840, %v1844
        %v1846 = vadd.f32 %v1845, 1.0
        %v1847 = vmul.f32 %v1846, %v1831
        %vm1848 = vweird.f32 %v779
        %v1849 = vand.u32 %v1832, 3
        %vm1850 = vcmp.lt.s32.totalorder %v1849, 2
        %vm1851 = vcmp.eq.s32.totalorder %v1849, 0
        %v1852 = vxor.u32 %v1847, 2147483648
        %v1853 = vsel %vm1851, %v1839, %v1852
        %vm1854 = vcmp.eq.s32.totalorder %v1849, 2
        %v1855 = vxor.u32 %v1839, 2147483648
        %v1856 = vsel %vm1854, %v1855, %v1847
        %v1857 = vsel %vm1850, %v1853, %v1856
        %v1858 = vsel %vm1848, nan, %v1857
        %v1859 = vand.u32 2147483647, %v780
        %vm1860 = vcmp.le.f32.partialorder %v1859, 0.7853982
        %vm1861 = vcmp.lt.s32.totalorder %v780, 0
        %v1862 = vand.u32 %v780, 2139095040
        %v1863 = vshrl.u32 %v1862, 23
        %v1864 = vsub.s32 %v1863, 127
        %v1865 = vand.u32 2147483647, %v780
        %v1866 = vand.u32 %v1865, 8388607
        %v1867 = vor.u32 %v1866, 8388608
        %v1868 = vsub.s32 0, %v1867
        %v1869 = vadd.s32 %v1864, 1
        %vm1870 = vcmp.gt.s32.totalorder %v1869, 0
        %v1871 = vsel %vm1870, %v1869, 0
        %v1872 = vshrl.u32 %v1871, 5
        %v1873 = vand.u32 %v1871, 31
        %v1874 = vsub.s32 32, %v1873
        %v1875 = vshrl.u32 683565275, %v1874
        %v1876 = vshll.u32 683565275, %v1873
        %v1877 = vshrl.u32 2475754826, %v1874
        %v1878 = vor.u32 %v1876, %v1877
        %v1879 = vshll.u32 2475754826, %v1873
        %v1880 = vshrl.u32 2131351028, %v1874
        %v1881 = vor.u32 %v1879, %v1880
        %v1882 = vshll.u32 2131351028, %v1873
        %v1883 = vshrl.u32 2102212464, %v1874
        %v1884 = vor.u32 %v1882, %v1883
        %v1885 = vshll.u32 2102212464, %v1873
        %v1886 = vshrl.u32 920167782, %v1874
        %v1887 = vor.u32 %v1885, %v1886
        %v1888 = vshll.u32 920167782, %v1873
        %v1889 = vshrl.u32 1326507024, %v1874
        %v1890 = vor.u32 %v1888, %v1889
        %vm1891 = vcmp.lt.s32.totalorder %v1872, 1
        %vm1892 = vcmp.lt.s32.totalorder %v1872, 2
        %vm1893 = vcmp.lt.s32.totalorder %v1872, 3
        %vm1894 = vcmp.lt.s32.totalorder %v1872, 4
        %v1895 = vsel %vm1891, %v1875, %v1878
        %v1896 = vsel %vm1894, %v1884, 2102212464
        %v1897 = vsel %vm1893, %v1881, %v1896
        %v1898 = vsel %vm1892, %v1895, %v1897
        %v1899 = vsel %vm1891, %v1878, %v1881
        %v1900 = vsel %vm1894, %v1887, 920167782
        %v1901 = vsel %vm1893, %v1884, %v1900
        %v1902 = vsel %vm1892, %v1899, %v1901
        %v1903 = vsel %vm1891, %v1881, %v1884
        %v1904 = vsel %vm1894, %v1890, 1326507024
        %v1905 = vsel %vm1893, %v1887, %v1904
        %v1906 = vsel %vm1892, %v1903, %v1905
        %v1907 = vshll.u32 %v1867, 8
        %v1908 = vand.u32 %v1907, 65535
        %v1909 = vshrl.u32 %v1907, 16
        %v1910 = vand.u32 %v1906, 65535
        %v1911 = vshrl.u32 %v1906, 16
        %v1912 = vmul.u32 %v1908, %v1910
        %v1913 = vmul.u32 %v1908, %v1911
        %v1914 = vmul.u32 %v1909, %v1910
        %v1915 = vmul.u32 %v1909, %v1911
        %v1916 = vshll.u32 %v1913, 16
        %v1917 = vshrl.u32 %v1913, 16
        %v1918 = vshll.u32 %v1914, 16
        %v1919 = vshrl.u32 %v1914, 16
        %vm1920 = vc.u32 %v1912, %v1916
        %v1921 = vsel %vm1920, 1, 0
        %v1922 = vadd.s32 %v1912, %v1916
        %v1923 = vadd.s32 %v1915, %v1921
        %vm1924 = vc.u32 %v1922, %v1918
        %v1925 = vsel %vm1924, 1, 0
        %v1926 = vadd.s32 %v1922, %v1918
        %v1927 = vadd.s32 %v1923, %v1925
        %v1928 = vadd.s32 %v1927, %v1917
        %v1929 = vadd.s32 %v1928, %v1919
        %v1930 = vand.u32 %v1907, 65535
        %v1931 = vshrl.u32 %v1907, 16
        %v1932 = vand.u32 %v1902, 65535
        %v1933 = vshrl.u32 %v1902, 16
        %v1934 = vmul.u32 %v1930, %v1932
        %v1935 = vmul.u32 %v1930, %v1933
        %v1936 = vmul.u32 %v1931, %v1932
        %v1937 = vmul.u32 %v1931, %v1933
        %v1938 = vshll.u32 %v1935, 16
        %v1939 = vshrl.u32 %v1935, 16
        %v1940 = vshll.u32 %v1936, 16
        %v1941 = vshrl.u32 %v1936, 16
        %vm1942 = vc.u32 %v1934, %v1938
        %v1943 = vsel %vm1942, 1, 0
        %v1944 = vadd.s32 %v1934, %v1938
        %v1945 = vadd.s32 %v1937, %v1943
        %vm1946 = vc.u32 %v1944, %v1940
        %v1947 = vsel %vm1946, 1, 0
        %v1948 = vadd.s32 %v1944, %v1940
        %v1949 = vadd.s32 %v1945, %v1947
        %v1950 = vadd.s32 %v1949, %v1939
        %v1951 = vadd.s32 %v1950, %v1941
        %v1952 = vmul.u32 %v1907, %v1898
        %v1953 = vadd.s32 %v1929, %v1948
        %vm1954 = vc.u32 %v1929, %v1948
        %v1955 = vadd.s32 %v1951, 1
        %v1956 = vsel %vm1954, %v1955, %v1951
        %v1957 = vadd.s32 %v1952, %v1956
        %v1958 = vadd.s32 %v1957, 536870912
        %v1959 = vshrl.u32 %v1958, 30
        %v1960 = vshll.u32 %v1959, 30
        %v1961 = vsub.s32 %v1957, %v1960
        %vm1962 = vcmp.lt.s32.totalorder %v1961, 0
        %v1963 = vsub.s32 0, %v1961
        %v1964 = vsel %vm1962, %v1963, %v1961
        %v1965 = vclz %v1964
        %v1966 = vsub.s32 %v1965, 2
        %vm1967 = vcmp.gt.s32.totalorder 0, %v1966
        %v1968 = vsel %vm1967, 0, %v1966
        %v1969 = vsub.s32 32, %v1968
        %v1970 = vshll.u32 %v1961, %v1968
        %v1971 = vshrl.u32 %v1953, %v1969
        %v1972 = vor.u32 %v1970, %v1971
        %v1973 = vsub.s32 4294967266, %v1968
        %v1974 = vadd.s32 %v1973, 127
        %v1975 = vshll.u32 %v1974, 23
        %v1976 = vor.u32 4788187, %v1975
        %v1977 = vand.u32 2147483647, %v1976
        %v1979 = vcvt.s32.f32 %v1972
        %v1980 = vmul.f32 %v1979, %v1977
        %v1981 = vxor.u32 %v1980, 2147483648
        %v1982 = vsel %vm1861, %v1981, %v1980
        %v1983 = vsub.s32 4, %v1959
        %v1984 = vsel %vm1861, %v1983, %v1959
        %v1985 = vsel %vm1860, %v780, %v1982
        %v1986 = vsel %vm1860, 0, %v1984
        %v1987 = vmul.f32 %v1985, %v1985
        %v1988 = vmul.f32 %v1987, -0.001358992
        %v1989 = vadd.f32 %v1988, 0.041655596
        %v1990 = vmul.f32 %v1987, %v1989
        %v1991 = vadd.f32 %v1990, -0.4999988
        %v1992 = vmul.f32 %v1987, %v1991
        %v1993 = vadd.f32 1.0, %v1992
        %v1994 = vmul.f32 %v1985, %v1985
        %v1995 = vmul.f32 %v1994, -0.00019511016
        %v1996 = vadd.f32 %v1995, 0.008332121
        %v1997 = vmul.f32 %v1994, %v1996
        %v1998 = vadd.f32 %v1997, -0.16666654
        %v1999 = vmul.f32 %v1994, %v1998
        %v2000 = vadd.f32 %v1999, 1.0
        %v2001 = vmul.f32 %v2000, %v1985
        %vm2002 = vweird.f32 %v780
        %v2003 = vand.u32 %v1986, 3
        %vm2004 = vcmp.lt.s32.totalorder %v2003, 2
        %vm2005 = vcmp.eq.s32.totalorder %v2003, 0
        %v2006 = vxor.u32 %v2001, 2147483648
        %v2007 = vsel %vm2005, %v1993, %v2006
        %vm2008 = vcmp.eq.s32.totalorder %v2003, 2
        %v2009 = vxor.u32 %v1993, 2147483648
        %v2010 = vsel %vm2008, %v2009, %v2001
        %v2011 = vsel %vm2004, %v2007, %v2010
        %v2012 = vsel %vm2002, nan, %v2011
        %v2013 = vmul.f32 %v688, %v934
        %v2014 = vmul.f32 %v700, %v1088
        %v2015 = vmul.f32 %v712, %v1242
        %v2016 = vmul.f32 %v724, %v1396
        %v2017 = vmul.f32 %v736, %v1550
        %v2018 = vmul.f32 %v748, %v1704
        %v2019 = vmul.f32 %v760, %v1858
        %v2020 = vmul.f32 %v772, %v2012
        %v2021 = vand.u32 2147483647, %v773
        %vm2022 = vcmp.le.f32.partialorder %v2021, 0.7853982
        %vm2023 = vcmp.lt.s32.totalorder %v773, 0
        %v2024 = vand.u32 %v773, 2139095040
        %v2025 = vshrl.u32 %v2024, 23
        %v2026 = vsub.s32 %v2025, 127
        %v2027 = vand.u32 2147483647, %v773
        %v2028 = vand.u32 %v2027, 8388607
        %v2029 = vor.u32 %v2028, 8388608
        %v2030 = vsub.s32 0, %v2029
        %v2031 = vadd.s32 %v2026, 1
        %vm2032 = vcmp.gt.s32.totalorder %v2031, 0
        %v2033 = vsel %vm2032, %v2031, 0
        %v2034 = vshrl.u32 %v2033, 5
        %v2035 = vand.u32 %v2033, 31
        %v2036 = vsub.s32 32, %v2035
        %v2037 = vshrl.u32 683565275, %v2036
        %v2038 = vshll.u32 683565275, %v2035
        %v2039 = vshrl.u32 2475754826, %v2036
        %v2040 = vor.u32 %v2038, %v2039
        %v2041 = vshll.u32 2475754826, %v2035
        %v2042 = vshrl.u32 2131351028, %v2036
        %v2043 = vor.u32 %v2041, %v2042
        %v2044 = vshll.u32 2131351028, %v2035
        %v2045 = vshrl.u32 2102212464, %v2036
        %v2046 = vor.u32 %v2044, %v2045
        %v2047 = vshll.u32 2102212464, %v2035
        %v2048 = vshrl.u32 920167782, %v2036
        %v2049 = vor.u32 %v2047, %v2048
        %v2050 = vshll.u32 920167782, %v2035
        %v2051 = vshrl.u32 1326507024, %v2036
        %v2052 = vor.u32 %v2050, %v2051
        %vm2053 = vcmp.lt.s32.totalorder %v2034, 1
        %vm2054 = vcmp.lt.s32.totalorder %v2034, 2
        %vm2055 = vcmp.lt.s32.totalorder %v2034, 3
        %vm2056 = vcmp.lt.s32.totalorder %v2034, 4
        %v2057 = vsel %vm2053, %v2037, %v2040
        %v2058 = vsel %vm2056, %v2046, 2102212464
        %v2059 = vsel %vm2055, %v2043, %v2058
        %v2060 = vsel %vm2054, %v2057, %v2059
        %v2061 = vsel %vm2053, %v2040, %v2043
        %v2062 = vsel %vm2056, %v2049, 920167782
        %v2063 = vsel %vm2055, %v2046, %v2062
        %v2064 = vsel %vm2054, %v2061, %v2063
        %v2065 = vsel %vm2053, %v2043, %v2046
        %v2066 = vsel %vm2056, %v2052, 1326507024
        %v2067 = vsel %vm2055, %v2049, %v2066
        %v2068 = vsel %vm2054, %v2065, %v2067
        %v2069 = vshll.u32 %v2029, 8
        %v2070 = vand.u32 %v2069, 65535
        %v2071 = vshrl.u32 %v2069, 16
        %v2072 = vand.u32 %v2068, 65535
        %v2073 = vshrl.u32 %v2068, 16
        %v2074 = vmul.u32 %v2070, %v2072
        %v2075 = vmul.u32 %v2070, %v2073
        %v2076 = vmul.u32 %v2071, %v2072
        %v2077 = vmul.u32 %v2071, %v2073
        %v2078 = vshll.u32 %v2075, 16
        %v2079 = vshrl.u32 %v2075, 16
        %v2080 = vshll.u32 %v2076, 16
        %v2081 = vshrl.u32 %v2076, 16
        %vm2082 = vc.u32 %v2074, %v2078
        %v2083 = vsel %vm2082, 1, 0
        %v2084 = vadd.s32 %v2074, %v2078
        %v2085 = vadd.s32 %v2077, %v2083
        %vm2086 = vc.u32 %v2084, %v2080
        %v2087 = vsel %vm2086, 1, 0
        %v2088 = vadd.s32 %v2084, %v2080
        %v2089 = vadd.s32 %v2085, %v2087
        %v2090 = vadd.s32 %v2089, %v2079
        %v2091 = vadd.s32 %v2090, %v2081
        %v2092 = vand.u32 %v2069, 65535
        %v2093 = vshrl.u32 %v2069, 16
        %v2094 = vand.u32 %v2064, 65535
        %v2095 = vshrl.u32 %v2064, 16
        %v2096 = vmul.u32 %v2092, %v2094
        %v2097 = vmul.u32 %v2092, %v2095
        %v2098 = vmul.u32 %v2093, %v2094
        %v2099 = vmul.u32 %v2093, %v2095
        %v2100 = vshll.u32 %v2097, 16
        %v2101 = vshrl.u32 %v2097, 16
        %v2102 = vshll.u32 %v2098, 16
        %v2103 = vshrl.u32 %v2098, 16
        %vm2104 = vc.u32 %v2096, %v2100
        %v2105 = vsel %vm2104, 1, 0
        %v2106 = vadd.s32 %v2096, %v2100
        %v2107 = vadd.s32 %v2099, %v2105
        %vm2108 = vc.u32 %v2106, %v2102
        %v2109 = vsel %vm2108, 1, 0
        %v2110 = vadd.s32 %v2106, %v2102
        %v2111 = vadd.s32 %v2107, %v2109
        %v2112 = vadd.s32 %v2111, %v2101
        %v2113 = vadd.s32 %v2112, %v2103
        %v2114 = vmul.u32 %v2069, %v2060
        %v2115 = vadd.s32 %v2091, %v2110
        %vm2116 = vc.u32 %v2091, %v2110
        %v2117 = vadd.s32 %v2113, 1
        %v2118 = vsel %vm2116, %v2117, %v2113
        %v2119 = vadd.s32 %v2114, %v2118
        %v2120 = vadd.s32 %v2119, 536870912
        %v2121 = vshrl.u32 %v2120, 30
        %v2122 = vshll.u32 %v2121, 30
        %v2123 = vsub.s32 %v2119, %v2122
        %vm2124 = vcmp.lt.s32.totalorder %v2123, 0
        %v2125 = vsub.s32 0, %v2123
        %v2126 = vsel %vm2124, %v2125, %v2123
        %v2127 = vclz %v2126
        %v2128 = vsub.s32 %v2127, 2
        %vm2129 = vcmp.gt.s32.totalorder 0, %v2128
        %v2130 = vsel %vm2129, 0, %v2128
        %v2131 = vsub.s32 32, %v2130
        %v2132 = vshll.u32 %v2123, %v2130
        %v2133 = vshrl.u32 %v2115, %v2131
        %v2134 = vor.u32 %v2132, %v2133
        %v2135 = vsub.s32 4294967266, %v2130
        %v2136 = vadd.s32 %v2135, 127
        %v2137 = vshll.u32 %v2136, 23
        %v2138 = vor.u32 4788187, %v2137
        %v2139 = vand.u32 2147483647, %v2138
        %v2141 = vcvt.s32.f32 %v2134
        %v2142 = vmul.f32 %v2141, %v2139
        %v2143 = vxor.u32 %v2142, 2147483648
        %v2144 = vsel %vm2023, %v2143, %v2142
        %v2145 = vsub.s32 4, %v2121
        %v2146 = vsel %vm2023, %v2145, %v2121
        %v2147 = vsel %vm2022, %v773, %v2144
        %v2148 = vsel %vm2022, 0, %v2146
        %v2149 = vmul.f32 %v2147, %v2147
        %v2150 = vmul.f32 %v2149, -0.001358992
        %v2151 = vadd.f32 %v2150, 0.041655596
        %v2152 = vmul.f32 %v2149, %v2151
        %v2153 = vadd.f32 %v2152, -0.4999988
        %v2154 = vmul.f32 %v2149, %v2153
        %v2155 = vadd.f32 1.0, %v2154
        %v2156 = vmul.f32 %v2147, %v2147
        %v2157 = vmul.f32 %v2156, -0.00019511016
        %v2158 = vadd.f32 %v2157, 0.008332121
        %v2159 = vmul.f32 %v2156, %v2158
        %v2160 = vadd.f32 %v2159, -0.16666654
        %v2161 = vmul.f32 %v2156, %v2160
        %v2162 = vadd.f32 %v2161, 1.0
        %v2163 = vmul.f32 %v2162, %v2147
        %vm2164 = vweird.f32 %v773
        %v2165 = vadd.s32 %v2148, 3
        %v2166 = vand.u32 %v2165, 3
        %vm2167 = vcmp.lt.s32.totalorder %v2166, 2
        %vm2168 = vcmp.eq.s32.totalorder %v2166, 0
        %v2169 = vxor.u32 %v2163, 2147483648
        %v2170 = vsel %vm2168, %v2155, %v2169
        %vm2171 = vcmp.eq.s32.totalorder %v2166, 2
        %v2172 = vxor.u32 %v2155, 2147483648
        %v2173 = vsel %vm2171, %v2172, %v2163
        %v2174 = vsel %vm2167, %v2170, %v2173
        %v2175 = vsel %vm2164, nan, %v2174
        %v2176 = vand.u32 2147483647, %v774
        %vm2177 = vcmp.le.f32.partialorder %v2176, 0.7853982
        %vm2178 = vcmp.lt.s32.totalorder %v774, 0
        %v2179 = vand.u32 %v774, 2139095040
        %v2180 = vshrl.u32 %v2179, 23
        %v2181 = vsub.s32 %v2180, 127
        %v2182 = vand.u32 2147483647, %v774
        %v2183 = vand.u32 %v2182, 8388607
        %v2184 = vor.u32 %v2183, 8388608
        %v2185 = vsub.s32 0, %v2184
        %v2186 = vadd.s32 %v2181, 1
        %vm2187 = vcmp.gt.s32.totalorder %v2186, 0
        %v2188 = vsel %vm2187, %v2186, 0
        %v2189 = vshrl.u32 %v2188, 5
        %v2190 = vand.u32 %v2188, 31
        %v2191 = vsub.s32 32, %v2190
        %v2192 = vshrl.u32 683565275, %v2191
        %v2193 = vshll.u32 683565275, %v2190
        %v2194 = vshrl.u32 2475754826, %v2191
        %v2195 = vor.u32 %v2193, %v2194
        %v2196 = vshll.u32 2475754826, %v2190
        %v2197 = vshrl.u32 2131351028, %v2191
        %v2198 = vor.u32 %v2196, %v2197
        %v2199 = vshll.u32 2131351028, %v2190
        %v2200 = vshrl.u32 2102212464, %v2191
        %v2201 = vor.u32 %v2199, %v2200
        %v2202 = vshll.u32 2102212464, %v2190
        %v2203 = vshrl.u32 920167782, %v2191
        %v2204 = vor.u32 %v2202, %v2203
        %v2205 = vshll.u32 920167782, %v2190
        %v2206 = vshrl.u32 1326507024, %v2191
        %v2207 = vor.u32 %v2205, %v2206
        %vm2208 = vcmp.lt.s32.totalorder %v2189, 1
        %vm2209 = vcmp.lt.s32.totalorder %v2189, 2
        %vm2210 = vcmp.lt.s32.totalorder %v2189, 3
        %vm2211 = vcmp.lt.s32.totalorder %v2189, 4
        %v2212 = vsel %vm2208, %v2192, %v2195
        %v2213 = vsel %vm2211, %v2201, 2102212464
        %v2214 = vsel %vm2210, %v2198, %v2213
        %v2215 = vsel %vm2209, %v2212, %v2214
        %v2216 = vsel %vm2208, %v2195, %v2198
        %v2217 = vsel %vm2211, %v2204, 920167782
        %v2218 = vsel %vm2210, %v2201, %v2217
        %v2219 = vsel %vm2209, %v2216, %v2218
        %v2220 = vsel %vm2208, %v2198, %v2201
        %v2221 = vsel %vm2211, %v2207, 1326507024
        %v2222 = vsel %vm2210, %v2204, %v2221
        %v2223 = vsel %vm2209, %v2220, %v2222
        %v2224 = vshll.u32 %v2184, 8
        %v2225 = vand.u32 %v2224, 65535
        %v2226 = vshrl.u32 %v2224, 16
        %v2227 = vand.u32 %v2223, 65535
        %v2228 = vshrl.u32 %v2223, 16
        %v2229 = vmul.u32 %v2225, %v2227
        %v2230 = vmul.u32 %v2225, %v2228
        %v2231 = vmul.u32 %v2226, %v2227
        %v2232 = vmul.u32 %v2226, %v2228
        %v2233 = vshll.u32 %v2230, 16
        %v2234 = vshrl.u32 %v2230, 16
        %v2235 = vshll.u32 %v2231, 16
        %v2236 = vshrl.u32 %v2231, 16
        %vm2237 = vc.u32 %v2229, %v2233
        %v2238 = vsel %vm2237, 1, 0
        %v2239 = vadd.s32 %v2229, %v2233
        %v2240 = vadd.s32 %v2232, %v2238
        %vm2241 = vc.u32 %v2239, %v2235
        %v2242 = vsel %vm2241, 1, 0
        %v2243 = vadd.s32 %v2239, %v2235
        %v2244 = vadd.s32 %v2240, %v2242
        %v2245 = vadd.s32 %v2244, %v2234
        %v2246 = vadd.s32 %v2245, %v2236
        %v2247 = vand.u32 %v2224, 65535
        %v2248 = vshrl.u32 %v2224, 16
        %v2249 = vand.u32 %v2219, 65535
        %v2250 = vshrl.u32 %v2219, 16
        %v2251 = vmul.u32 %v2247, %v2249
        %v2252 = vmul.u32 %v2247, %v2250
        %v2253 = vmul.u32 %v2248, %v2249
        %v2254 = vmul.u32 %v2248, %v2250
        %v2255 = vshll.u32 %v2252, 16
        %v2256 = vshrl.u32 %v2252, 16
        %v2257 = vshll.u32 %v2253, 16
        %v2258 = vshrl.u32 %v2253, 16
        %vm2259 = vc.u32 %v2251, %v2255
        %v2260 = vsel %vm2259, 1, 0
        %v2261 = vadd.s32 %v2251, %v2255
        %v2262 = vadd.s32 %v2254, %v2260
        %vm2263 = vc.u32 %v2261, %v2257
        %v2264 = vsel %vm2263, 1, 0
        %v2265 = vadd.s32 %v2261, %v2257
        %v2266 = vadd.s32 %v2262, %v2264
        %v2267 = vadd.s32 %v2266, %v2256
        %v2268 = vadd.s32 %v2267, %v2258
        %v2269 = vmul.u32 %v2224, %v2215
        %v2270 = vadd.s32 %v2246, %v2265
        %vm2271 = vc.u32 %v2246, %v2265
        %v2272 = vadd.s32 %v2268, 1
        %v2273 = vsel %vm2271, %v2272, %v2268
        %v2274 = vadd.s32 %v2269, %v2273
        %v2275 = vadd.s32 %v2274, 536870912
        %v2276 = vshrl.u32 %v2275, 30
        %v2277 = vshll.u32 %v2276, 30
        %v2278 = vsub.s32 %v2274, %v2277
        %vm2279 = vcmp.lt.s32.totalorder %v2278, 0
        %v2280 = vsub.s32 0, %v2278
        %v2281 = vsel %vm2279, %v2280, %v2278
        %v2282 = vclz %v2281
        %v2283 = vsub.s32 %v2282, 2
        %vm2284 = vcmp.gt.s32.totalorder 0, %v2283
        %v2285 = vsel %vm2284, 0, %v2283
        %v2286 = vsub.s32 32, %v2285
        %v2287 = vshll.u32 %v2278, %v2285
        %v2288 = vshrl.u32 %v2270, %v2286
        %v2289 = vor.u32 %v2287, %v2288
        %v2290 = vsub.s32 4294967266, %v2285
        %v2291 = vadd.s32 %v2290, 127
        %v2292 = vshll.u32 %v2291, 23
        %v2293 = vor.u32 4788187, %v2292
        %v2294 = vand.u32 2147483647, %v2293
        %v2296 = vcvt.s32.f32 %v2289
        %v2297 = vmul.f32 %v2296, %v2294
        %v2298 = vxor.u32 %v2297, 2147483648
        %v2299 = vsel %vm2178, %v2298, %v2297
        %v2300 = vsub.s32 4, %v2276
        %v2301 = vsel %vm2178, %v2300, %v2276
        %v2302 = vsel %vm2177, %v774, %v2299
        %v2303 = vsel %vm2177, 0, %v2301
        %v2304 = vmul.f32 %v2302, %v2302
        %v2305 = vmul.f32 %v2304, -0.001358992
        %v2306 = vadd.f32 %v2305, 0.041655596
        %v2307 = vmul.f32 %v2304, %v2306
        %v2308 = vadd.f32 %v2307, -0.4999988
        %v2309 = vmul.f32 %v2304, %v2308
        %v2310 = vadd.f32 1.0, %v2309
        %v2311 = vmul.f32 %v2302, %v2302
        %v2312 = vmul.f32 %v2311, -0.00019511016
        %v2313 = vadd.f32 %v2312, 0.008332121
        %v2314 = vmul.f32 %v2311, %v2313
        %v2315 = vadd.f32 %v2314, -0.16666654
        %v2316 = vmul.f32 %v2311, %v2315
        %v2317 = vadd.f32 %v2316, 1.0
        %v2318 = vmul.f32 %v2317, %v2302
        %vm2319 = vweird.f32 %v774
        %v2320 = vadd.s32 %v2303, 3
        %v2321 = vand.u32 %v2320, 3
        %vm2322 = vcmp.lt.s32.totalorder %v2321, 2
        %vm2323 = vcmp.eq.s32.totalorder %v2321, 0
        %v2324 = vxor.u32 %v2318, 2147483648
        %v2325 = vsel %vm2323, %v2310, %v2324
        %vm2326 = vcmp.eq.s32.totalorder %v2321, 2
        %v2327 = vxor.u32 %v2310, 2147483648
        %v2328 = vsel %vm2326, %v2327, %v2318
        %v2329 = vsel %vm2322, %v2325, %v2328
        %v2330 = vsel %vm2319, nan, %v2329
        %v2331 = vand.u32 2147483647, %v775
        %vm2332 = vcmp.le.f32.partialorder %v2331, 0.7853982
        %vm2333 = vcmp.lt.s32.totalorder %v775, 0
        %v2334 = vand.u32 %v775, 2139095040
        %v2335 = vshrl.u32 %v2334, 23
        %v2336 = vsub.s32 %v2335, 127
        %v2337 = vand.u32 2147483647, %v775
        %v2338 = vand.u32 %v2337, 8388607
        %v2339 = vor.u32 %v2338, 8388608
        %v2340 = vsub.s32 0, %v2339
        %v2341 = vadd.s32 %v2336, 1
        %vm2342 = vcmp.gt.s32.totalorder %v2341, 0
        %v2343 = vsel %vm2342, %v2341, 0
        %v2344 = vshrl.u32 %v2343, 5
        %v2345 = vand.u32 %v2343, 31
        %v2346 = vsub.s32 32, %v2345
        %v2347 = vshrl.u32 683565275, %v2346
        %v2348 = vshll.u32 683565275, %v2345
        %v2349 = vshrl.u32 2475754826, %v2346
        %v2350 = vor.u32 %v2348, %v2349
        %v2351 = vshll.u32 2475754826, %v2345
        %v2352 = vshrl.u32 2131351028, %v2346
        %v2353 = vor.u32 %v2351, %v2352
        %v2354 = vshll.u32 2131351028, %v2345
        %v2355 = vshrl.u32 2102212464, %v2346
        %v2356 = vor.u32 %v2354, %v2355
        %v2357 = vshll.u32 2102212464, %v2345
        %v2358 = vshrl.u32 920167782, %v2346
        %v2359 = vor.u32 %v2357, %v2358
        %v2360 = vshll.u32 920167782, %v2345
        %v2361 = vshrl.u32 1326507024, %v2346
        %v2362 = vor.u32 %v2360, %v2361
        %vm2363 = vcmp.lt.s32.totalorder %v2344, 1
        %vm2364 = vcmp.lt.s32.totalorder %v2344, 2
        %vm2365 = vcmp.lt.s32.totalorder %v2344, 3
        %vm2366 = vcmp.lt.s32.totalorder %v2344, 4
        %v2367 = vsel %vm2363, %v2347, %v2350
        %v2368 = vsel %vm2366, %v2356, 2102212464
        %v2369 = vsel %vm2365, %v2353, %v2368
        %v2370 = vsel %vm2364, %v2367, %v2369
        %v2371 = vsel %vm2363, %v2350, %v2353
        %v2372 = vsel %vm2366, %v2359, 920167782
        %v2373 = vsel %vm2365, %v2356, %v2372
        %v2374 = vsel %vm2364, %v2371, %v2373
        %v2375 = vsel %vm2363, %v2353, %v2356
        %v2376 = vsel %vm2366, %v2362, 1326507024
        %v2377 = vsel %vm2365, %v2359, %v2376
        %v2378 = vsel %vm2364, %v2375, %v2377
        %v2379 = vshll.u32 %v2339, 8
        %v2380 = vand.u32 %v2379, 65535
        %v2381 = vshrl.u32 %v2379, 16
        %v2382 = vand.u32 %v2378, 65535
        %v2383 = vshrl.u32 %v2378, 16
        %v2384 = vmul.u32 %v2380, %v2382
        %v2385 = vmul.u32 %v2380, %v2383
        %v2386 = vmul.u32 %v2381, %v2382
        %v2387 = vmul.u32 %v2381, %v2383
        %v2388 = vshll.u32 %v2385, 16
        %v2389 = vshrl.u32 %v2385, 16
        %v2390 = vshll.u32 %v2386, 16
        %v2391 = vshrl.u32 %v2386, 16
        %vm2392 = vc.u32 %v2384, %v2388
        %v2393 = vsel %vm2392, 1, 0
        %v2394 = vadd.s32 %v2384, %v2388
        %v2395 = vadd.s32 %v2387, %v2393
        %vm2396 = vc.u32 %v2394, %v2390
        %v2397 = vsel %vm2396, 1, 0
        %v2398 = vadd.s32 %v2394, %v2390
        %v2399 = vadd.s32 %v2395, %v2397
        %v2400 = vadd.s32 %v2399, %v2389
        %v2401 = vadd.s32 %v2400, %v2391
        %v2402 = vand.u32 %v2379, 65535
        %v2403 = vshrl.u32 %v2379, 16
        %v2404 = vand.u32 %v2374, 65535
        %v2405 = vshrl.u32 %v2374, 16
        %v2406 = vmul.u32 %v2402, %v2404
        %v2407 = vmul.u32 %v2402, %v2405
        %v2408 = vmul.u32 %v2403, %v2404
        %v2409 = vmul.u32 %v2403, %v2405
        %v2410 = vshll.u32 %v2407, 16
        %v2411 = vshrl.u32 %v2407, 16
        %v2412 = vshll.u32 %v2408, 16
        %v2413 = vshrl.u32 %v2408, 16
        %vm2414 = vc.u32 %v2406, %v2410
        %v2415 = vsel %vm2414, 1, 0
        %v2416 = vadd.s32 %v2406, %v2410
        %v2417 = vadd.s32 %v2409, %v2415
        %vm2418 = vc.u32 %v2416, %v2412
        %v2419 = vsel %vm2418, 1, 0
        %v2420 = vadd.s32 %v2416, %v2412
        %v2421 = vadd.s32 %v2417, %v2419
        %v2422 = vadd.s32 %v2421, %v2411
        %v2423 = vadd.s32 %v2422, %v2413
        %v2424 = vmul.u32 %v2379, %v2370
        %v2425 = vadd.s32 %v2401, %v2420
        %vm2426 = vc.u32 %v2401, %v2420
        %v2427 = vadd.s32 %v2423, 1
        %v2428 = vsel %vm2426, %v2427, %v2423
        %v2429 = vadd.s32 %v2424, %v2428
        %v2430 = vadd.s32 %v2429, 536870912
        %v2431 = vshrl.u32 %v2430, 30
        %v2432 = vshll.u32 %v2431, 30
        %v2433 = vsub.s32 %v2429, %v2432
        %vm2434 = vcmp.lt.s32.totalorder %v2433, 0
        %v2435 = vsub.s32 0, %v2433
        %v2436 = vsel %vm2434, %v2435, %v2433
        %v2437 = vclz %v2436
        %v2438 = vsub.s32 %v2437, 2
        %vm2439 = vcmp.gt.s32.totalorder 0, %v2438
        %v2440 = vsel %vm2439, 0, %v2438
        %v2441 = vsub.s32 32, %v2440
        %v2442 = vshll.u32 %v2433, %v2440
        %v2443 = vshrl.u32 %v2425, %v2441
        %v2444 = vor.u32 %v2442, %v2443
        %v2445 = vsub.s32 4294967266, %v2440
        %v2446 = vadd.s32 %v2445, 127
        %v2447 = vshll.u32 %v2446, 23
        %v2448 = vor.u32 4788187, %v2447
        %v2449 = vand.u32 2147483647, %v2448
        %v2451 = vcvt.s32.f32 %v2444
        %v2452 = vmul.f32 %v2451, %v2449
        %v2453 = vxor.u32 %v2452, 2147483648
        %v2454 = vsel %vm2333, %v2453, %v2452
        %v2455 = vsub.s32 4, %v2431
        %v2456 = vsel %vm2333, %v2455, %v2431
        %v2457 = vsel %vm2332, %v775, %v2454
        %v2458 = vsel %vm2332, 0, %v2456
        %v2459 = vmul.f32 %v2457, %v2457
        %v2460 = vmul.f32 %v2459, -0.001358992
        %v2461 = vadd.f32 %v2460, 0.041655596
        %v2462 = vmul.f32 %v2459, %v2461
        %v2463 = vadd.f32 %v2462, -0.4999988
        %v2464 = vmul.f32 %v2459, %v2463
        %v2465 = vadd.f32 1.0, %v2464
        %v2466 = vmul.f32 %v2457, %v2457
        %v2467 = vmul.f32 %v2466, -0.00019511016
        %v2468 = vadd.f32 %v2467, 0.008332121
        %v2469 = vmul.f32 %v2466, %v2468
        %v2470 = vadd.f32 %v2469, -0.16666654
        %v2471 = vmul.f32 %v2466, %v2470
        %v2472 = vadd.f32 %v2471, 1.0
        %v2473 = vmul.f32 %v2472, %v2457
        %vm2474 = vweird.f32 %v775
        %v2475 = vadd.s32 %v2458, 3
        %v2476 = vand.u32 %v2475, 3
        %vm2477 = vcmp.lt.s32.totalorder %v2476, 2
        %vm2478 = vcmp.eq.s32.totalorder %v2476, 0
        %v2479 = vxor.u32 %v2473, 2147483648
        %v2480 = vsel %vm2478, %v2465, %v2479
        %vm2481 = vcmp.eq.s32.totalorder %v2476, 2
        %v2482 = vxor.u32 %v2465, 2147483648
        %v2483 = vsel %vm2481, %v2482, %v2473
        %v2484 = vsel %vm2477, %v2480, %v2483
        %v2485 = vsel %vm2474, nan, %v2484
        %v2486 = vand.u32 2147483647, %v776
        %vm2487 = vcmp.le.f32.partialorder %v2486, 0.7853982
        %vm2488 = vcmp.lt.s32.totalorder %v776, 0
        %v2489 = vand.u32 %v776, 2139095040
        %v2490 = vshrl.u32 %v2489, 23
        %v2491 = vsub.s32 %v2490, 127
        %v2492 = vand.u32 2147483647, %v776
        %v2493 = vand.u32 %v2492, 8388607
        %v2494 = vor.u32 %v2493, 8388608
        %v2495 = vsub.s32 0, %v2494
        %v2496 = vadd.s32 %v2491, 1
        %vm2497 = vcmp.gt.s32.totalorder %v2496, 0
        %v2498 = vsel %vm2497, %v2496, 0
        %v2499 = vshrl.u32 %v2498, 5
        %v2500 = vand.u32 %v2498, 31
        %v2501 = vsub.s32 32, %v2500
        %v2502 = vshrl.u32 683565275, %v2501
        %v2503 = vshll.u32 683565275, %v2500
        %v2504 = vshrl.u32 2475754826, %v2501
        %v2505 = vor.u32 %v2503, %v2504
        %v2506 = vshll.u32 2475754826, %v2500
        %v2507 = vshrl.u32 2131351028, %v2501
        %v2508 = vor.u32 %v2506, %v2507
        %v2509 = vshll.u32 2131351028, %v2500
        %v2510 = vshrl.u32 2102212464, %v2501
        %v2511 = vor.u32 %v2509, %v2510
        %v2512 = vshll.u32 2102212464, %v2500
        %v2513 = vshrl.u32 920167782, %v2501
        %v2514 = vor.u32 %v2512, %v2513
        %v2515 = vshll.u32 920167782, %v2500
        %v2516 = vshrl.u32 1326507024, %v2501
        %v2517 = vor.u32 %v2515, %v2516
        %vm2518 = vcmp.lt.s32.totalorder %v2499, 1
        %vm2519 = vcmp.lt.s32.totalorder %v2499, 2
        %vm2520 = vcmp.lt.s32.totalorder %v2499, 3
        %vm2521 = vcmp.lt.s32.totalorder %v2499, 4
        %v2522 = vsel %vm2518, %v2502, %v2505
        %v2523 = vsel %vm2521, %v2511, 2102212464
        %v2524 = vsel %vm2520, %v2508, %v2523
        %v2525 = vsel %vm2519, %v2522, %v2524
        %v2526 = vsel %vm2518, %v2505, %v2508
        %v2527 = vsel %vm2521, %v2514, 920167782
        %v2528 = vsel %vm2520, %v2511, %v2527
        %v2529 = vsel %vm2519, %v2526, %v2528
        %v2530 = vsel %vm2518, %v2508, %v2511
        %v2531 = vsel %vm2521, %v2517, 1326507024
        %v2532 = vsel %vm2520, %v2514, %v2531
        %v2533 = vsel %vm2519, %v2530, %v2532
        %v2534 = vshll.u32 %v2494, 8
        %v2535 = vand.u32 %v2534, 65535
        %v2536 = vshrl.u32 %v2534, 16
        %v2537 = vand.u32 %v2533, 65535
        %v2538 = vshrl.u32 %v2533, 16
        %v2539 = vmul.u32 %v2535, %v2537
        %v2540 = vmul.u32 %v2535, %v2538
        %v2541 = vmul.u32 %v2536, %v2537
        %v2542 = vmul.u32 %v2536, %v2538
        %v2543 = vshll.u32 %v2540, 16
        %v2544 = vshrl.u32 %v2540, 16
        %v2545 = vshll.u32 %v2541, 16
        %v2546 = vshrl.u32 %v2541, 16
        %vm2547 = vc.u32 %v2539, %v2543
        %v2548 = vsel %vm2547, 1, 0
        %v2549 = vadd.s32 %v2539, %v2543
        %v2550 = vadd.s32 %v2542, %v2548
        %vm2551 = vc.u32 %v2549, %v2545
        %v2552 = vsel %vm2551, 1, 0
        %v2553 = vadd.s32 %v2549, %v2545
        %v2554 = vadd.s32 %v2550, %v2552
        %v2555 = vadd.s32 %v2554, %v2544
        %v2556 = vadd.s32 %v2555, %v2546
        %v2557 = vand.u32 %v2534, 65535
        %v2558 = vshrl.u32 %v2534, 16
        %v2559 = vand.u32 %v2529, 65535
        %v2560 = vshrl.u32 %v2529, 16
        %v2561 = vmul.u32 %v2557, %v2559
        %v2562 = vmul.u32 %v2557, %v2560
        %v2563 = vmul.u32 %v2558, %v2559
        %v2564 = vmul.u32 %v2558, %v2560
        %v2565 = vshll.u32 %v2562, 16
        %v2566 = vshrl.u32 %v2562, 16
        %v2567 = vshll.u32 %v2563, 16
        %v2568 = vshrl.u32 %v2563, 16
        %vm2569 = vc.u32 %v2561, %v2565
        %v2570 = vsel %vm2569, 1, 0
        %v2571 = vadd.s32 %v2561, %v2565
        %v2572 = vadd.s32 %v2564, %v2570
        %vm2573 = vc.u32 %v2571, %v2567
        %v2574 = vsel %vm2573, 1, 0
        %v2575 = vadd.s32 %v2571, %v2567
        %v2576 = vadd.s32 %v2572, %v2574
        %v2577 = vadd.s32 %v2576, %v2566
        %v2578 = vadd.s32 %v2577, %v2568
        %v2579 = vmul.u32 %v2534, %v2525
        %v2580 = vadd.s32 %v2556, %v2575
        %vm2581 = vc.u32 %v2556, %v2575
        %v2582 = vadd.s32 %v2578, 1
        %v2583 = vsel %vm2581, %v2582, %v2578
        %v2584 = vadd.s32 %v2579, %v2583
        %v2585 = vadd.s32 %v2584, 536870912
        %v2586 = vshrl.u32 %v2585, 30
        %v2587 = vshll.u32 %v2586, 30
        %v2588 = vsub.s32 %v2584, %v2587
        %vm2589 = vcmp.lt.s32.totalorder %v2588, 0
        %v2590 = vsub.s32 0, %v2588
        %v2591 = vsel %vm2589, %v2590, %v2588
        %v2592 = vclz %v2591
        %v2593 = vsub.s32 %v2592, 2
        %vm2594 = vcmp.gt.s32.totalorder 0, %v2593
        %v2595 = vsel %vm2594, 0, %v2593
        %v2596 = vsub.s32 32, %v2595
        %v2597 = vshll.u32 %v2588, %v2595
        %v2598 = vshrl.u32 %v2580, %v2596
        %v2599 = vor.u32 %v2597, %v2598
        %v2600 = vsub.s32 4294967266, %v2595
        %v2601 = vadd.s32 %v2600, 127
        %v2602 = vshll.u32 %v2601, 23
        %v2603 = vor.u32 4788187, %v2602
        %v2604 = vand.u32 2147483647, %v2603
        %v2606 = vcvt.s32.f32 %v2599
        %v2607 = vmul.f32 %v2606, %v2604
        %v2608 = vxor.u32 %v2607, 2147483648
        %v2609 = vsel %vm2488, %v2608, %v2607
        %v2610 = vsub.s32 4, %v2586
        %v2611 = vsel %vm2488, %v2610, %v2586
        %v2612 = vsel %vm2487, %v776, %v2609
        %v2613 = vsel %vm2487, 0, %v2611
        %v2614 = vmul.f32 %v2612, %v2612
        %v2615 = vmul.f32 %v2614, -0.001358992
        %v2616 = vadd.f32 %v2615, 0.041655596
        %v2617 = vmul.f32 %v2614, %v2616
        %v2618 = vadd.f32 %v2617, -0.4999988
        %v2619 = vmul.f32 %v2614, %v2618
        %v2620 = vadd.f32 1.0, %v2619
        %v2621 = vmul.f32 %v2612, %v2612
        %v2622 = vmul.f32 %v2621, -0.00019511016
        %v2623 = vadd.f32 %v2622, 0.008332121
        %v2624 = vmul.f32 %v2621, %v2623
        %v2625 = vadd.f32 %v2624, -0.16666654
        %v2626 = vmul.f32 %v2621, %v2625
        %v2627 = vadd.f32 %v2626, 1.0
        %v2628 = vmul.f32 %v2627, %v2612
        %vm2629 = vweird.f32 %v776
        %v2630 = vadd.s32 %v2613, 3
        %v2631 = vand.u32 %v2630, 3
        %vm2632 = vcmp.lt.s32.totalorder %v2631, 2
        %vm2633 = vcmp.eq.s32.totalorder %v2631, 0
        %v2634 = vxor.u32 %v2628, 2147483648
        %v2635 = vsel %vm2633, %v2620, %v2634
        %vm2636 = vcmp.eq.s32.totalorder %v2631, 2
        %v2637 = vxor.u32 %v2620, 2147483648
        %v2638 = vsel %vm2636, %v2637, %v2628
        %v2639 = vsel %vm2632, %v2635, %v2638
        %v2640 = vsel %vm2629, nan, %v2639
        %v2641 = vand.u32 2147483647, %v777
        %vm2642 = vcmp.le.f32.partialorder %v2641, 0.7853982
        %vm2643 = vcmp.lt.s32.totalorder %v777, 0
        %v2644 = vand.u32 %v777, 2139095040
        %v2645 = vshrl.u32 %v2644, 23
        %v2646 = vsub.s32 %v2645, 127
        %v2647 = vand.u32 2147483647, %v777
        %v2648 = vand.u32 %v2647, 8388607
        %v2649 = vor.u32 %v2648, 8388608
        %v2650 = vsub.s32 0, %v2649
        %v2651 = vadd.s32 %v2646, 1
        %vm2652 = vcmp.gt.s32.totalorder %v2651, 0
        %v2653 = vsel %vm2652, %v2651, 0
        %v2654 = vshrl.u32 %v2653, 5
        %v2655 = vand.u32 %v2653, 31
        %v2656 = vsub.s32 32, %v2655
        %v2657 = vshrl.u32 683565275, %v2656
        %v2658 = vshll.u32 683565275, %v2655
        %v2659 = vshrl.u32 2475754826, %v2656
        %v2660 = vor.u32 %v2658, %v2659
        %v2661 = vshll.u32 2475754826, %v2655
        %v2662 = vshrl.u32 2131351028, %v2656
        %v2663 = vor.u32 %v2661, %v2662
        %v2664 = vshll.u32 2131351028, %v2655
        %v2665 = vshrl.u32 2102212464, %v2656
        %v2666 = vor.u32 %v2664, %v2665
        %v2667 = vshll.u32 2102212464, %v2655
        %v2668 = vshrl.u32 920167782, %v2656
        %v2669 = vor.u32 %v2667, %v2668
        %v2670 = vshll.u32 920167782, %v2655
        %v2671 = vshrl.u32 1326507024, %v2656
        %v2672 = vor.u32 %v2670, %v2671
        %vm2673 = vcmp.lt.s32.totalorder %v2654, 1
        %vm2674 = vcmp.lt.s32.totalorder %v2654, 2
        %vm2675 = vcmp.lt.s32.totalorder %v2654, 3
        %vm2676 = vcmp.lt.s32.totalorder %v2654, 4
        %v2677 = vsel %vm2673, %v2657, %v2660
        %v2678 = vsel %vm2676, %v2666, 2102212464
        %v2679 = vsel %vm2675, %v2663, %v2678
        %v2680 = vsel %vm2674, %v2677, %v2679
        %v2681 = vsel %vm2673, %v2660, %v2663
        %v2682 = vsel %vm2676, %v2669, 920167782
        %v2683 = vsel %vm2675, %v2666, %v2682
        %v2684 = vsel %vm2674, %v2681, %v2683
        %v2685 = vsel %vm2673, %v2663, %v2666
        %v2686 = vsel %vm2676, %v2672, 1326507024
        %v2687 = vsel %vm2675, %v2669, %v2686
        %v2688 = vsel %vm2674, %v2685, %v2687
        %v2689 = vshll.u32 %v2649, 8
        %v2690 = vand.u32 %v2689, 65535
        %v2691 = vshrl.u32 %v2689, 16
        %v2692 = vand.u32 %v2688, 65535
        %v2693 = vshrl.u32 %v2688, 16
        %v2694 = vmul.u32 %v2690, %v2692
        %v2695 = vmul.u32 %v2690, %v2693
        %v2696 = vmul.u32 %v2691, %v2692
        %v2697 = vmul.u32 %v2691, %v2693
        %v2698 = vshll.u32 %v2695, 16
        %v2699 = vshrl.u32 %v2695, 16
        %v2700 = vshll.u32 %v2696, 16
        %v2701 = vshrl.u32 %v2696, 16
        %vm2702 = vc.u32 %v2694, %v2698
        %v2703 = vsel %vm2702, 1, 0
        %v2704 = vadd.s32 %v2694, %v2698
        %v2705 = vadd.s32 %v2697, %v2703
        %vm2706 = vc.u32 %v2704, %v2700
        %v2707 = vsel %vm2706, 1, 0
        %v2708 = vadd.s32 %v2704, %v2700
        %v2709 = vadd.s32 %v2705, %v2707
        %v2710 = vadd.s32 %v2709, %v2699
        %v2711 = vadd.s32 %v2710, %v2701
        %v2712 = vand.u32 %v2689, 65535
        %v2713 = vshrl.u32 %v2689, 16
        %v2714 = vand.u32 %v2684, 65535
        %v2715 = vshrl.u32 %v2684, 16
        %v2716 = vmul.u32 %v2712, %v2714
        %v2717 = vmul.u32 %v2712, %v2715
        %v2718 = vmul.u32 %v2713, %v2714
        %v2719 = vmul.u32 %v2713, %v2715
        %v2720 = vshll.u32 %v2717, 16
        %v2721 = vshrl.u32 %v2717, 16
        %v2722 = vshll.u32 %v2718, 16
        %v2723 = vshrl.u32 %v2718, 16
        %vm2724 = vc.u32 %v2716, %v2720
        %v2725 = vsel %vm2724, 1, 0
        %v2726 = vadd.s32 %v2716, %v2720
        %v2727 = vadd.s32 %v2719, %v2725
        %vm2728 = vc.u32 %v2726, %v2722
        %v2729 = vsel %vm2728, 1, 0
        %v2730 = vadd.s32 %v2726, %v2722
        %v2731 = vadd.s32 %v2727, %v2729
        %v2732 = vadd.s32 %v2731, %v2721
        %v2733 = vadd.s32 %v2732, %v2723
        %v2734 = vmul.u32 %v2689, %v2680
        %v2735 = vadd.s32 %v2711, %v2730
        %vm2736 = vc.u32 %v2711, %v2730
        %v2737 = vadd.s32 %v2733, 1
        %v2738 = vsel %vm2736, %v2737, %v2733
        %v2739 = vadd.s32 %v2734, %v2738
        %v2740 = vadd.s32 %v2739, 536870912
        %v2741 = vshrl.u32 %v2740, 30
        %v2742 = vshll.u32 %v2741, 30
        %v2743 = vsub.s32 %v2739, %v2742
        %vm2744 = vcmp.lt.s32.totalorder %v2743, 0
        %v2745 = vsub.s32 0, %v2743
        %v2746 = vsel %vm2744, %v2745, %v2743
        %v2747 = vclz %v2746
        %v2748 = vsub.s32 %v2747, 2
        %vm2749 = vcmp.gt.s32.totalorder 0, %v2748
        %v2750 = vsel %vm2749, 0, %v2748
        %v2751 = vsub.s32 32, %v2750
        %v2752 = vshll.u32 %v2743, %v2750
        %v2753 = vshrl.u32 %v2735, %v2751
        %v2754 = vor.u32 %v2752, %v2753
        %v2755 = vsub.s32 4294967266, %v2750
        %v2756 = vadd.s32 %v2755, 127
        %v2757 = vshll.u32 %v2756, 23
        %v2758 = vor.u32 4788187, %v2757
        %v2759 = vand.u32 2147483647, %v2758
        %v2761 = vcvt.s32.f32 %v2754
        %v2762 = vmul.f32 %v2761, %v2759
        %v2763 = vxor.u32 %v2762, 2147483648
        %v2764 = vsel %vm2643, %v2763, %v2762
        %v2765 = vsub.s32 4, %v2741
        %v2766 = vsel %vm2643, %v2765, %v2741
        %v2767 = vsel %vm2642, %v777, %v2764
        %v2768 = vsel %vm2642, 0, %v2766
        %v2769 = vmul.f32 %v2767, %v2767
        %v2770 = vmul.f32 %v2769, -0.001358992
        %v2771 = vadd.f32 %v2770, 0.041655596
        %v2772 = vmul.f32 %v2769, %v2771
        %v2773 = vadd.f32 %v2772, -0.4999988
        %v2774 = vmul.f32 %v2769, %v2773
        %v2775 = vadd.f32 1.0, %v2774
        %v2776 = vmul.f32 %v2767, %v2767
        %v2777 = vmul.f32 %v2776, -0.00019511016
        %v2778 = vadd.f32 %v2777, 0.008332121
        %v2779 = vmul.f32 %v2776, %v2778
        %v2780 = vadd.f32 %v2779, -0.16666654
        %v2781 = vmul.f32 %v2776, %v2780
        %v2782 = vadd.f32 %v2781, 1.0
        %v2783 = vmul.f32 %v2782, %v2767
        %vm2784 = vweird.f32 %v777
        %v2785 = vadd.s32 %v2768, 3
        %v2786 = vand.u32 %v2785, 3
        %vm2787 = vcmp.lt.s32.totalorder %v2786, 2
        %vm2788 = vcmp.eq.s32.totalorder %v2786, 0
        %v2789 = vxor.u32 %v2783, 2147483648
        %v2790 = vsel %vm2788, %v2775, %v2789
        %vm2791 = vcmp.eq.s32.totalorder %v2786, 2
        %v2792 = vxor.u32 %v2775, 2147483648
        %v2793 = vsel %vm2791, %v2792, %v2783
        %v2794 = vsel %vm2787, %v2790, %v2793
        %v2795 = vsel %vm2784, nan, %v2794
        %v2796 = vand.u32 2147483647, %v778
        %vm2797 = vcmp.le.f32.partialorder %v2796, 0.7853982
        %vm2798 = vcmp.lt.s32.totalorder %v778, 0
        %v2799 = vand.u32 %v778, 2139095040
        %v2800 = vshrl.u32 %v2799, 23
        %v2801 = vsub.s32 %v2800, 127
        %v2802 = vand.u32 2147483647, %v778
        %v2803 = vand.u32 %v2802, 8388607
        %v2804 = vor.u32 %v2803, 8388608
        %v2805 = vsub.s32 0, %v2804
        %v2806 = vadd.s32 %v2801, 1
        %vm2807 = vcmp.gt.s32.totalorder %v2806, 0
        %v2808 = vsel %vm2807, %v2806, 0
        %v2809 = vshrl.u32 %v2808, 5
        %v2810 = vand.u32 %v2808, 31
        %v2811 = vsub.s32 32, %v2810
        %v2812 = vshrl.u32 683565275, %v2811
        %v2813 = vshll.u32 683565275, %v2810
        %v2814 = vshrl.u32 2475754826, %v2811
        %v2815 = vor.u32 %v2813, %v2814
        %v2816 = vshll.u32 2475754826, %v2810
        %v2817 = vshrl.u32 2131351028, %v2811
        %v2818 = vor.u32 %v2816, %v2817
        %v2819 = vshll.u32 2131351028, %v2810
        %v2820 = vshrl.u32 2102212464, %v2811
        %v2821 = vor.u32 %v2819, %v2820
        %v2822 = vshll.u32 2102212464, %v2810
        %v2823 = vshrl.u32 920167782, %v2811
        %v2824 = vor.u32 %v2822, %v2823
        %v2825 = vshll.u32 920167782, %v2810
        %v2826 = vshrl.u32 1326507024, %v2811
        %v2827 = vor.u32 %v2825, %v2826
        %vm2828 = vcmp.lt.s32.totalorder %v2809, 1
        %vm2829 = vcmp.lt.s32.totalorder %v2809, 2
        %vm2830 = vcmp.lt.s32.totalorder %v2809, 3
        %vm2831 = vcmp.lt.s32.totalorder %v2809, 4
        %v2832 = vsel %vm2828, %v2812, %v2815
        %v2833 = vsel %vm2831, %v2821, 2102212464
        %v2834 = vsel %vm2830, %v2818, %v2833
        %v2835 = vsel %vm2829, %v2832, %v2834
        %v2836 = vsel %vm2828, %v2815, %v2818
        %v2837 = vsel %vm2831, %v2824, 920167782
        %v2838 = vsel %vm2830, %v2821, %v2837
        %v2839 = vsel %vm2829, %v2836, %v2838
        %v2840 = vsel %vm2828, %v2818, %v2821
        %v2841 = vsel %vm2831, %v2827, 1326507024
        %v2842 = vsel %vm2830, %v2824, %v2841
        %v2843 = vsel %vm2829, %v2840, %v2842
        %v2844 = vshll.u32 %v2804, 8
        %v2845 = vand.u32 %v2844, 65535
        %v2846 = vshrl.u32 %v2844, 16
        %v2847 = vand.u32 %v2843, 65535
        %v2848 = vshrl.u32 %v2843, 16
        %v2849 = vmul.u32 %v2845, %v2847
        %v2850 = vmul.u32 %v2845, %v2848
        %v2851 = vmul.u32 %v2846, %v2847
        %v2852 = vmul.u32 %v2846, %v2848
        %v2853 = vshll.u32 %v2850, 16
        %v2854 = vshrl.u32 %v2850, 16
        %v2855 = vshll.u32 %v2851, 16
        %v2856 = vshrl.u32 %v2851, 16
        %vm2857 = vc.u32 %v2849, %v2853
        %v2858 = vsel %vm2857, 1, 0
        %v2859 = vadd.s32 %v2849, %v2853
        %v2860 = vadd.s32 %v2852, %v2858
        %vm2861 = vc.u32 %v2859, %v2855
        %v2862 = vsel %vm2861, 1, 0
        %v2863 = vadd.s32 %v2859, %v2855
        %v2864 = vadd.s32 %v2860, %v2862
        %v2865 = vadd.s32 %v2864, %v2854
        %v2866 = vadd.s32 %v2865, %v2856
        %v2867 = vand.u32 %v2844, 65535
        %v2868 = vshrl.u32 %v2844, 16
        %v2869 = vand.u32 %v2839, 65535
        %v2870 = vshrl.u32 %v2839, 16
        %v2871 = vmul.u32 %v2867, %v2869
        %v2872 = vmul.u32 %v2867, %v2870
        %v2873 = vmul.u32 %v2868, %v2869
        %v2874 = vmul.u32 %v2868, %v2870
        %v2875 = vshll.u32 %v2872, 16
        %v2876 = vshrl.u32 %v2872, 16
        %v2877 = vshll.u32 %v2873, 16
        %v2878 = vshrl.u32 %v2873, 16
        %vm2879 = vc.u32 %v2871, %v2875
        %v2880 = vsel %vm2879, 1, 0
        %v2881 = vadd.s32 %v2871, %v2875
        %v2882 = vadd.s32 %v2874, %v2880
        %vm2883 = vc.u32 %v2881, %v2877
        %v2884 = vsel %vm2883, 1, 0
        %v2885 = vadd.s32 %v2881, %v2877
        %v2886 = vadd.s32 %v2882, %v2884
        %v2887 = vadd.s32 %v2886, %v2876
        %v2888 = vadd.s32 %v2887, %v2878
        %v2889 = vmul.u32 %v2844, %v2835
        %v2890 = vadd.s32 %v2866, %v2885
        %vm2891 = vc.u32 %v2866, %v2885
        %v2892 = vadd.s32 %v2888, 1
        %v2893 = vsel %vm2891, %v2892, %v2888
        %v2894 = vadd.s32 %v2889, %v2893
        %v2895 = vadd.s32 %v2894, 536870912
        %v2896 = vshrl.u32 %v2895, 30
        %v2897 = vshll.u32 %v2896, 30
        %v2898 = vsub.s32 %v2894, %v2897
        %vm2899 = vcmp.lt.s32.totalorder %v2898, 0
        %v2900 = vsub.s32 0, %v2898
        %v2901 = vsel %vm2899, %v2900, %v2898
        %v2902 = vclz %v2901
        %v2903 = vsub.s32 %v2902, 2
        %vm2904 = vcmp.gt.s32.totalorder 0, %v2903
        %v2905 = vsel %vm2904, 0, %v2903
        %v2906 = vsub.s32 32, %v2905
        %v2907 = vshll.u32 %v2898, %v2905
        %v2908 = vshrl.u32 %v2890, %v2906
        %v2909 = vor.u32 %v2907, %v2908
        %v2910 = vsub.s32 4294967266, %v2905
        %v2911 = vadd.s32 %v2910, 127
        %v2912 = vshll.u32 %v2911, 23
        %v2913 = vor.u32 4788187, %v2912
        %v2914 = vand.u32 2147483647, %v2913
        %v2916 = vcvt.s32.f32 %v2909
        %v2917 = vmul.f32 %v2916, %v2914
        %v2918 = vxor.u32 %v2917, 2147483648
        %v2919 = vsel %vm2798, %v2918, %v2917
        %v2920 = vsub.s32 4, %v2896
        %v2921 = vsel %vm2798, %v2920, %v2896
        %v2922 = vsel %vm2797, %v778, %v2919
        %v2923 = vsel %vm2797, 0, %v2921
        %v2924 = vmul.f32 %v2922, %v2922
        %v2925 = vmul.f32 %v2924, -0.001358992
        %v2926 = vadd.f32 %v2925, 0.041655596
        %v2927 = vmul.f32 %v2924, %v2926
        %v2928 = vadd.f32 %v2927, -0.4999988
        %v2929 = vmul.f32 %v2924, %v2928
        %v2930 = vadd.f32 1.0, %v2929
        %v2931 = vmul.f32 %v2922, %v2922
        %v2932 = vmul.f32 %v2931, -0.00019511016
        %v2933 = vadd.f32 %v2932, 0.008332121
        %v2934 = vmul.f32 %v2931, %v2933
        %v2935 = vadd.f32 %v2934, -0.16666654
        %v2936 = vmul.f32 %v2931, %v2935
        %v2937 = vadd.f32 %v2936, 1.0
        %v2938 = vmul.f32 %v2937, %v2922
        %vm2939 = vweird.f32 %v778
        %v2940 = vadd.s32 %v2923, 3
        %v2941 = vand.u32 %v2940, 3
        %vm2942 = vcmp.lt.s32.totalorder %v2941, 2
        %vm2943 = vcmp.eq.s32.totalorder %v2941, 0
        %v2944 = vxor.u32 %v2938, 2147483648
        %v2945 = vsel %vm2943, %v2930, %v2944
        %vm2946 = vcmp.eq.s32.totalorder %v2941, 2
        %v2947 = vxor.u32 %v2930, 2147483648
        %v2948 = vsel %vm2946, %v2947, %v2938
        %v2949 = vsel %vm2942, %v2945, %v2948
        %v2950 = vsel %vm2939, nan, %v2949
        %v2951 = vand.u32 2147483647, %v779
        %vm2952 = vcmp.le.f32.partialorder %v2951, 0.7853982
        %vm2953 = vcmp.lt.s32.totalorder %v779, 0
        %v2954 = vand.u32 %v779, 2139095040
        %v2955 = vshrl.u32 %v2954, 23
        %v2956 = vsub.s32 %v2955, 127
        %v2957 = vand.u32 2147483647, %v779
        %v2958 = vand.u32 %v2957, 8388607
        %v2959 = vor.u32 %v2958, 8388608
        %v2960 = vsub.s32 0, %v2959
        %v2961 = vadd.s32 %v2956, 1
        %vm2962 = vcmp.gt.s32.totalorder %v2961, 0
        %v2963 = vsel %vm2962, %v2961, 0
        %v2964 = vshrl.u32 %v2963, 5
        %v2965 = vand.u32 %v2963, 31
        %v2966 = vsub.s32 32, %v2965
        %v2967 = vshrl.u32 683565275, %v2966
        %v2968 = vshll.u32 683565275, %v2965
        %v2969 = vshrl.u32 2475754826, %v2966
        %v2970 = vor.u32 %v2968, %v2969
        %v2971 = vshll.u32 2475754826, %v2965
        %v2972 = vshrl.u32 2131351028, %v2966
        %v2973 = vor.u32 %v2971, %v2972
        %v2974 = vshll.u32 2131351028, %v2965
        %v2975 = vshrl.u32 2102212464, %v2966
        %v2976 = vor.u32 %v2974, %v2975
        %v2977 = vshll.u32 2102212464, %v2965
        %v2978 = vshrl.u32 920167782, %v2966
        %v2979 = vor.u32 %v2977, %v2978
        %v2980 = vshll.u32 920167782, %v2965
        %v2981 = vshrl.u32 1326507024, %v2966
        %v2982 = vor.u32 %v2980, %v2981
        %vm2983 = vcmp.lt.s32.totalorder %v2964, 1
        %vm2984 = vcmp.lt.s32.totalorder %v2964, 2
        %vm2985 = vcmp.lt.s32.totalorder %v2964, 3
        %vm2986 = vcmp.lt.s32.totalorder %v2964, 4
        %v2987 = vsel %vm2983, %v2967, %v2970
        %v2988 = vsel %vm2986, %v2976, 2102212464
        %v2989 = vsel %vm2985, %v2973, %v2988
        %v2990 = vsel %vm2984, %v2987, %v2989
        %v2991 = vsel %vm2983, %v2970, %v2973
        %v2992 = vsel %vm2986, %v2979, 920167782
        %v2993 = vsel %vm2985, %v2976, %v2992
        %v2994 = vsel %vm2984, %v2991, %v2993
        %v2995 = vsel %vm2983, %v2973, %v2976
        %v2996 = vsel %vm2986, %v2982, 1326507024
        %v2997 = vsel %vm2985, %v2979, %v2996
        %v2998 = vsel %vm2984, %v2995, %v2997
        %v2999 = vshll.u32 %v2959, 8
        %v3000 = vand.u32 %v2999, 65535
        %v3001 = vshrl.u32 %v2999, 16
        %v3002 = vand.u32 %v2998, 65535
        %v3003 = vshrl.u32 %v2998, 16
        %v3004 = vmul.u32 %v3000, %v3002
        %v3005 = vmul.u32 %v3000, %v3003
        %v3006 = vmul.u32 %v3001, %v3002
        %v3007 = vmul.u32 %v3001, %v3003
        %v3008 = vshll.u32 %v3005, 16
        %v3009 = vshrl.u32 %v3005, 16
        %v3010 = vshll.u32 %v3006, 16
        %v3011 = vshrl.u32 %v3006, 16
        %vm3012 = vc.u32 %v3004, %v3008
        %v3013 = vsel %vm3012, 1, 0
        %v3014 = vadd.s32 %v3004, %v3008
        %v3015 = vadd.s32 %v3007, %v3013
        %vm3016 = vc.u32 %v3014, %v3010
        %v3017 = vsel %vm3016, 1, 0
        %v3018 = vadd.s32 %v3014, %v3010
        %v3019 = vadd.s32 %v3015, %v3017
        %v3020 = vadd.s32 %v3019, %v3009
        %v3021 = vadd.s32 %v3020, %v3011
        %v3022 = vand.u32 %v2999, 65535
        %v3023 = vshrl.u32 %v2999, 16
        %v3024 = vand.u32 %v2994, 65535
        %v3025 = vshrl.u32 %v2994, 16
        %v3026 = vmul.u32 %v3022, %v3024
        %v3027 = vmul.u32 %v3022, %v3025
        %v3028 = vmul.u32 %v3023, %v3024
        %v3029 = vmul.u32 %v3023, %v3025
        %v3030 = vshll.u32 %v3027, 16
        %v3031 = vshrl.u32 %v3027, 16
        %v3032 = vshll.u32 %v3028, 16
        %v3033 = vshrl.u32 %v3028, 16
        %vm3034 = vc.u32 %v3026, %v3030
        %v3035 = vsel %vm3034, 1, 0
        %v3036 = vadd.s32 %v3026, %v3030
        %v3037 = vadd.s32 %v3029, %v3035
        %vm3038 = vc.u32 %v3036, %v3032
        %v3039 = vsel %vm3038, 1, 0
        %v3040 = vadd.s32 %v3036, %v3032
        %v3041 = vadd.s32 %v3037, %v3039
        %v3042 = vadd.s32 %v3041, %v3031
        %v3043 = vadd.s32 %v3042, %v3033
        %v3044 = vmul.u32 %v2999, %v2990
        %v3045 = vadd.s32 %v3021, %v3040
        %vm3046 = vc.u32 %v3021, %v3040
        %v3047 = vadd.s32 %v3043, 1
        %v3048 = vsel %vm3046, %v3047, %v3043
        %v3049 = vadd.s32 %v3044, %v3048
        %v3050 = vadd.s32 %v3049, 536870912
        %v3051 = vshrl.u32 %v3050, 30
        %v3052 = vshll.u32 %v3051, 30
        %v3053 = vsub.s32 %v3049, %v3052
        %vm3054 = vcmp.lt.s32.totalorder %v3053, 0
        %v3055 = vsub.s32 0, %v3053
        %v3056 = vsel %vm3054, %v3055, %v3053
        %v3057 = vclz %v3056
        %v3058 = vsub.s32 %v3057, 2
        %vm3059 = vcmp.gt.s32.totalorder 0, %v3058
        %v3060 = vsel %vm3059, 0, %v3058
        %v3061 = vsub.s32 32, %v3060
        %v3062 = vshll.u32 %v3053, %v3060
        %v3063 = vshrl.u32 %v3045, %v3061
        %v3064 = vor.u32 %v3062, %v3063
        %v3065 = vsub.s32 4294967266, %v3060
        %v3066 = vadd.s32 %v3065, 127
        %v3067 = vshll.u32 %v3066, 23
        %v3068 = vor.u32 4788187, %v3067
        %v3069 = vand.u32 2147483647, %v3068
        %v3071 = vcvt.s32.f32 %v3064
        %v3072 = vmul.f32 %v3071, %v3069
        %v3073 = vxor.u32 %v3072, 2147483648
        %v3074 = vsel %vm2953, %v3073, %v3072
        %v3075 = vsub.s32 4, %v3051
        %v3076 = vsel %vm2953, %v3075, %v3051
        %v3077 = vsel %vm2952, %v779, %v3074
        %v3078 = vsel %vm2952, 0, %v3076
        %v3079 = vmul.f32 %v3077, %v3077
        %v3080 = vmul.f32 %v3079, -0.001358992
        %v3081 = vadd.f32 %v3080, 0.041655596
        %v3082 = vmul.f32 %v3079, %v3081
        %v3083 = vadd.f32 %v3082, -0.4999988
        %v3084 = vmul.f32 %v3079, %v3083
        %v3085 = vadd.f32 1.0, %v3084
        %v3086 = vmul.f32 %v3077, %v3077
        %v3087 = vmul.f32 %v3086, -0.00019511016
        %v3088 = vadd.f32 %v3087, 0.008332121
        %v3089 = vmul.f32 %v3086, %v3088
        %v3090 = vadd.f32 %v3089, -0.16666654
        %v3091 = vmul.f32 %v3086, %v3090
        %v3092 = vadd.f32 %v3091, 1.0
        %v3093 = vmul.f32 %v3092, %v3077
        %vm3094 = vweird.f32 %v779
        %v3095 = vadd.s32 %v3078, 3
        %v3096 = vand.u32 %v3095, 3
        %vm3097 = vcmp.lt.s32.totalorder %v3096, 2
        %vm3098 = vcmp.eq.s32.totalorder %v3096, 0
        %v3099 = vxor.u32 %v3093, 2147483648
        %v3100 = vsel %vm3098, %v3085, %v3099
        %vm3101 = vcmp.eq.s32.totalorder %v3096, 2
        %v3102 = vxor.u32 %v3085, 2147483648
        %v3103 = vsel %vm3101, %v3102, %v3093
        %v3104 = vsel %vm3097, %v3100, %v3103
        %v3105 = vsel %vm3094, nan, %v3104
        %v3106 = vand.u32 2147483647, %v780
        %vm3107 = vcmp.le.f32.partialorder %v3106, 0.7853982
        %vm3108 = vcmp.lt.s32.totalorder %v780, 0
        %v3109 = vand.u32 %v780, 2139095040
        %v3110 = vshrl.u32 %v3109, 23
        %v3111 = vsub.s32 %v3110, 127
        %v3112 = vand.u32 2147483647, %v780
        %v3113 = vand.u32 %v3112, 8388607
        %v3114 = vor.u32 %v3113, 8388608
        %v3115 = vsub.s32 0, %v3114
        %v3116 = vadd.s32 %v3111, 1
        %vm3117 = vcmp.gt.s32.totalorder %v3116, 0
        %v3118 = vsel %vm3117, %v3116, 0
        %v3119 = vshrl.u32 %v3118, 5
        %v3120 = vand.u32 %v3118, 31
        %v3121 = vsub.s32 32, %v3120
        %v3122 = vshrl.u32 683565275, %v3121
        %v3123 = vshll.u32 683565275, %v3120
        %v3124 = vshrl.u32 2475754826, %v3121
        %v3125 = vor.u32 %v3123, %v3124
        %v3126 = vshll.u32 2475754826, %v3120
        %v3127 = vshrl.u32 2131351028, %v3121
        %v3128 = vor.u32 %v3126, %v3127
        %v3129 = vshll.u32 2131351028, %v3120
        %v3130 = vshrl.u32 2102212464, %v3121
        %v3131 = vor.u32 %v3129, %v3130
        %v3132 = vshll.u32 2102212464, %v3120
        %v3133 = vshrl.u32 920167782, %v3121
        %v3134 = vor.u32 %v3132, %v3133
        %v3135 = vshll.u32 920167782, %v3120
        %v3136 = vshrl.u32 1326507024, %v3121
        %v3137 = vor.u32 %v3135, %v3136
        %vm3138 = vcmp.lt.s32.totalorder %v3119, 1
        %vm3139 = vcmp.lt.s32.totalorder %v3119, 2
        %vm3140 = vcmp.lt.s32.totalorder %v3119, 3
        %vm3141 = vcmp.lt.s32.totalorder %v3119, 4
        %v3142 = vsel %vm3138, %v3122, %v3125
        %v3143 = vsel %vm3141, %v3131, 2102212464
        %v3144 = vsel %vm3140, %v3128, %v3143
        %v3145 = vsel %vm3139, %v3142, %v3144
        %v3146 = vsel %vm3138, %v3125, %v3128
        %v3147 = vsel %vm3141, %v3134, 920167782
        %v3148 = vsel %vm3140, %v3131, %v3147
        %v3149 = vsel %vm3139, %v3146, %v3148
        %v3150 = vsel %vm3138, %v3128, %v3131
        %v3151 = vsel %vm3141, %v3137, 1326507024
        %v3152 = vsel %vm3140, %v3134, %v3151
        %v3153 = vsel %vm3139, %v3150, %v3152
        %v3154 = vshll.u32 %v3114, 8
        %v3155 = vand.u32 %v3154, 65535
        %v3156 = vshrl.u32 %v3154, 16
        %v3157 = vand.u32 %v3153, 65535
        %v3158 = vshrl.u32 %v3153, 16
        %v3159 = vmul.u32 %v3155, %v3157
        %v3160 = vmul.u32 %v3155, %v3158
        %v3161 = vmul.u32 %v3156, %v3157
        %v3162 = vmul.u32 %v3156, %v3158
        %v3163 = vshll.u32 %v3160, 16
        %v3164 = vshrl.u32 %v3160, 16
        %v3165 = vshll.u32 %v3161, 16
        %v3166 = vshrl.u32 %v3161, 16
        %vm3167 = vc.u32 %v3159, %v3163
        %v3168 = vsel %vm3167, 1, 0
        %v3169 = vadd.s32 %v3159, %v3163
        %v3170 = vadd.s32 %v3162, %v3168
        %vm3171 = vc.u32 %v3169, %v3165
        %v3172 = vsel %vm3171, 1, 0
        %v3173 = vadd.s32 %v3169, %v3165
        %v3174 = vadd.s32 %v3170, %v3172
        %v3175 = vadd.s32 %v3174, %v3164
        %v3176 = vadd.s32 %v3175, %v3166
        %v3177 = vand.u32 %v3154, 65535
        %v3178 = vshrl.u32 %v3154, 16
        %v3179 = vand.u32 %v3149, 65535
        %v3180 = vshrl.u32 %v3149, 16
        %v3181 = vmul.u32 %v3177, %v3179
        %v3182 = vmul.u32 %v3177, %v3180
        %v3183 = vmul.u32 %v3178, %v3179
        %v3184 = vmul.u32 %v3178, %v3180
        %v3185 = vshll.u32 %v3182, 16
        %v3186 = vshrl.u32 %v3182, 16
        %v3187 = vshll.u32 %v3183, 16
        %v3188 = vshrl.u32 %v3183, 16
        %vm3189 = vc.u32 %v3181, %v3185
        %v3190 = vsel %vm3189, 1, 0
        %v3191 = vadd.s32 %v3181, %v3185
        %v3192 = vadd.s32 %v3184, %v3190
        %vm3193 = vc.u32 %v3191, %v3187
        %v3194 = vsel %vm3193, 1, 0
        %v3195 = vadd.s32 %v3191, %v3187
        %v3196 = vadd.s32 %v3192, %v3194
        %v3197 = vadd.s32 %v3196, %v3186
        %v3198 = vadd.s32 %v3197, %v3188
        %v3199 = vmul.u32 %v3154, %v3145
        %v3200 = vadd.s32 %v3176, %v3195
        %vm3201 = vc.u32 %v3176, %v3195
        %v3202 = vadd.s32 %v3198, 1
        %v3203 = vsel %vm3201, %v3202, %v3198
        %v3204 = vadd.s32 %v3199, %v3203
        %v3205 = vadd.s32 %v3204, 536870912
        %v3206 = vshrl.u32 %v3205, 30
        %v3207 = vshll.u32 %v3206, 30
        %v3208 = vsub.s32 %v3204, %v3207
        %vm3209 = vcmp.lt.s32.totalorder %v3208, 0
        %v3210 = vsub.s32 0, %v3208
        %v3211 = vsel %vm3209, %v3210, %v3208
        %v3212 = vclz %v3211
        %v3213 = vsub.s32 %v3212, 2
        %vm3214 = vcmp.gt.s32.totalorder 0, %v3213
        %v3215 = vsel %vm3214, 0, %v3213
        %v3216 = vsub.s32 32, %v3215
        %v3217 = vshll.u32 %v3208, %v3215
        %v3218 = vshrl.u32 %v3200, %v3216
        %v3219 = vor.u32 %v3217, %v3218
        %v3220 = vsub.s32 4294967266, %v3215
        %v3221 = vadd.s32 %v3220, 127
        %v3222 = vshll.u32 %v3221, 23
        %v3223 = vor.u32 4788187, %v3222
        %v3224 = vand.u32 2147483647, %v3223
        %v3226 = vcvt.s32.f32 %v3219
        %v3227 = vmul.f32 %v3226, %v3224
        %v3228 = vxor.u32 %v3227, 2147483648
        %v3229 = vsel %vm3108, %v3228, %v3227
        %v3230 = vsub.s32 4, %v3206
        %v3231 = vsel %vm3108, %v3230, %v3206
        %v3232 = vsel %vm3107, %v780, %v3229
        %v3233 = vsel %vm3107, 0, %v3231
        %v3234 = vmul.f32 %v3232, %v3232
        %v3235 = vmul.f32 %v3234, -0.001358992
        %v3236 = vadd.f32 %v3235, 0.041655596
        %v3237 = vmul.f32 %v3234, %v3236
        %v3238 = vadd.f32 %v3237, -0.4999988
        %v3239 = vmul.f32 %v3234, %v3238
        %v3240 = vadd.f32 1.0, %v3239
        %v3241 = vmul.f32 %v3232, %v3232
        %v3242 = vmul.f32 %v3241, -0.00019511016
        %v3243 = vadd.f32 %v3242, 0.008332121
        %v3244 = vmul.f32 %v3241, %v3243
        %v3245 = vadd.f32 %v3244, -0.16666654
        %v3246 = vmul.f32 %v3241, %v3245
        %v3247 = vadd.f32 %v3246, 1.0
        %v3248 = vmul.f32 %v3247, %v3232
        %vm3249 = vweird.f32 %v780
        %v3250 = vadd.s32 %v3233, 3
        %v3251 = vand.u32 %v3250, 3
        %vm3252 = vcmp.lt.s32.totalorder %v3251, 2
        %vm3253 = vcmp.eq.s32.totalorder %v3251, 0
        %v3254 = vxor.u32 %v3248, 2147483648
        %v3255 = vsel %vm3253, %v3240, %v3254
        %vm3256 = vcmp.eq.s32.totalorder %v3251, 2
        %v3257 = vxor.u32 %v3240, 2147483648
        %v3258 = vsel %vm3256, %v3257, %v3248
        %v3259 = vsel %vm3252, %v3255, %v3258
        %v3260 = vsel %vm3249, nan, %v3259
        %v3261 = vmul.f32 %v688, %v2175
        %v3262 = vmul.f32 %v700, %v2330
        %v3263 = vmul.f32 %v712, %v2485
        %v3264 = vmul.f32 %v724, %v2640
        %v3265 = vmul.f32 %v736, %v2795
        %v3266 = vmul.f32 %v748, %v2950
        %v3267 = vmul.f32 %v760, %v3105
        %v3268 = vmul.f32 %v772, %v3260
        %v3277 = vrot.slane %v3261, 6
        %v3278 = vrot.slane %v3262, 6
        %v3279 = vrot.slane %v3263, 6
        %v3280 = vrot.slane %v3264, 6
        %v3281 = vrot.slane %v3265, 6
        %v3282 = vrot.slane %v3266, 6
        %v3283 = vrot.slane %v3267, 6
        %v3284 = vrot.slane %v3268, 6
        %vm3293 = vcmask 1041408
        %v3294 = vsel %vm3293, %v2013, %v3277
        %v3295 = vsel %vm3293, %v2014, %v3278
        %v3296 = vsel %vm3293, %v2015, %v3279
        %v3297 = vsel %vm3293, %v2016, %v3280
        %v3298 = vsel %vm3293, %v2017, %v3281
        %v3299 = vsel %vm3293, %v2018, %v3282
        %v3300 = vsel %vm3293, %v2019, %v3283
        %v3301 = vsel %vm3293, %v2020, %v3284
        %v3302 = vld [vmem:[%s4] sm:$0xf]
        %3304 = vset.pattern.permute.xlu0 0
        %3305 = vperm.xlu0 %3304, %v3302
        %v3306 = vpop.permute.xlu0 %3305
        %v3316 = vrot.slane %v403, 4
        %v3317 = vrot.slane %v405, 4
        %v3318 = vrot.slane %v407, 4
        %v3319 = vrot.slane %v409, 4
        %v3320 = vrot.slane %v411, 4
        %v3321 = vrot.slane %v413, 4
        %v3322 = vrot.slane %v415, 4
        %v3323 = vrot.slane %v417, 4
        %v3332 = vmul.f32 %v3306, %v3316
        %v3333 = vmul.f32 %v3306, %v3317
        %v3334 = vmul.f32 %v3306, %v3318
        %v3335 = vmul.f32 %v3306, %v3319
        %v3336 = vmul.f32 %v3306, %v3320
        %v3337 = vmul.f32 %v3306, %v3321
        %v3338 = vmul.f32 %v3306, %v3322
        %v3339 = vmul.f32 %v3306, %v3323
        %v3340 = vmul.f32 %v3332, %v3294
        %v3341 = vmul.f32 %v3333, %v3295
        %v3342 = vmul.f32 %v3334, %v3296
        %v3343 = vmul.f32 %v3335, %v3297
        %v3344 = vmul.f32 %v3336, %v3298
        %v3345 = vmul.f32 %v3337, %v3299
        %v3346 = vmul.f32 %v3338, %v3300
        %v3347 = vmul.f32 %v3339, %v3301
        %v3348 = vadd.f32 %v370, %v3340
        %v3349 = vadd.f32 %v371, %v3341
        %v3350 = vadd.f32 %v372, %v3342
        %v3351 = vadd.f32 %v373, %v3343
        %v3352 = vadd.f32 %v374, %v3344
        %v3353 = vadd.f32 %v375, %v3345
        %v3354 = vadd.f32 %v376, %v3346
        %v3355 = vadd.f32 %v377, %v3347
        %v3356 = vpack.c.bf16 %v3349, %v3348
        %v3357 = vpack.c.bf16 %v3351, %v3350
        %v3358 = vpack.c.bf16 %v3353, %v3352
        %v3359 = vpack.c.bf16 %v3355, %v3354
        %v3364 = vrot.slane %v3356, 2
        %v3365 = vrot.slane %v3357, 4
        %v3366 = vrot.slane %v3357, 6
        %v3367 = vrot.slane %v3358, 2
        %v3368 = vrot.slane %v3359, 4
        %v3369 = vrot.slane %v3359, 6
        %v3372 = vsel %vm3293, %v3356, %v3364
        %vm3373 = vcmask 1045508
        %v3376 = vsel %vm3373, %v3365, %v3366
        %vm3377 = vcmask 1043456
        %v3378 = vsel %vm3377, %v3372, %v3376
        %v3381 = vsel %vm3293, %v3358, %v3367
        %v3384 = vsel %vm3373, %v3368, %v3369
        %v3385 = vsel %vm3377, %v3381, %v3384
        %3388 = vst [vmem:[%s217] sm:$0xff] %v3378
        %3389 = vst [vmem:[%s217 + $0x8] sm:$0xff] %v3385
        %s3390 = sand.u32 %s133, 1
        %s3391 = scalar_lea.sflag [#allocation5], %s3390
        %s3392 = sand.u32 %s133, 1
        %s3393 = smul.addr %s3392, 16
        %s3394 = scalar_lea.vmem [#allocation4], %s3393
        // Predicated region
        $region37: #{tpu_custom_call.1} parent=35 // pred_check
          %p3395 = pneg %p143
        $region38: #{tpu_custom_call.1} parent=35 // pred_check_branch
          %3397 = sbr.rel (%p3395) target = $region40
        $region39: #{tpu_custom_call.1} parent=35 // pred_region
          %s3398 = smul.u32 8, %s25
          %3400 = vsyncadd %s3391, 0
          %s3401 = smul.addr %s24, 8
          %s3402 = sadd.s32 %s3398, %s3401
          %s3403 = smul.addr %s3402, 2
          %s3404 = scalar_lea.hbm %s5, %s3403
          %s3406 = sshll.u32 %s3394, 4
          %s3407 = int_to_ptr.vmem [resolvable:$true] %s3406
          %s3408 = sshll.u32 %s3404, 4
          %s3409 = int_to_ptr.hbm [resolvable:$true] %s3408
          %3411 = dma.vmem_to_hbm [thread:$0]  %s3407, 256, %s3409, %s3391
        $region40: #{tpu_custom_call.1} parent=35 // pred_fallthru
          _
      $region36: #{tpu_custom_call.1} parent=5 // pred_fallthru
        _
      %p3412 = scmp.le.s32.totalorder 2, %s15
      // Predicated region
      $region41: #{tpu_custom_call.1} parent=5 // pred_check
        %p3413 = pneg %p3412
      $region42: #{tpu_custom_call.1} parent=5 // pred_check_branch
        %3415 = sbr.rel (%p3413) target = $region44
      $region43: #{tpu_custom_call.1} parent=5 // pred_region
        %s3416 = ssub.s32 %s15, 2
        // Predicated region
        $region45: #{tpu_custom_call.1} parent=43 // pred_check
          %p3417 = pneg %p149
        $region46: #{tpu_custom_call.1} parent=43 // pred_check_branch
          %3419 = sbr.rel (%p3417) target = $region48
        $region47: #{tpu_custom_call.1} parent=43 // pred_region
          %s3420 = sand.u32 %s134, 1
          %s3421 = scalar_lea.sflag [#allocation5], %s3420
          %s3422 = sand.u32 %s134, 1
          %s3423 = smul.addr %s3422, 16
          %s3424 = scalar_lea.vmem [#allocation4], %s3423
          %3426 = dma.done %s3421, 256
        $region48: #{tpu_custom_call.1} parent=43 // pred_fallthru
          _
      $region44: #{tpu_custom_call.1} parent=5 // pred_fallthru
        _
    $region6: #{tpu_custom_call.1} parent=1 // loop_footer
      %s19 = sadd.s32 1, %s15
    $region7: #{tpu_custom_call.1} parent=1 // loop_footer_branch
      %14 = sbr.rel target = $region3
    $region8: #{tpu_custom_call.1} parent=1 // loop_exit
      _
    %3427 = vsyncpa [#allocation5], 1
    %s3428 = scalar_lea.sflag [#allocation5], 1
    %3429 = vsyncpa %s3428, 1

</llo_original>
